<compile_context>
chip_gen: v5e
topology: v5e:2x2
jax: 0.10.0
libtpu: 0.0.40
codegen_flags: <defaults>
</compile_context>

<pallas_src>
import functools

import jax
import jax.numpy as jnp
import numpy as np
from jax import lax
from jax.experimental import pallas as pl
from jax.experimental.pallas import tpu as pltpu

LANE = 128    # vreg lane granule (last dim)
SUBLANE = 8   # vreg sublane granule (second-to-last dim)


def _round_up(n, m):
    return ((n + m - 1) // m) * m


def _pad_axis(a, axis, new):
    pads = [(0, 0)] * a.ndim
    pads[axis] = (0, new - a.shape[axis])
    return jnp.pad(a, pads)


def _pad_gates_last(a, h, h_pad):
    """(..., 3*h) with gate order [r, z, n] -> (..., 3*h_pad): each gate padded to
    h_pad so every gate slab starts on a 128-lane boundary."""
    pads = [(0, 0)] * (a.ndim - 1) + [(0, h_pad - h)]
    parts = [jnp.pad(a[..., g * h:(g + 1) * h], pads) for g in range(3)]
    return jnp.concatenate(parts, axis=-1)


def _pick_unroll(n):
    for u in (8, 4, 2):
        if n % u == 0:
            return u
    return 1


# ----------------------------------------------------------------------------
# Fused Pallas kernel: input MLP -> stacked GRU -> output MLP (one batch tile)
# ----------------------------------------------------------------------------
def fused_gru_kernel(*refs, num_layers, T, B_tile, H_pad, chunk,
                     has_input, has_output, mm_dtype):
    out_ref = refs[-3]
    h_seq_ref = refs[-2]   # (T*B_tile, H_pad) f32: current layer's hidden sequence
    gi_ref = refs[-1]      # (chunk*B_tile, 3*H_pad) f32: input projection, one time chunk
    ins = refs[:-3]

    i = 0
    x_ref = ins[i]; i += 1
    if has_input:
        in_w_ref, in_b_ref = ins[i], ins[i + 1]
        i += 2
    layer_refs = []
    for _ in range(num_layers):
        layer_refs.append(ins[i:i + 4])
        i += 4
    if has_output:
        ow1_ref, ob1_ref, ow2_ref, ob2_ref = ins[i:i + 4]
        i += 4

    def mm(a, w):
        # matmul operands optionally bf16; accumulation always f32 on the MXU.
        return jnp.dot(a.astype(mm_dtype), w, preferred_element_type=jnp.float32)

    n_chunks = (T + chunk - 1) // chunk
    bounds = [(c * chunk, min(chunk, T - c * chunk)) for c in range(n_chunks)]
    Fin = x_ref.shape[-1]

    if has_input:
        in_w = in_w_ref[...]
        in_b = in_b_ref[...]

    def layer0_input(t0, clen):
        # (clen, B_tile, Fin) -> (clen*B_tile, Fin); rows are (t, b) ordered.
        xs = x_ref[pl.ds(t0, clen), :, :].reshape(clen * B_tile, Fin)
        if has_input:
            return jnp.maximum(mm(xs, in_w) + in_b, 0.0)
        return xs

    # ---- stacked GRU layers, all resident in VMEM (no HBM round trips) ----
    for layer in range(num_layers):
        w_ih_ref, w_hh_ref, gi_b_ref, b_hn_ref = layer_refs[layer]
        w_ih = w_ih_ref[...]                                     # hoisted weight loads
        w_hh = w_hh_ref[...]
        gi_b = gi_b_ref[...]
        b_hn = jnp.broadcast_to(b_hn_ref[...], (B_tile, H_pad))  # hoisted broadcast

        h = jnp.zeros((B_tile, H_pad), jnp.float32)              # hidden=None -> zeros
        for (t0, clen) in bounds:
            r0 = t0 * B_tile
            rows = clen * B_tile

            # time-chunked gi: one MXU matmul per chunk, r/z biases prefolded.
            if layer == 0:
                inp = layer0_input(t0, clen)
            else:
                inp = h_seq_ref[pl.ds(r0, rows), :]   # read completes before writes below
            gi_ref[pl.ds(0, rows), :] = mm(inp, w_ih) + gi_b

            def step(t, h_c, r0=r0):
                lrow = pl.multiple_of(t * B_tile, B_tile)
                gi_t = gi_ref[pl.ds(lrow, B_tile), :]
                # TODO(synk): W_hh could be kept MXU-resident across the time loop via
                # pltpu.matmul_push_rhs/_acc_lhs/_pop; using jnp.dot for portability.
                gh = jnp.dot(h_c.astype(mm_dtype), w_hh,
                             preferred_element_type=jnp.float32)
                # fused r|z sigmoid over the contiguous lane-aligned [0:2*H_pad] slab
                rz = jax.nn.sigmoid(gi_t[:, 0:2 * H_pad] + gh[:, 0:2 * H_pad])
                r = rz[:, 0:H_pad]
                z = rz[:, H_pad:2 * H_pad]
                n = jnp.tanh(gi_t[:, 2 * H_pad:3 * H_pad]
                             + r * (gh[:, 2 * H_pad:3 * H_pad] + b_hn))
                h_new = n + z * (h_c - n)            # == (1-z)*n + z*h, one fewer VALU op
                grow = pl.multiple_of(r0 + t * B_tile, B_tile)
                h_seq_ref[pl.ds(grow, B_tile), :] = h_new
                return h_new

            h = lax.fori_loop(0, clen, step, h, unroll=_pick_unroll(clen))

    # ---- output head: Linear -> ReLU -> Linear, chunked over rows ----
    out_cols = out_ref.shape[-1]
    for (t0, clen) in bounds:
        r0 = t0 * B_tile
        rows = clen * B_tile
        h_c = h_seq_ref[pl.ds(r0, rows), :]
        if has_output:
            hid = jnp.maximum(mm(h_c, ow1_ref[...]) + ob1_ref[...], 0.0)
            o = mm(hid, ow2_ref[...]) + ob2_ref[...]
        else:
            o = h_c
        out_ref[pl.ds(t0, clen), :, :] = o.reshape(clen, B_tile, out_cols)


# ----------------------------------------------------------------------------
# pallas_call wrapper (jitted)
# ----------------------------------------------------------------------------
def _gru_plain_forward(kparams, x, *, num_layers, H_pad, B_tile, time_chunk,
                       has_input, has_output, out_dim, out_cols, mm_dtype):
    B, T, Fin = x.shape
    B_pad = _round_up(B, B_tile)
    n_tiles = B_pad // B_tile
    chunk = min(time_chunk, T)

    # time-major (T, B_pad, Fin); batch padded to the tile granule; bf16 if requested.
    # TODO(synk): this host-side transpose of x is one extra HBM pass; it could be
    # folded into the kernel with an in-kernel (B_tile,T,F)->(T,B_tile,F) reorder.
    x_tm = _pad_axis(jnp.transpose(x, (1, 0, 2)), 1, B_pad).astype(mm_dtype)

    args = [x_tm]
    if has_input:
        args += [kparams["in_w"], kparams["in_b"]]
    for layer in range(num_layers):
        args += [kparams[f"w_ih_{layer}"], kparams[f"w_hh_{layer}"],
                 kparams[f"gi_b_{layer}"], kparams[f"b_hn_{layer}"]]
    if has_output:
        args += [kparams["out_w1"], kparams["out_b1"],
                 kparams["out_w2"], kparams["out_b2"]]

    out_shape = jax.ShapeDtypeStruct((T, B_pad, out_cols), jnp.float32)

    kernel = functools.partial(
        fused_gru_kernel, num_layers=num_layers, T=T, B_tile=B_tile, H_pad=H_pad,
        chunk=chunk, has_input=has_input, has_output=has_output, mm_dtype=mm_dtype)

    # x / out tiled over batch (pipelined per-tile DMA); weights & biases get a
    # constant index_map so they stay VMEM-resident across grid steps.
    in_specs = [pl.BlockSpec((T, B_tile, Fin), lambda i: (0, i, 0))]
    for a in args[1:]:
        in_specs.append(pl.BlockSpec(a.shape, (lambda i, nd=a.ndim: (0,) * nd)))
    out_specs = pl.BlockSpec((T, B_tile, out_cols), lambda i: (0, i, 0))

    scratch_shapes = [
        pltpu.VMEM((T * B_tile, H_pad), jnp.float32),           # hidden sequence
        pltpu.VMEM((chunk * B_tile, 3 * H_pad), jnp.float32),   # time-chunked gi
    ]

    # explicit VMEM budget: double-buffered blocks + scratch + headroom
    def nbytes(shape, dtype):
        return int(np.prod(shape)) * jnp.dtype(dtype).itemsize

    est = 2 * nbytes((T, B_tile, Fin), x_tm.dtype)
    est += sum(2 * nbytes(a.shape, a.dtype) for a in args[1:])
    est += 2 * nbytes((T, B_tile, out_cols), jnp.float32)
    est += nbytes((T * B_tile, H_pad), jnp.float32)
    est += nbytes((chunk * B_tile, 3 * H_pad), jnp.float32)
    vmem_limit = int(min(max(int(est * 1.5) + (4 << 20), 32 << 20), 120 << 20))

    out3d = pl.pallas_call(
        kernel,
        out_shape=out_shape,
        grid_spec=pltpu.PrefetchScalarGridSpec(
            num_scalar_prefetch=0,
            grid=(n_tiles,),
            in_specs=in_specs,
            out_specs=out_specs,
            scratch_shapes=scratch_shapes,
        ),
        compiler_params=pltpu.CompilerParams(
            dimension_semantics=("parallel",),   # megacore sharding on v7x
            vmem_limit_bytes=vmem_limit),
    )(*args)

    out = out3d[:, :B, :out_dim]           # slice first, then the small transpose
    return jnp.transpose(out, (1, 0, 2))   # back to batch-first (B, T, out_dim)


# ----------------------------------------------------------------------------
# GRU_plain module in JAX
# ----------------------------------------------------------------------------
def xavier_uniform(key, shape, gain=1.0):
    # torch convention: shape = (out_features, in_features)
    fan_out, fan_in = shape
    a = gain * jnp.sqrt(6.0 / (fan_in + fan_out))
    return jax.random.uniform(key, shape, jnp.float32, -a, a)


class GRUPlainPallas:
    def __init__(self, input_size, embedding_size, hidden_size, num_layers,
                 has_input=True, has_output=False, output_size=None, seed=0,
                 matmul_dtype=jnp.float32, batch_tile=None, time_chunk=128):
        self.num_layers = num_layers
        self.hidden_size = hidden_size
        self.has_input = has_input
        self.has_output = has_output
        self.output_size = output_size
        self.matmul_dtype = matmul_dtype
        if batch_tile is None:
            # bf16 inputs pack 16 rows per sublane tile; f32 pack 8.
            batch_tile = 16 if jnp.dtype(matmul_dtype) == jnp.dtype(jnp.bfloat16) else SUBLANE
        self.batch_tile = batch_tile
        self.time_chunk = time_chunk

        key = jax.random.PRNGKey(seed)
        relu_gain = float(np.sqrt(2.0))   # calculate_gain('relu')
        sig_gain = 1.0                    # calculate_gain('sigmoid')
        p = {}

        if has_input:
            key, k = jax.random.split(key)
            p["in_w"] = xavier_uniform(k, (embedding_size, input_size), relu_gain)
            p["in_b"] = jnp.zeros((embedding_size,), jnp.float32)
            rnn_in = embedding_size
        else:
            rnn_in = input_size

        for layer in range(num_layers):
            e = rnn_in if layer == 0 else hidden_size
            key, k1, k2 = jax.random.split(key, 3)
            p[f"w_ih_{layer}"] = xavier_uniform(k1, (3 * hidden_size, e), sig_gain)
            p[f"w_hh_{layer}"] = xavier_uniform(k2, (3 * hidden_size, hidden_size), sig_gain)
            p[f"b_ih_{layer}"] = jnp.full((3 * hidden_size,), 0.25, jnp.float32)
            p[f"b_hh_{layer}"] = jnp.full((3 * hidden_size,), 0.25, jnp.float32)

        if has_output:
            key, k1, k2 = jax.random.split(key, 3)
            p["out_w1"] = xavier_uniform(k1, (embedding_size, hidden_size), relu_gain)
            p["out_b1"] = jnp.zeros((embedding_size,), jnp.float32)
            p["out_w2"] = xavier_uniform(k2, (output_size, embedding_size), relu_gain)
            p["out_b2"] = jnp.zeros((output_size,), jnp.float32)

        self.params = p
        self.kparams = self._build_kernel_params(
            p, input_size, embedding_size, hidden_size, num_layers,
            has_input, has_output, output_size, matmul_dtype)

        H_pad = _round_up(hidden_size, LANE)
        if has_output:
            out_dim, out_cols = output_size, _round_up(output_size, LANE)
        else:
            out_dim, out_cols = hidden_size, H_pad

        self._forward = jax.jit(functools.partial(
            _gru_plain_forward,
            num_layers=num_layers, H_pad=H_pad,
            B_tile=self.batch_tile, time_chunk=self.time_chunk,
            has_input=has_input, has_output=has_output,
            out_dim=out_dim, out_cols=out_cols, mm_dtype=matmul_dtype))

        # TODO(synk): pack_padded_sequence / pad_packed_sequence (pack=True path)
        # has no clean Pallas equivalent; only the pack=False path is implemented.
        # TODO(synk): persistent self.hidden carried across forward() calls is not
        # implemented; every call starts from a zero hidden state (hidden=None).
        # TODO(synk): for very small hidden_size the per-gate padding to 128 lanes
        # wastes MXU flops / gi bandwidth; a packed 3H<=128 gate layout with lane
        # selects would avoid it but is not implemented.

    @staticmethod
    def _build_kernel_params(p, input_size, embedding_size, hidden_size,
                             num_layers, has_input, has_output, output_size,
                             mm_dtype):
        H = hidden_size
        H_pad = _round_up(H, LANE)
        E_pad = _round_up(embedding_size, LANE)
        kp = {}

        if has_input:
            kp["in_w"] = _pad_axis(p["in_w"].T, 1, E_pad).astype(mm_dtype)      # (in, E_pad)
            kp["in_b"] = _pad_axis(p["in_b"], 0, E_pad).reshape(1, -1)

        for layer in range(num_layers):
            w_ih_t = _pad_gates_last(p[f"w_ih_{layer}"].T, H, H_pad)            # (in, 3*H_pad)
            w_hh_t = _pad_gates_last(p[f"w_hh_{layer}"].T, H, H_pad)            # (H, 3*H_pad)
            if layer == 0 and has_input:
                w_ih_t = _pad_axis(w_ih_t, 0, E_pad)
            elif layer > 0:
                w_ih_t = _pad_axis(w_ih_t, 0, H_pad)
            w_hh_t = _pad_axis(w_hh_t, 0, H_pad)
            kp[f"w_ih_{layer}"] = w_ih_t.astype(mm_dtype)
            kp[f"w_hh_{layer}"] = w_hh_t.astype(mm_dtype)

            b_ih, b_hh = p[f"b_ih_{layer}"], p[f"b_hh_{layer}"]
            # fold the r/z halves of b_hh into the hoisted gi bias; only the n-gate
            # half of b_hh must stay separate (it is multiplied by r).
            gi_b = b_ih + jnp.concatenate(
                [b_hh[:H], b_hh[H:2 * H], jnp.zeros((H,), jnp.float32)])
            kp[f"gi_b_{layer}"] = _pad_gates_last(gi_b, H, H_pad).reshape(1, -1)
            kp[f"b_hn_{layer}"] = _pad_axis(b_hh[2 * H:], 0, H_pad).reshape(1, -1)

        if has_output:
            Out_pad = _round_up(output_size, LANE)
            kp["out_w1"] = _pad_axis(_pad_axis(p["out_w1"].T, 0, H_pad), 1, E_pad).astype(mm_dtype)
            kp["out_b1"] = _pad_axis(p["out_b1"], 0, E_pad).reshape(1, -1)
            kp["out_w2"] = _pad_axis(_pad_axis(p["out_w2"].T, 0, E_pad), 1, Out_pad).astype(mm_dtype)
            kp["out_b2"] = _pad_axis(p["out_b2"], 0, Out_pad).reshape(1, -1)

        return kp

    def __call__(self, x):
        """x: (B, T, input_size) batch-first, like the PyTorch module."""
        return self._forward(self.kparams, x)


# ----------------------------------------------------------------------------
# Pure-JAX reference (no Pallas) for correctness check
# ----------------------------------------------------------------------------
def reference_forward(model, x):
    p = model.params
    B, T, _ = x.shape
    H = model.hidden_size
    if model.has_input:
        x = jnp.maximum(x @ p["in_w"].T + p["in_b"], 0.0)
    h_seq = x
    for layer in range(model.num_layers):
        w_ih, w_hh = p[f"w_ih_{layer}"], p[f"w_hh_{layer}"]
        b_ih, b_hh = p[f"b_ih_{layer}"], p[f"b_hh_{layer}"]
        h = jnp.zeros((B, H), jnp.float32)
        outs = []
        for t in range(T):
            xt = h_seq[:, t, :]
            gi = xt @ w_ih.T + b_ih
            gh = h @ w_hh.T + b_hh
            r = jax.nn.sigmoid(gi[:, :H] + gh[:, :H])
            z = jax.nn.sigmoid(gi[:, H:2 * H] + gh[:, H:2 * H])
            n = jnp.tanh(gi[:, 2 * H:] + r * gh[:, 2 * H:])
            h = (1.0 - z) * n + z * h
            outs.append(h)
        h_seq = jnp.stack(outs, axis=1)
    out = h_seq
    if model.has_output:
        out = jnp.maximum(out @ p["out_w1"].T + p["out_b1"], 0.0) @ p["out_w2"].T + p["out_b2"]
    return out


# ----------------------------------------------------------------------------
if __name__ == "__main__":
    # Config A: 2 layers, input + output head, single batch tile.
    B, T = 2, 8
    input_size, embedding_size, hidden_size, num_layers, output_size = 8, 16, 32, 2, 8

    key = jax.random.PRNGKey(0)
    x = jax.random.normal(key, (B, T, input_size), jnp.float32)

    model = GRUPlainPallas(input_size, embedding_size, hidden_size, num_layers,
                           has_input=True, has_output=True,
                           output_size=output_size, seed=0)
    out = jax.block_until_ready(model(x))
    assert out.shape == (B, T, output_size)

    ref = jax.block_until_ready(reference_forward(model, x))
    np.testing.assert_allclose(np.asarray(out), np.asarray(ref), rtol=1e-2, atol=1e-2)

    # bf16 weights / matmul operands / input (f32 accumulation, gate math, hidden state)
    model_bf16 = GRUPlainPallas(input_size, embedding_size, hidden_size, num_layers,
                                has_input=True, has_output=True,
                                output_size=output_size, seed=0,
                                matmul_dtype=jnp.bfloat16)
    out_bf16 = jax.block_until_ready(model_bf16(x))
    assert out_bf16.shape == (B, T, output_size)
    assert bool(jnp.all(jnp.isfinite(out_bf16)))
    np.testing.assert_allclose(np.asarray(out_bf16), np.asarray(ref),
                               rtol=1e-1, atol=1e-1)

    # Config B: exercises the batch-tiled grid (B=10 -> 2 tiles of 8 rows),
    # the multi-chunk time loop with a remainder chunk (time_chunk=4 over T=10),
    # and the no-output-head path.
    B2, T2 = 10, 10
    x2 = jax.random.normal(jax.random.PRNGKey(1), (B2, T2, input_size), jnp.float32)
    model2 = GRUPlainPallas(input_size, embedding_size, hidden_size, 2,
                            has_input=True, has_output=False, output_size=None,
                            seed=1, time_chunk=4)
    out2 = jax.block_until_ready(model2(x2))
    assert out2.shape == (B2, T2, hidden_size)
    ref2 = jax.block_until_ready(reference_forward(model2, x2))
    np.testing.assert_allclose(np.asarray(out2), np.asarray(ref2), rtol=1e-2, atol=1e-2)

    print("KERNEL_OK")
</pallas_src>

<mosaic_0001>
module attributes {stable_mosaic.version = 11 : i64} {
  func.func @fused_gru_kernel(%arg0: i32, %arg1: memref<8x8x8xf32, #tpu.memory_space<vmem>>, %arg2: memref<8x128xf32, #tpu.memory_space<vmem>>, %arg3: memref<1x128xf32, #tpu.memory_space<vmem>>, %arg4: memref<128x384xf32, #tpu.memory_space<vmem>>, %arg5: memref<128x384xf32, #tpu.memory_space<vmem>>, %arg6: memref<1x384xf32, #tpu.memory_space<vmem>>, %arg7: memref<1x128xf32, #tpu.memory_space<vmem>>, %arg8: memref<128x384xf32, #tpu.memory_space<vmem>>, %arg9: memref<128x384xf32, #tpu.memory_space<vmem>>, %arg10: memref<1x384xf32, #tpu.memory_space<vmem>>, %arg11: memref<1x128xf32, #tpu.memory_space<vmem>>, %arg12: memref<128x128xf32, #tpu.memory_space<vmem>>, %arg13: memref<1x128xf32, #tpu.memory_space<vmem>>, %arg14: memref<128x128xf32, #tpu.memory_space<vmem>>, %arg15: memref<1x128xf32, #tpu.memory_space<vmem>>, %arg16: memref<8x8x128xf32, #tpu.memory_space<vmem>>, %arg17: memref<64x128xf32, #tpu.memory_space<vmem>>, %arg18: memref<64x384xf32, #tpu.memory_space<vmem>>) attributes {dimension_semantics = [#tpu.dimension_semantics<parallel>], iteration_bounds = array<i64: 1>, scalar_prefetch = 0 : i64, scratch_operands = 2 : i64, tpu.core_type = #tpu.core_type<tc>, window_params = [{transform_indices = @transform_0, window_bounds = array<i64: 8, 8, 8>}, {pipeline_mode = #tpu.pipeline_mode<synchronous>, transform_indices = @transform_1, window_bounds = array<i64: 8, 128>}, {pipeline_mode = #tpu.pipeline_mode<synchronous>, transform_indices = @transform_2, window_bounds = array<i64: 1, 128>}, {pipeline_mode = #tpu.pipeline_mode<synchronous>, transform_indices = @transform_3, window_bounds = array<i64: 128, 384>}, {pipeline_mode = #tpu.pipeline_mode<synchronous>, transform_indices = @transform_4, window_bounds = array<i64: 128, 384>}, {pipeline_mode = #tpu.pipeline_mode<synchronous>, transform_indices = @transform_5, window_bounds = array<i64: 1, 384>}, {pipeline_mode = #tpu.pipeline_mode<synchronous>, transform_indices = @transform_6, window_bounds = array<i64: 1, 128>}, {pipeline_mode = #tpu.pipeline_mode<synchronous>, transform_indices = @transform_7, window_bounds = array<i64: 128, 384>}, {pipeline_mode = #tpu.pipeline_mode<synchronous>, transform_indices = @transform_8, window_bounds = array<i64: 128, 384>}, {pipeline_mode = #tpu.pipeline_mode<synchronous>, transform_indices = @transform_9, window_bounds = array<i64: 1, 384>}, {pipeline_mode = #tpu.pipeline_mode<synchronous>, transform_indices = @transform_10, window_bounds = array<i64: 1, 128>}, {pipeline_mode = #tpu.pipeline_mode<synchronous>, transform_indices = @transform_11, window_bounds = array<i64: 128, 128>}, {pipeline_mode = #tpu.pipeline_mode<synchronous>, transform_indices = @transform_12, window_bounds = array<i64: 1, 128>}, {pipeline_mode = #tpu.pipeline_mode<synchronous>, transform_indices = @transform_13, window_bounds = array<i64: 128, 128>}, {pipeline_mode = #tpu.pipeline_mode<synchronous>, transform_indices = @transform_14, window_bounds = array<i64: 1, 128>}, {transform_indices = @transform_15, window_bounds = array<i64: 8, 8, 128>}]} {
    %c0 = arith.constant 0 : index
    %c0_0 = arith.constant 0 : index
    %0 = vector.load %arg2[%c0, %c0_0] : memref<8x128xf32, #tpu.memory_space<vmem>>, vector<8x128xf32>
    %c0_1 = arith.constant 0 : index
    %c0_2 = arith.constant 0 : index
    %1 = vector.load %arg3[%c0_1, %c0_2] : memref<1x128xf32, #tpu.memory_space<vmem>>, vector<1x128xf32>
    %c0_3 = arith.constant 0 : index
    %c0_4 = arith.constant 0 : index
    %2 = vector.load %arg4[%c0_3, %c0_4] : memref<128x384xf32, #tpu.memory_space<vmem>>, vector<128x384xf32>
    %c0_5 = arith.constant 0 : index
    %c0_6 = arith.constant 0 : index
    %3 = vector.load %arg5[%c0_5, %c0_6] : memref<128x384xf32, #tpu.memory_space<vmem>>, vector<128x384xf32>
    %c0_7 = arith.constant 0 : index
    %c0_8 = arith.constant 0 : index
    %4 = vector.load %arg6[%c0_7, %c0_8] : memref<1x384xf32, #tpu.memory_space<vmem>>, vector<1x384xf32>
    %c0_9 = arith.constant 0 : index
    %c0_10 = arith.constant 0 : index
    %5 = vector.load %arg7[%c0_9, %c0_10] : memref<1x128xf32, #tpu.memory_space<vmem>>, vector<1x128xf32>
    %6 = vector.shape_cast %5 : vector<1x128xf32> to vector<1x128xf32>
    %7 = vector.broadcast %6 : vector<1x128xf32> to vector<8x128xf32>
    %cst = arith.constant 0.000000e+00 : f32
    %8 = vector.broadcast %cst : f32 to vector<8x128xf32>
    %c0_11 = arith.constant 0 : index
    %c0_12 = arith.constant 0 : index
    %c0_13 = arith.constant 0 : index
    %9 = vector.load %arg1[%c0_11, %c0_12, %c0_13] : memref<8x8x8xf32, #tpu.memory_space<vmem>>, vector<8x8x8xf32>
    %10 = vector.shape_cast %9 : vector<8x8x8xf32> to vector<64x8xf32>
    %cst_14 = arith.constant dense<0.000000e+00> : vector<64x128xf32>
    %11 = tpu.matmul %10, %0, %cst_14 {dimension_numbers = #tpu.dot_dimension_numbers<[1], [0], [0], [1], [0, 0, 1, 1], [], []>} : vector<64x8xf32>, vector<8x128xf32>, vector<64x128xf32> -> vector<64x128xf32>
    %12 = vector.broadcast %1 : vector<1x128xf32> to vector<64x128xf32>
    %13 = arith.addf %11, %12 : vector<64x128xf32>
    %cst_15 = arith.constant 0.000000e+00 : f32
    %14 = vector.broadcast %cst_15 : f32 to vector<64x128xf32>
    %15 = arith.maximumf %13, %14 : vector<64x128xf32>
    %cst_16 = arith.constant dense<0.000000e+00> : vector<64x384xf32>
    %16 = tpu.matmul %15, %2, %cst_16 {dimension_numbers = #tpu.dot_dimension_numbers<[1], [0], [0], [1], [0, 0, 1, 1], [], []>} : vector<64x128xf32>, vector<128x384xf32>, vector<64x384xf32> -> vector<64x384xf32>
    %17 = vector.broadcast %4 : vector<1x384xf32> to vector<64x384xf32>
    %18 = arith.addf %16, %17 : vector<64x384xf32>
    %c0_17 = arith.constant 0 : index
    %c0_18 = arith.constant 0 : index
    %19 = vector.load %arg18[%c0_17, %c0_18] : memref<64x384xf32, #tpu.memory_space<vmem>>, vector<64x384xf32>
    tpu.vector_store %arg18[%c0_17, %c0_18], %18 {strides = array<i32>} : memref<64x384xf32, #tpu.memory_space<vmem>>, vector<64x384xf32>,
    %c0_i32 = arith.constant 0 : i32
    %c8_i32 = arith.constant 8 : i32
    %20 = arith.muli %c0_i32, %c8_i32 : i32
    %21 = tpu.assume_multiple %20, 8 : i32
    %22 = arith.index_cast %21 : i32 to index
    %c0_19 = arith.constant 0 : index
    %23 = vector.load %arg18[%22, %c0_19] : memref<64x384xf32, #tpu.memory_space<vmem>>, vector<8x384xf32>
    %cst_20 = arith.constant dense<0.000000e+00> : vector<8x384xf32>
    %24 = tpu.matmul %8, %3, %cst_20 {dimension_numbers = #tpu.dot_dimension_numbers<[1], [0], [0], [1], [0, 0, 1, 1], [], []>} : vector<8x128xf32>, vector<128x384xf32>, vector<8x384xf32> -> vector<8x384xf32>
    %25 = vector.extract_strided_slice %23 {offsets = [0, 0], sizes = [8, 256], strides = [1, 1]} : vector<8x384xf32> to vector<8x256xf32>
    %26 = vector.extract_strided_slice %24 {offsets = [0, 0], sizes = [8, 256], strides = [1, 1]} : vector<8x384xf32> to vector<8x256xf32>
    %27 = arith.addf %25, %26 : vector<8x256xf32>
    %28 = arith.negf %27 : vector<8x256xf32>
    %29 = math.exp %28 : vector<8x256xf32>
    %cst_21 = arith.constant 1.000000e+00 : f32
    %30 = vector.broadcast %cst_21 : f32 to vector<8x256xf32>
    %31 = arith.addf %30, %29 : vector<8x256xf32>
    %32 = arith.divf %30, %31 : vector<8x256xf32>
    %33 = vector.extract_strided_slice %32 {offsets = [0, 0], sizes = [8, 128], strides = [1, 1]} : vector<8x256xf32> to vector<8x128xf32>
    %34 = vector.extract_strided_slice %32 {offsets = [0, 128], sizes = [8, 128], strides = [1, 1]} : vector<8x256xf32> to vector<8x128xf32>
    %35 = vector.extract_strided_slice %23 {offsets = [0, 256], sizes = [8, 128], strides = [1, 1]} : vector<8x384xf32> to vector<8x128xf32>
    %36 = vector.extract_strided_slice %24 {offsets = [0, 256], sizes = [8, 128], strides = [1, 1]} : vector<8x384xf32> to vector<8x128xf32>
    %37 = arith.addf %36, %7 : vector<8x128xf32>
    %38 = arith.mulf %33, %37 : vector<8x128xf32>
    %39 = arith.addf %35, %38 : vector<8x128xf32>
    %40 = math.tanh %39 : vector<8x128xf32>
    %41 = arith.subf %8, %40 : vector<8x128xf32>
    %42 = arith.mulf %34, %41 : vector<8x128xf32>
    %43 = arith.addf %40, %42 : vector<8x128xf32>
    %c8_i32_22 = arith.constant 8 : i32
    %44 = arith.muli %c0_i32, %c8_i32_22 : i32
    %c0_i32_23 = arith.constant 0 : i32
    %45 = arith.addi %c0_i32_23, %44 : i32
    %46 = tpu.assume_multiple %45, 8 : i32
    %47 = arith.index_cast %46 : i32 to index
    %c0_24 = arith.constant 0 : index
    %48 = vector.load %arg17[%47, %c0_24] : memref<64x128xf32, #tpu.memory_space<vmem>>, vector<8x128xf32>
    tpu.vector_store %arg17[%47, %c0_24], %43 {strides = array<i32>} : memref<64x128xf32, #tpu.memory_space<vmem>>, vector<8x128xf32>,
    %c1_i32 = arith.constant 1 : i32
    %c8_i32_25 = arith.constant 8 : i32
    %49 = arith.muli %c1_i32, %c8_i32_25 : i32
    %50 = tpu.assume_multiple %49, 8 : i32
    %51 = arith.index_cast %50 : i32 to index
    %c0_26 = arith.constant 0 : index
    %52 = vector.load %arg18[%51, %c0_26] : memref<64x384xf32, #tpu.memory_space<vmem>>, vector<8x384xf32>
    %cst_27 = arith.constant dense<0.000000e+00> : vector<8x384xf32>
    %53 = tpu.matmul %43, %3, %cst_27 {dimension_numbers = #tpu.dot_dimension_numbers<[1], [0], [0], [1], [0, 0, 1, 1], [], []>} : vector<8x128xf32>, vector<128x384xf32>, vector<8x384xf32> -> vector<8x384xf32>
    %54 = vector.extract_strided_slice %52 {offsets = [0, 0], sizes = [8, 256], strides = [1, 1]} : vector<8x384xf32> to vector<8x256xf32>
    %55 = vector.extract_strided_slice %53 {offsets = [0, 0], sizes = [8, 256], strides = [1, 1]} : vector<8x384xf32> to vector<8x256xf32>
    %56 = arith.addf %54, %55 : vector<8x256xf32>
    %57 = arith.negf %56 : vector<8x256xf32>
    %58 = math.exp %57 : vector<8x256xf32>
    %cst_28 = arith.constant 1.000000e+00 : f32
    %59 = vector.broadcast %cst_28 : f32 to vector<8x256xf32>
    %60 = arith.addf %59, %58 : vector<8x256xf32>
    %61 = arith.divf %59, %60 : vector<8x256xf32>
    %62 = vector.extract_strided_slice %61 {offsets = [0, 0], sizes = [8, 128], strides = [1, 1]} : vector<8x256xf32> to vector<8x128xf32>
    %63 = vector.extract_strided_slice %61 {offsets = [0, 128], sizes = [8, 128], strides = [1, 1]} : vector<8x256xf32> to vector<8x128xf32>
    %64 = vector.extract_strided_slice %52 {offsets = [0, 256], sizes = [8, 128], strides = [1, 1]} : vector<8x384xf32> to vector<8x128xf32>
    %65 = vector.extract_strided_slice %53 {offsets = [0, 256], sizes = [8, 128], strides = [1, 1]} : vector<8x384xf32> to vector<8x128xf32>
    %66 = arith.addf %65, %7 : vector<8x128xf32>
    %67 = arith.mulf %62, %66 : vector<8x128xf32>
    %68 = arith.addf %64, %67 : vector<8x128xf32>
    %69 = math.tanh %68 : vector<8x128xf32>
    %70 = arith.subf %43, %69 : vector<8x128xf32>
    %71 = arith.mulf %63, %70 : vector<8x128xf32>
    %72 = arith.addf %69, %71 : vector<8x128xf32>
    %c8_i32_29 = arith.constant 8 : i32
    %73 = arith.muli %c1_i32, %c8_i32_29 : i32
    %c0_i32_30 = arith.constant 0 : i32
    %74 = arith.addi %c0_i32_30, %73 : i32
    %75 = tpu.assume_multiple %74, 8 : i32
    %76 = arith.index_cast %75 : i32 to index
    %c0_31 = arith.constant 0 : index
    %77 = vector.load %arg17[%76, %c0_31] : memref<64x128xf32, #tpu.memory_space<vmem>>, vector<8x128xf32>
    tpu.vector_store %arg17[%76, %c0_31], %72 {strides = array<i32>} : memref<64x128xf32, #tpu.memory_space<vmem>>, vector<8x128xf32>,
    %c2_i32 = arith.constant 2 : i32
    %c8_i32_32 = arith.constant 8 : i32
    %78 = arith.muli %c2_i32, %c8_i32_32 : i32
    %79 = tpu.assume_multiple %78, 8 : i32
    %80 = arith.index_cast %79 : i32 to index
    %c0_33 = arith.constant 0 : index
    %81 = vector.load %arg18[%80, %c0_33] : memref<64x384xf32, #tpu.memory_space<vmem>>, vector<8x384xf32>
    %cst_34 = arith.constant dense<0.000000e+00> : vector<8x384xf32>
    %82 = tpu.matmul %72, %3, %cst_34 {dimension_numbers = #tpu.dot_dimension_numbers<[1], [0], [0], [1], [0, 0, 1, 1], [], []>} : vector<8x128xf32>, vector<128x384xf32>, vector<8x384xf32> -> vector<8x384xf32>
    %83 = vector.extract_strided_slice %81 {offsets = [0, 0], sizes = [8, 256], strides = [1, 1]} : vector<8x384xf32> to vector<8x256xf32>
    %84 = vector.extract_strided_slice %82 {offsets = [0, 0], sizes = [8, 256], strides = [1, 1]} : vector<8x384xf32> to vector<8x256xf32>
    %85 = arith.addf %83, %84 : vector<8x256xf32>
    %86 = arith.negf %85 : vector<8x256xf32>
    %87 = math.exp %86 : vector<8x256xf32>
    %cst_35 = arith.constant 1.000000e+00 : f32
    %88 = vector.broadcast %cst_35 : f32 to vector<8x256xf32>
    %89 = arith.addf %88, %87 : vector<8x256xf32>
    %90 = arith.divf %88, %89 : vector<8x256xf32>
    %91 = vector.extract_strided_slice %90 {offsets = [0, 0], sizes = [8, 128], strides = [1, 1]} : vector<8x256xf32> to vector<8x128xf32>
    %92 = vector.extract_strided_slice %90 {offsets = [0, 128], sizes = [8, 128], strides = [1, 1]} : vector<8x256xf32> to vector<8x128xf32>
    %93 = vector.extract_strided_slice %81 {offsets = [0, 256], sizes = [8, 128], strides = [1, 1]} : vector<8x384xf32> to vector<8x128xf32>
    %94 = vector.extract_strided_slice %82 {offsets = [0, 256], sizes = [8, 128], strides = [1, 1]} : vector<8x384xf32> to vector<8x128xf32>
    %95 = arith.addf %94, %7 : vector<8x128xf32>
    %96 = arith.mulf %91, %95 : vector<8x128xf32>
    %97 = arith.addf %93, %96 : vector<8x128xf32>
    %98 = math.tanh %97 : vector<8x128xf32>
    %99 = arith.subf %72, %98 : vector<8x128xf32>
    %100 = arith.mulf %92, %99 : vector<8x128xf32>
    %101 = arith.addf %98, %100 : vector<8x128xf32>
    %c8_i32_36 = arith.constant 8 : i32
    %102 = arith.muli %c2_i32, %c8_i32_36 : i32
    %c0_i32_37 = arith.constant 0 : i32
    %103 = arith.addi %c0_i32_37, %102 : i32
    %104 = tpu.assume_multiple %103, 8 : i32
    %105 = arith.index_cast %104 : i32 to index
    %c0_38 = arith.constant 0 : index
    %106 = vector.load %arg17[%105, %c0_38] : memref<64x128xf32, #tpu.memory_space<vmem>>, vector<8x128xf32>
    tpu.vector_store %arg17[%105, %c0_38], %101 {strides = array<i32>} : memref<64x128xf32, #tpu.memory_space<vmem>>, vector<8x128xf32>,
    %c3_i32 = arith.constant 3 : i32
    %c8_i32_39 = arith.constant 8 : i32
    %107 = arith.muli %c3_i32, %c8_i32_39 : i32
    %108 = tpu.assume_multiple %107, 8 : i32
    %109 = arith.index_cast %108 : i32 to index
    %c0_40 = arith.constant 0 : index
    %110 = vector.load %arg18[%109, %c0_40] : memref<64x384xf32, #tpu.memory_space<vmem>>, vector<8x384xf32>
    %cst_41 = arith.constant dense<0.000000e+00> : vector<8x384xf32>
    %111 = tpu.matmul %101, %3, %cst_41 {dimension_numbers = #tpu.dot_dimension_numbers<[1], [0], [0], [1], [0, 0, 1, 1], [], []>} : vector<8x128xf32>, vector<128x384xf32>, vector<8x384xf32> -> vector<8x384xf32>
    %112 = vector.extract_strided_slice %110 {offsets = [0, 0], sizes = [8, 256], strides = [1, 1]} : vector<8x384xf32> to vector<8x256xf32>
    %113 = vector.extract_strided_slice %111 {offsets = [0, 0], sizes = [8, 256], strides = [1, 1]} : vector<8x384xf32> to vector<8x256xf32>
    %114 = arith.addf %112, %113 : vector<8x256xf32>
    %115 = arith.negf %114 : vector<8x256xf32>
    %116 = math.exp %115 : vector<8x256xf32>
    %cst_42 = arith.constant 1.000000e+00 : f32
    %117 = vector.broadcast %cst_42 : f32 to vector<8x256xf32>
    %118 = arith.addf %117, %116 : vector<8x256xf32>
    %119 = arith.divf %117, %118 : vector<8x256xf32>
    %120 = vector.extract_strided_slice %119 {offsets = [0, 0], sizes = [8, 128], strides = [1, 1]} : vector<8x256xf32> to vector<8x128xf32>
    %121 = vector.extract_strided_slice %119 {offsets = [0, 128], sizes = [8, 128], strides = [1, 1]} : vector<8x256xf32> to vector<8x128xf32>
    %122 = vector.extract_strided_slice %110 {offsets = [0, 256], sizes = [8, 128], strides = [1, 1]} : vector<8x384xf32> to vector<8x128xf32>
    %123 = vector.extract_strided_slice %111 {offsets = [0, 256], sizes = [8, 128], strides = [1, 1]} : vector<8x384xf32> to vector<8x128xf32>
    %124 = arith.addf %123, %7 : vector<8x128xf32>
    %125 = arith.mulf %120, %124 : vector<8x128xf32>
    %126 = arith.addf %122, %125 : vector<8x128xf32>
    %127 = math.tanh %126 : vector<8x128xf32>
    %128 = arith.subf %101, %127 : vector<8x128xf32>
    %129 = arith.mulf %121, %128 : vector<8x128xf32>
    %130 = arith.addf %127, %129 : vector<8x128xf32>
    %c8_i32_43 = arith.constant 8 : i32
    %131 = arith.muli %c3_i32, %c8_i32_43 : i32
    %c0_i32_44 = arith.constant 0 : i32
    %132 = arith.addi %c0_i32_44, %131 : i32
    %133 = tpu.assume_multiple %132, 8 : i32
    %134 = arith.index_cast %133 : i32 to index
    %c0_45 = arith.constant 0 : index
    %135 = vector.load %arg17[%134, %c0_45] : memref<64x128xf32, #tpu.memory_space<vmem>>, vector<8x128xf32>
    tpu.vector_store %arg17[%134, %c0_45], %130 {strides = array<i32>} : memref<64x128xf32, #tpu.memory_space<vmem>>, vector<8x128xf32>,
    %c4_i32 = arith.constant 4 : i32
    %c8_i32_46 = arith.constant 8 : i32
    %136 = arith.muli %c4_i32, %c8_i32_46 : i32
    %137 = tpu.assume_multiple %136, 8 : i32
    %138 = arith.index_cast %137 : i32 to index
    %c0_47 = arith.constant 0 : index
    %139 = vector.load %arg18[%138, %c0_47] : memref<64x384xf32, #tpu.memory_space<vmem>>, vector<8x384xf32>
    %cst_48 = arith.constant dense<0.000000e+00> : vector<8x384xf32>
    %140 = tpu.matmul %130, %3, %cst_48 {dimension_numbers = #tpu.dot_dimension_numbers<[1], [0], [0], [1], [0, 0, 1, 1], [], []>} : vector<8x128xf32>, vector<128x384xf32>, vector<8x384xf32> -> vector<8x384xf32>
    %141 = vector.extract_strided_slice %139 {offsets = [0, 0], sizes = [8, 256], strides = [1, 1]} : vector<8x384xf32> to vector<8x256xf32>
    %142 = vector.extract_strided_slice %140 {offsets = [0, 0], sizes = [8, 256], strides = [1, 1]} : vector<8x384xf32> to vector<8x256xf32>
    %143 = arith.addf %141, %142 : vector<8x256xf32>
    %144 = arith.negf %143 : vector<8x256xf32>
    %145 = math.exp %144 : vector<8x256xf32>
    %cst_49 = arith.constant 1.000000e+00 : f32
    %146 = vector.broadcast %cst_49 : f32 to vector<8x256xf32>
    %147 = arith.addf %146, %145 : vector<8x256xf32>
    %148 = arith.divf %146, %147 : vector<8x256xf32>
    %149 = vector.extract_strided_slice %148 {offsets = [0, 0], sizes = [8, 128], strides = [1, 1]} : vector<8x256xf32> to vector<8x128xf32>
    %150 = vector.extract_strided_slice %148 {offsets = [0, 128], sizes = [8, 128], strides = [1, 1]} : vector<8x256xf32> to vector<8x128xf32>
    %151 = vector.extract_strided_slice %139 {offsets = [0, 256], sizes = [8, 128], strides = [1, 1]} : vector<8x384xf32> to vector<8x128xf32>
    %152 = vector.extract_strided_slice %140 {offsets = [0, 256], sizes = [8, 128], strides = [1, 1]} : vector<8x384xf32> to vector<8x128xf32>
    %153 = arith.addf %152, %7 : vector<8x128xf32>
    %154 = arith.mulf %149, %153 : vector<8x128xf32>
    %155 = arith.addf %151, %154 : vector<8x128xf32>
    %156 = math.tanh %155 : vector<8x128xf32>
    %157 = arith.subf %130, %156 : vector<8x128xf32>
    %158 = arith.mulf %150, %157 : vector<8x128xf32>
    %159 = arith.addf %156, %158 : vector<8x128xf32>
    %c8_i32_50 = arith.constant 8 : i32
    %160 = arith.muli %c4_i32, %c8_i32_50 : i32
    %c0_i32_51 = arith.constant 0 : i32
    %161 = arith.addi %c0_i32_51, %160 : i32
    %162 = tpu.assume_multiple %161, 8 : i32
    %163 = arith.index_cast %162 : i32 to index
    %c0_52 = arith.constant 0 : index
    %164 = vector.load %arg17[%163, %c0_52] : memref<64x128xf32, #tpu.memory_space<vmem>>, vector<8x128xf32>
    tpu.vector_store %arg17[%163, %c0_52], %159 {strides = array<i32>} : memref<64x128xf32, #tpu.memory_space<vmem>>, vector<8x128xf32>,
    %c5_i32 = arith.constant 5 : i32
    %c8_i32_53 = arith.constant 8 : i32
    %165 = arith.muli %c5_i32, %c8_i32_53 : i32
    %166 = tpu.assume_multiple %165, 8 : i32
    %167 = arith.index_cast %166 : i32 to index
    %c0_54 = arith.constant 0 : index
    %168 = vector.load %arg18[%167, %c0_54] : memref<64x384xf32, #tpu.memory_space<vmem>>, vector<8x384xf32>
    %cst_55 = arith.constant dense<0.000000e+00> : vector<8x384xf32>
    %169 = tpu.matmul %159, %3, %cst_55 {dimension_numbers = #tpu.dot_dimension_numbers<[1], [0], [0], [1], [0, 0, 1, 1], [], []>} : vector<8x128xf32>, vector<128x384xf32>, vector<8x384xf32> -> vector<8x384xf32>
    %170 = vector.extract_strided_slice %168 {offsets = [0, 0], sizes = [8, 256], strides = [1, 1]} : vector<8x384xf32> to vector<8x256xf32>
    %171 = vector.extract_strided_slice %169 {offsets = [0, 0], sizes = [8, 256], strides = [1, 1]} : vector<8x384xf32> to vector<8x256xf32>
    %172 = arith.addf %170, %171 : vector<8x256xf32>
    %173 = arith.negf %172 : vector<8x256xf32>
    %174 = math.exp %173 : vector<8x256xf32>
    %cst_56 = arith.constant 1.000000e+00 : f32
    %175 = vector.broadcast %cst_56 : f32 to vector<8x256xf32>
    %176 = arith.addf %175, %174 : vector<8x256xf32>
    %177 = arith.divf %175, %176 : vector<8x256xf32>
    %178 = vector.extract_strided_slice %177 {offsets = [0, 0], sizes = [8, 128], strides = [1, 1]} : vector<8x256xf32> to vector<8x128xf32>
    %179 = vector.extract_strided_slice %177 {offsets = [0, 128], sizes = [8, 128], strides = [1, 1]} : vector<8x256xf32> to vector<8x128xf32>
    %180 = vector.extract_strided_slice %168 {offsets = [0, 256], sizes = [8, 128], strides = [1, 1]} : vector<8x384xf32> to vector<8x128xf32>
    %181 = vector.extract_strided_slice %169 {offsets = [0, 256], sizes = [8, 128], strides = [1, 1]} : vector<8x384xf32> to vector<8x128xf32>
    %182 = arith.addf %181, %7 : vector<8x128xf32>
    %183 = arith.mulf %178, %182 : vector<8x128xf32>
    %184 = arith.addf %180, %183 : vector<8x128xf32>
    %185 = math.tanh %184 : vector<8x128xf32>
    %186 = arith.subf %159, %185 : vector<8x128xf32>
    %187 = arith.mulf %179, %186 : vector<8x128xf32>
    %188 = arith.addf %185, %187 : vector<8x128xf32>
    %c8_i32_57 = arith.constant 8 : i32
    %189 = arith.muli %c5_i32, %c8_i32_57 : i32
    %c0_i32_58 = arith.constant 0 : i32
    %190 = arith.addi %c0_i32_58, %189 : i32
    %191 = tpu.assume_multiple %190, 8 : i32
    %192 = arith.index_cast %191 : i32 to index
    %c0_59 = arith.constant 0 : index
    %193 = vector.load %arg17[%192, %c0_59] : memref<64x128xf32, #tpu.memory_space<vmem>>, vector<8x128xf32>
    tpu.vector_store %arg17[%192, %c0_59], %188 {strides = array<i32>} : memref<64x128xf32, #tpu.memory_space<vmem>>, vector<8x128xf32>,
    %c6_i32 = arith.constant 6 : i32
    %c8_i32_60 = arith.constant 8 : i32
    %194 = arith.muli %c6_i32, %c8_i32_60 : i32
    %195 = tpu.assume_multiple %194, 8 : i32
    %196 = arith.index_cast %195 : i32 to index
    %c0_61 = arith.constant 0 : index
    %197 = vector.load %arg18[%196, %c0_61] : memref<64x384xf32, #tpu.memory_space<vmem>>, vector<8x384xf32>
    %cst_62 = arith.constant dense<0.000000e+00> : vector<8x384xf32>
    %198 = tpu.matmul %188, %3, %cst_62 {dimension_numbers = #tpu.dot_dimension_numbers<[1], [0], [0], [1], [0, 0, 1, 1], [], []>} : vector<8x128xf32>, vector<128x384xf32>, vector<8x384xf32> -> vector<8x384xf32>
    %199 = vector.extract_strided_slice %197 {offsets = [0, 0], sizes = [8, 256], strides = [1, 1]} : vector<8x384xf32> to vector<8x256xf32>
    %200 = vector.extract_strided_slice %198 {offsets = [0, 0], sizes = [8, 256], strides = [1, 1]} : vector<8x384xf32> to vector<8x256xf32>
    %201 = arith.addf %199, %200 : vector<8x256xf32>
    %202 = arith.negf %201 : vector<8x256xf32>
    %203 = math.exp %202 : vector<8x256xf32>
    %cst_63 = arith.constant 1.000000e+00 : f32
    %204 = vector.broadcast %cst_63 : f32 to vector<8x256xf32>
    %205 = arith.addf %204, %203 : vector<8x256xf32>
    %206 = arith.divf %204, %205 : vector<8x256xf32>
    %207 = vector.extract_strided_slice %206 {offsets = [0, 0], sizes = [8, 128], strides = [1, 1]} : vector<8x256xf32> to vector<8x128xf32>
    %208 = vector.extract_strided_slice %206 {offsets = [0, 128], sizes = [8, 128], strides = [1, 1]} : vector<8x256xf32> to vector<8x128xf32>
    %209 = vector.extract_strided_slice %197 {offsets = [0, 256], sizes = [8, 128], strides = [1, 1]} : vector<8x384xf32> to vector<8x128xf32>
    %210 = vector.extract_strided_slice %198 {offsets = [0, 256], sizes = [8, 128], strides = [1, 1]} : vector<8x384xf32> to vector<8x128xf32>
    %211 = arith.addf %210, %7 : vector<8x128xf32>
    %212 = arith.mulf %207, %211 : vector<8x128xf32>
    %213 = arith.addf %209, %212 : vector<8x128xf32>
    %214 = math.tanh %213 : vector<8x128xf32>
    %215 = arith.subf %188, %214 : vector<8x128xf32>
    %216 = arith.mulf %208, %215 : vector<8x128xf32>
    %217 = arith.addf %214, %216 : vector<8x128xf32>
    %c8_i32_64 = arith.constant 8 : i32
    %218 = arith.muli %c6_i32, %c8_i32_64 : i32
    %c0_i32_65 = arith.constant 0 : i32
    %219 = arith.addi %c0_i32_65, %218 : i32
    %220 = tpu.assume_multiple %219, 8 : i32
    %221 = arith.index_cast %220 : i32 to index
    %c0_66 = arith.constant 0 : index
    %222 = vector.load %arg17[%221, %c0_66] : memref<64x128xf32, #tpu.memory_space<vmem>>, vector<8x128xf32>
    tpu.vector_store %arg17[%221, %c0_66], %217 {strides = array<i32>} : memref<64x128xf32, #tpu.memory_space<vmem>>, vector<8x128xf32>,
    %c7_i32 = arith.constant 7 : i32
    %c8_i32_67 = arith.constant 8 : i32
    %223 = arith.muli %c7_i32, %c8_i32_67 : i32
    %224 = tpu.assume_multiple %223, 8 : i32
    %225 = arith.index_cast %224 : i32 to index
    %c0_68 = arith.constant 0 : index
    %226 = vector.load %arg18[%225, %c0_68] : memref<64x384xf32, #tpu.memory_space<vmem>>, vector<8x384xf32>
    %cst_69 = arith.constant dense<0.000000e+00> : vector<8x384xf32>
    %227 = tpu.matmul %217, %3, %cst_69 {dimension_numbers = #tpu.dot_dimension_numbers<[1], [0], [0], [1], [0, 0, 1, 1], [], []>} : vector<8x128xf32>, vector<128x384xf32>, vector<8x384xf32> -> vector<8x384xf32>
    %228 = vector.extract_strided_slice %226 {offsets = [0, 0], sizes = [8, 256], strides = [1, 1]} : vector<8x384xf32> to vector<8x256xf32>
    %229 = vector.extract_strided_slice %227 {offsets = [0, 0], sizes = [8, 256], strides = [1, 1]} : vector<8x384xf32> to vector<8x256xf32>
    %230 = arith.addf %228, %229 : vector<8x256xf32>
    %231 = arith.negf %230 : vector<8x256xf32>
    %232 = math.exp %231 : vector<8x256xf32>
    %cst_70 = arith.constant 1.000000e+00 : f32
    %233 = vector.broadcast %cst_70 : f32 to vector<8x256xf32>
    %234 = arith.addf %233, %232 : vector<8x256xf32>
    %235 = arith.divf %233, %234 : vector<8x256xf32>
    %236 = vector.extract_strided_slice %235 {offsets = [0, 0], sizes = [8, 128], strides = [1, 1]} : vector<8x256xf32> to vector<8x128xf32>
    %237 = vector.extract_strided_slice %235 {offsets = [0, 128], sizes = [8, 128], strides = [1, 1]} : vector<8x256xf32> to vector<8x128xf32>
    %238 = vector.extract_strided_slice %226 {offsets = [0, 256], sizes = [8, 128], strides = [1, 1]} : vector<8x384xf32> to vector<8x128xf32>
    %239 = vector.extract_strided_slice %227 {offsets = [0, 256], sizes = [8, 128], strides = [1, 1]} : vector<8x384xf32> to vector<8x128xf32>
    %240 = arith.addf %239, %7 : vector<8x128xf32>
    %241 = arith.mulf %236, %240 : vector<8x128xf32>
    %242 = arith.addf %238, %241 : vector<8x128xf32>
    %243 = math.tanh %242 : vector<8x128xf32>
    %244 = arith.subf %217, %243 : vector<8x128xf32>
    %245 = arith.mulf %237, %244 : vector<8x128xf32>
    %246 = arith.addf %243, %245 : vector<8x128xf32>
    %c8_i32_71 = arith.constant 8 : i32
    %247 = arith.muli %c7_i32, %c8_i32_71 : i32
    %c0_i32_72 = arith.constant 0 : i32
    %248 = arith.addi %c0_i32_72, %247 : i32
    %249 = tpu.assume_multiple %248, 8 : i32
    %250 = arith.index_cast %249 : i32 to index
    %c0_73 = arith.constant 0 : index
    %251 = vector.load %arg17[%250, %c0_73] : memref<64x128xf32, #tpu.memory_space<vmem>>, vector<8x128xf32>
    tpu.vector_store %arg17[%250, %c0_73], %246 {strides = array<i32>} : memref<64x128xf32, #tpu.memory_space<vmem>>, vector<8x128xf32>,
    %c8_i32_74 = arith.constant 8 : i32
    %c0_75 = arith.constant 0 : index
    %c0_76 = arith.constant 0 : index
    %252 = vector.load %arg8[%c0_75, %c0_76] : memref<128x384xf32, #tpu.memory_space<vmem>>, vector<128x384xf32>
    %c0_77 = arith.constant 0 : index
    %c0_78 = arith.constant 0 : index
    %253 = vector.load %arg9[%c0_77, %c0_78] : memref<128x384xf32, #tpu.memory_space<vmem>>, vector<128x384xf32>
    %c0_79 = arith.constant 0 : index
    %c0_80 = arith.constant 0 : index
    %254 = vector.load %arg10[%c0_79, %c0_80] : memref<1x384xf32, #tpu.memory_space<vmem>>, vector<1x384xf32>
    %c0_81 = arith.constant 0 : index
    %c0_82 = arith.constant 0 : index
    %255 = vector.load %arg11[%c0_81, %c0_82] : memref<1x128xf32, #tpu.memory_space<vmem>>, vector<1x128xf32>
    %256 = vector.shape_cast %255 : vector<1x128xf32> to vector<1x128xf32>
    %257 = vector.broadcast %256 : vector<1x128xf32> to vector<8x128xf32>
    %cst_83 = arith.constant 0.000000e+00 : f32
    %258 = vector.broadcast %cst_83 : f32 to vector<8x128xf32>
    %c0_84 = arith.constant 0 : index
    %c0_85 = arith.constant 0 : index
    %259 = vector.load %arg17[%c0_84, %c0_85] : memref<64x128xf32, #tpu.memory_space<vmem>>, vector<64x128xf32>
    %cst_86 = arith.constant dense<0.000000e+00> : vector<64x384xf32>
    %260 = tpu.matmul %259, %252, %cst_86 {dimension_numbers = #tpu.dot_dimension_numbers<[1], [0], [0], [1], [0, 0, 1, 1], [], []>} : vector<64x128xf32>, vector<128x384xf32>, vector<64x384xf32> -> vector<64x384xf32>
    %261 = vector.broadcast %254 : vector<1x384xf32> to vector<64x384xf32>
    %262 = arith.addf %260, %261 : vector<64x384xf32>
    %c0_87 = arith.constant 0 : index
    %c0_88 = arith.constant 0 : index
    %263 = vector.load %arg18[%c0_87, %c0_88] : memref<64x384xf32, #tpu.memory_space<vmem>>, vector<64x384xf32>
    tpu.vector_store %arg18[%c0_87, %c0_88], %262 {strides = array<i32>} : memref<64x384xf32, #tpu.memory_space<vmem>>, vector<64x384xf32>,
    %c0_i32_89 = arith.constant 0 : i32
    %c8_i32_90 = arith.constant 8 : i32
    %264 = arith.muli %c0_i32_89, %c8_i32_90 : i32
    %265 = tpu.assume_multiple %264, 8 : i32
    %266 = arith.index_cast %265 : i32 to index
    %c0_91 = arith.constant 0 : index
    %267 = vector.load %arg18[%266, %c0_91] : memref<64x384xf32, #tpu.memory_space<vmem>>, vector<8x384xf32>
    %cst_92 = arith.constant dense<0.000000e+00> : vector<8x384xf32>
    %268 = tpu.matmul %258, %253, %cst_92 {dimension_numbers = #tpu.dot_dimension_numbers<[1], [0], [0], [1], [0, 0, 1, 1], [], []>} : vector<8x128xf32>, vector<128x384xf32>, vector<8x384xf32> -> vector<8x384xf32>
    %269 = vector.extract_strided_slice %267 {offsets = [0, 0], sizes = [8, 256], strides = [1, 1]} : vector<8x384xf32> to vector<8x256xf32>
    %270 = vector.extract_strided_slice %268 {offsets = [0, 0], sizes = [8, 256], strides = [1, 1]} : vector<8x384xf32> to vector<8x256xf32>
    %271 = arith.addf %269, %270 : vector<8x256xf32>
    %272 = arith.negf %271 : vector<8x256xf32>
    %273 = math.exp %272 : vector<8x256xf32>
    %cst_93 = arith.constant 1.000000e+00 : f32
    %274 = vector.broadcast %cst_93 : f32 to vector<8x256xf32>
    %275 = arith.addf %274, %273 : vector<8x256xf32>
    %276 = arith.divf %274, %275 : vector<8x256xf32>
    %277 = vector.extract_strided_slice %276 {offsets = [0, 0], sizes = [8, 128], strides = [1, 1]} : vector<8x256xf32> to vector<8x128xf32>
    %278 = vector.extract_strided_slice %276 {offsets = [0, 128], sizes = [8, 128], strides = [1, 1]} : vector<8x256xf32> to vector<8x128xf32>
    %279 = vector.extract_strided_slice %267 {offsets = [0, 256], sizes = [8, 128], strides = [1, 1]} : vector<8x384xf32> to vector<8x128xf32>
    %280 = vector.extract_strided_slice %268 {offsets = [0, 256], sizes = [8, 128], strides = [1, 1]} : vector<8x384xf32> to vector<8x128xf32>
    %281 = arith.addf %280, %257 : vector<8x128xf32>
    %282 = arith.mulf %277, %281 : vector<8x128xf32>
    %283 = arith.addf %279, %282 : vector<8x128xf32>
    %284 = math.tanh %283 : vector<8x128xf32>
    %285 = arith.subf %258, %284 : vector<8x128xf32>
    %286 = arith.mulf %278, %285 : vector<8x128xf32>
    %287 = arith.addf %284, %286 : vector<8x128xf32>
    %c8_i32_94 = arith.constant 8 : i32
    %288 = arith.muli %c0_i32_89, %c8_i32_94 : i32
    %c0_i32_95 = arith.constant 0 : i32
    %289 = arith.addi %c0_i32_95, %288 : i32
    %290 = tpu.assume_multiple %289, 8 : i32
    %291 = arith.index_cast %290 : i32 to index
    %c0_96 = arith.constant 0 : index
    %292 = vector.load %arg17[%291, %c0_96] : memref<64x128xf32, #tpu.memory_space<vmem>>, vector<8x128xf32>
    tpu.vector_store %arg17[%291, %c0_96], %287 {strides = array<i32>} : memref<64x128xf32, #tpu.memory_space<vmem>>, vector<8x128xf32>,
    %c1_i32_97 = arith.constant 1 : i32
    %c8_i32_98 = arith.constant 8 : i32
    %293 = arith.muli %c1_i32_97, %c8_i32_98 : i32
    %294 = tpu.assume_multiple %293, 8 : i32
    %295 = arith.index_cast %294 : i32 to index
    %c0_99 = arith.constant 0 : index
    %296 = vector.load %arg18[%295, %c0_99] : memref<64x384xf32, #tpu.memory_space<vmem>>, vector<8x384xf32>
    %cst_100 = arith.constant dense<0.000000e+00> : vector<8x384xf32>
    %297 = tpu.matmul %287, %253, %cst_100 {dimension_numbers = #tpu.dot_dimension_numbers<[1], [0], [0], [1], [0, 0, 1, 1], [], []>} : vector<8x128xf32>, vector<128x384xf32>, vector<8x384xf32> -> vector<8x384xf32>
    %298 = vector.extract_strided_slice %296 {offsets = [0, 0], sizes = [8, 256], strides = [1, 1]} : vector<8x384xf32> to vector<8x256xf32>
    %299 = vector.extract_strided_slice %297 {offsets = [0, 0], sizes = [8, 256], strides = [1, 1]} : vector<8x384xf32> to vector<8x256xf32>
    %300 = arith.addf %298, %299 : vector<8x256xf32>
    %301 = arith.negf %300 : vector<8x256xf32>
    %302 = math.exp %301 : vector<8x256xf32>
    %cst_101 = arith.constant 1.000000e+00 : f32
    %303 = vector.broadcast %cst_101 : f32 to vector<8x256xf32>
    %304 = arith.addf %303, %302 : vector<8x256xf32>
    %305 = arith.divf %303, %304 : vector<8x256xf32>
    %306 = vector.extract_strided_slice %305 {offsets = [0, 0], sizes = [8, 128], strides = [1, 1]} : vector<8x256xf32> to vector<8x128xf32>
    %307 = vector.extract_strided_slice %305 {offsets = [0, 128], sizes = [8, 128], strides = [1, 1]} : vector<8x256xf32> to vector<8x128xf32>
    %308 = vector.extract_strided_slice %296 {offsets = [0, 256], sizes = [8, 128], strides = [1, 1]} : vector<8x384xf32> to vector<8x128xf32>
    %309 = vector.extract_strided_slice %297 {offsets = [0, 256], sizes = [8, 128], strides = [1, 1]} : vector<8x384xf32> to vector<8x128xf32>
    %310 = arith.addf %309, %257 : vector<8x128xf32>
    %311 = arith.mulf %306, %310 : vector<8x128xf32>
    %312 = arith.addf %308, %311 : vector<8x128xf32>
    %313 = math.tanh %312 : vector<8x128xf32>
    %314 = arith.subf %287, %313 : vector<8x128xf32>
    %315 = arith.mulf %307, %314 : vector<8x128xf32>
    %316 = arith.addf %313, %315 : vector<8x128xf32>
    %c8_i32_102 = arith.constant 8 : i32
    %317 = arith.muli %c1_i32_97, %c8_i32_102 : i32
    %c0_i32_103 = arith.constant 0 : i32
    %318 = arith.addi %c0_i32_103, %317 : i32
    %319 = tpu.assume_multiple %318, 8 : i32
    %320 = arith.index_cast %319 : i32 to index
    %c0_104 = arith.constant 0 : index
    %321 = vector.load %arg17[%320, %c0_104] : memref<64x128xf32, #tpu.memory_space<vmem>>, vector<8x128xf32>
    tpu.vector_store %arg17[%320, %c0_104], %316 {strides = array<i32>} : memref<64x128xf32, #tpu.memory_space<vmem>>, vector<8x128xf32>,
    %c2_i32_105 = arith.constant 2 : i32
    %c8_i32_106 = arith.constant 8 : i32
    %322 = arith.muli %c2_i32_105, %c8_i32_106 : i32
    %323 = tpu.assume_multiple %322, 8 : i32
    %324 = arith.index_cast %323 : i32 to index
    %c0_107 = arith.constant 0 : index
    %325 = vector.load %arg18[%324, %c0_107] : memref<64x384xf32, #tpu.memory_space<vmem>>, vector<8x384xf32>
    %cst_108 = arith.constant dense<0.000000e+00> : vector<8x384xf32>
    %326 = tpu.matmul %316, %253, %cst_108 {dimension_numbers = #tpu.dot_dimension_numbers<[1], [0], [0], [1], [0, 0, 1, 1], [], []>} : vector<8x128xf32>, vector<128x384xf32>, vector<8x384xf32> -> vector<8x384xf32>
    %327 = vector.extract_strided_slice %325 {offsets = [0, 0], sizes = [8, 256], strides = [1, 1]} : vector<8x384xf32> to vector<8x256xf32>
    %328 = vector.extract_strided_slice %326 {offsets = [0, 0], sizes = [8, 256], strides = [1, 1]} : vector<8x384xf32> to vector<8x256xf32>
    %329 = arith.addf %327, %328 : vector<8x256xf32>
    %330 = arith.negf %329 : vector<8x256xf32>
    %331 = math.exp %330 : vector<8x256xf32>
    %cst_109 = arith.constant 1.000000e+00 : f32
    %332 = vector.broadcast %cst_109 : f32 to vector<8x256xf32>
    %333 = arith.addf %332, %331 : vector<8x256xf32>
    %334 = arith.divf %332, %333 : vector<8x256xf32>
    %335 = vector.extract_strided_slice %334 {offsets = [0, 0], sizes = [8, 128], strides = [1, 1]} : vector<8x256xf32> to vector<8x128xf32>
    %336 = vector.extract_strided_slice %334 {offsets = [0, 128], sizes = [8, 128], strides = [1, 1]} : vector<8x256xf32> to vector<8x128xf32>
    %337 = vector.extract_strided_slice %325 {offsets = [0, 256], sizes = [8, 128], strides = [1, 1]} : vector<8x384xf32> to vector<8x128xf32>
    %338 = vector.extract_strided_slice %326 {offsets = [0, 256], sizes = [8, 128], strides = [1, 1]} : vector<8x384xf32> to vector<8x128xf32>
    %339 = arith.addf %338, %257 : vector<8x128xf32>
    %340 = arith.mulf %335, %339 : vector<8x128xf32>
    %341 = arith.addf %337, %340 : vector<8x128xf32>
    %342 = math.tanh %341 : vector<8x128xf32>
    %343 = arith.subf %316, %342 : vector<8x128xf32>
    %344 = arith.mulf %336, %343 : vector<8x128xf32>
    %345 = arith.addf %342, %344 : vector<8x128xf32>
    %c8_i32_110 = arith.constant 8 : i32
    %346 = arith.muli %c2_i32_105, %c8_i32_110 : i32
    %c0_i32_111 = arith.constant 0 : i32
    %347 = arith.addi %c0_i32_111, %346 : i32
    %348 = tpu.assume_multiple %347, 8 : i32
    %349 = arith.index_cast %348 : i32 to index
    %c0_112 = arith.constant 0 : index
    %350 = vector.load %arg17[%349, %c0_112] : memref<64x128xf32, #tpu.memory_space<vmem>>, vector<8x128xf32>
    tpu.vector_store %arg17[%349, %c0_112], %345 {strides = array<i32>} : memref<64x128xf32, #tpu.memory_space<vmem>>, vector<8x128xf32>,
    %c3_i32_113 = arith.constant 3 : i32
    %c8_i32_114 = arith.constant 8 : i32
    %351 = arith.muli %c3_i32_113, %c8_i32_114 : i32
    %352 = tpu.assume_multiple %351, 8 : i32
    %353 = arith.index_cast %352 : i32 to index
    %c0_115 = arith.constant 0 : index
    %354 = vector.load %arg18[%353, %c0_115] : memref<64x384xf32, #tpu.memory_space<vmem>>, vector<8x384xf32>
    %cst_116 = arith.constant dense<0.000000e+00> : vector<8x384xf32>
    %355 = tpu.matmul %345, %253, %cst_116 {dimension_numbers = #tpu.dot_dimension_numbers<[1], [0], [0], [1], [0, 0, 1, 1], [], []>} : vector<8x128xf32>, vector<128x384xf32>, vector<8x384xf32> -> vector<8x384xf32>
    %356 = vector.extract_strided_slice %354 {offsets = [0, 0], sizes = [8, 256], strides = [1, 1]} : vector<8x384xf32> to vector<8x256xf32>
    %357 = vector.extract_strided_slice %355 {offsets = [0, 0], sizes = [8, 256], strides = [1, 1]} : vector<8x384xf32> to vector<8x256xf32>
    %358 = arith.addf %356, %357 : vector<8x256xf32>
    %359 = arith.negf %358 : vector<8x256xf32>
    %360 = math.exp %359 : vector<8x256xf32>
    %cst_117 = arith.constant 1.000000e+00 : f32
    %361 = vector.broadcast %cst_117 : f32 to vector<8x256xf32>
    %362 = arith.addf %361, %360 : vector<8x256xf32>
    %363 = arith.divf %361, %362 : vector<8x256xf32>
    %364 = vector.extract_strided_slice %363 {offsets = [0, 0], sizes = [8, 128], strides = [1, 1]} : vector<8x256xf32> to vector<8x128xf32>
    %365 = vector.extract_strided_slice %363 {offsets = [0, 128], sizes = [8, 128], strides = [1, 1]} : vector<8x256xf32> to vector<8x128xf32>
    %366 = vector.extract_strided_slice %354 {offsets = [0, 256], sizes = [8, 128], strides = [1, 1]} : vector<8x384xf32> to vector<8x128xf32>
    %367 = vector.extract_strided_slice %355 {offsets = [0, 256], sizes = [8, 128], strides = [1, 1]} : vector<8x384xf32> to vector<8x128xf32>
    %368 = arith.addf %367, %257 : vector<8x128xf32>
    %369 = arith.mulf %364, %368 : vector<8x128xf32>
    %370 = arith.addf %366, %369 : vector<8x128xf32>
    %371 = math.tanh %370 : vector<8x128xf32>
    %372 = arith.subf %345, %371 : vector<8x128xf32>
    %373 = arith.mulf %365, %372 : vector<8x128xf32>
    %374 = arith.addf %371, %373 : vector<8x128xf32>
    %c8_i32_118 = arith.constant 8 : i32
    %375 = arith.muli %c3_i32_113, %c8_i32_118 : i32
    %c0_i32_119 = arith.constant 0 : i32
    %376 = arith.addi %c0_i32_119, %375 : i32
    %377 = tpu.assume_multiple %376, 8 : i32
    %378 = arith.index_cast %377 : i32 to index
    %c0_120 = arith.constant 0 : index
    %379 = vector.load %arg17[%378, %c0_120] : memref<64x128xf32, #tpu.memory_space<vmem>>, vector<8x128xf32>
    tpu.vector_store %arg17[%378, %c0_120], %374 {strides = array<i32>} : memref<64x128xf32, #tpu.memory_space<vmem>>, vector<8x128xf32>,
    %c4_i32_121 = arith.constant 4 : i32
    %c8_i32_122 = arith.constant 8 : i32
    %380 = arith.muli %c4_i32_121, %c8_i32_122 : i32
    %381 = tpu.assume_multiple %380, 8 : i32
    %382 = arith.index_cast %381 : i32 to index
    %c0_123 = arith.constant 0 : index
    %383 = vector.load %arg18[%382, %c0_123] : memref<64x384xf32, #tpu.memory_space<vmem>>, vector<8x384xf32>
    %cst_124 = arith.constant dense<0.000000e+00> : vector<8x384xf32>
    %384 = tpu.matmul %374, %253, %cst_124 {dimension_numbers = #tpu.dot_dimension_numbers<[1], [0], [0], [1], [0, 0, 1, 1], [], []>} : vector<8x128xf32>, vector<128x384xf32>, vector<8x384xf32> -> vector<8x384xf32>
    %385 = vector.extract_strided_slice %383 {offsets = [0, 0], sizes = [8, 256], strides = [1, 1]} : vector<8x384xf32> to vector<8x256xf32>
    %386 = vector.extract_strided_slice %384 {offsets = [0, 0], sizes = [8, 256], strides = [1, 1]} : vector<8x384xf32> to vector<8x256xf32>
    %387 = arith.addf %385, %386 : vector<8x256xf32>
    %388 = arith.negf %387 : vector<8x256xf32>
    %389 = math.exp %388 : vector<8x256xf32>
    %cst_125 = arith.constant 1.000000e+00 : f32
    %390 = vector.broadcast %cst_125 : f32 to vector<8x256xf32>
    %391 = arith.addf %390, %389 : vector<8x256xf32>
    %392 = arith.divf %390, %391 : vector<8x256xf32>
    %393 = vector.extract_strided_slice %392 {offsets = [0, 0], sizes = [8, 128], strides = [1, 1]} : vector<8x256xf32> to vector<8x128xf32>
    %394 = vector.extract_strided_slice %392 {offsets = [0, 128], sizes = [8, 128], strides = [1, 1]} : vector<8x256xf32> to vector<8x128xf32>
    %395 = vector.extract_strided_slice %383 {offsets = [0, 256], sizes = [8, 128], strides = [1, 1]} : vector<8x384xf32> to vector<8x128xf32>
    %396 = vector.extract_strided_slice %384 {offsets = [0, 256], sizes = [8, 128], strides = [1, 1]} : vector<8x384xf32> to vector<8x128xf32>
    %397 = arith.addf %396, %257 : vector<8x128xf32>
    %398 = arith.mulf %393, %397 : vector<8x128xf32>
    %399 = arith.addf %395, %398 : vector<8x128xf32>
    %400 = math.tanh %399 : vector<8x128xf32>
    %401 = arith.subf %374, %400 : vector<8x128xf32>
    %402 = arith.mulf %394, %401 : vector<8x128xf32>
    %403 = arith.addf %400, %402 : vector<8x128xf32>
    %c8_i32_126 = arith.constant 8 : i32
    %404 = arith.muli %c4_i32_121, %c8_i32_126 : i32
    %c0_i32_127 = arith.constant 0 : i32
    %405 = arith.addi %c0_i32_127, %404 : i32
    %406 = tpu.assume_multiple %405, 8 : i32
    %407 = arith.index_cast %406 : i32 to index
    %c0_128 = arith.constant 0 : index
    %408 = vector.load %arg17[%407, %c0_128] : memref<64x128xf32, #tpu.memory_space<vmem>>, vector<8x128xf32>
    tpu.vector_store %arg17[%407, %c0_128], %403 {strides = array<i32>} : memref<64x128xf32, #tpu.memory_space<vmem>>, vector<8x128xf32>,
    %c5_i32_129 = arith.constant 5 : i32
    %c8_i32_130 = arith.constant 8 : i32
    %409 = arith.muli %c5_i32_129, %c8_i32_130 : i32
    %410 = tpu.assume_multiple %409, 8 : i32
    %411 = arith.index_cast %410 : i32 to index
    %c0_131 = arith.constant 0 : index
    %412 = vector.load %arg18[%411, %c0_131] : memref<64x384xf32, #tpu.memory_space<vmem>>, vector<8x384xf32>
    %cst_132 = arith.constant dense<0.000000e+00> : vector<8x384xf32>
    %413 = tpu.matmul %403, %253, %cst_132 {dimension_numbers = #tpu.dot_dimension_numbers<[1], [0], [0], [1], [0, 0, 1, 1], [], []>} : vector<8x128xf32>, vector<128x384xf32>, vector<8x384xf32> -> vector<8x384xf32>
    %414 = vector.extract_strided_slice %412 {offsets = [0, 0], sizes = [8, 256], strides = [1, 1]} : vector<8x384xf32> to vector<8x256xf32>
    %415 = vector.extract_strided_slice %413 {offsets = [0, 0], sizes = [8, 256], strides = [1, 1]} : vector<8x384xf32> to vector<8x256xf32>
    %416 = arith.addf %414, %415 : vector<8x256xf32>
    %417 = arith.negf %416 : vector<8x256xf32>
    %418 = math.exp %417 : vector<8x256xf32>
    %cst_133 = arith.constant 1.000000e+00 : f32
    %419 = vector.broadcast %cst_133 : f32 to vector<8x256xf32>
    %420 = arith.addf %419, %418 : vector<8x256xf32>
    %421 = arith.divf %419, %420 : vector<8x256xf32>
    %422 = vector.extract_strided_slice %421 {offsets = [0, 0], sizes = [8, 128], strides = [1, 1]} : vector<8x256xf32> to vector<8x128xf32>
    %423 = vector.extract_strided_slice %421 {offsets = [0, 128], sizes = [8, 128], strides = [1, 1]} : vector<8x256xf32> to vector<8x128xf32>
    %424 = vector.extract_strided_slice %412 {offsets = [0, 256], sizes = [8, 128], strides = [1, 1]} : vector<8x384xf32> to vector<8x128xf32>
    %425 = vector.extract_strided_slice %413 {offsets = [0, 256], sizes = [8, 128], strides = [1, 1]} : vector<8x384xf32> to vector<8x128xf32>
    %426 = arith.addf %425, %257 : vector<8x128xf32>
    %427 = arith.mulf %422, %426 : vector<8x128xf32>
    %428 = arith.addf %424, %427 : vector<8x128xf32>
    %429 = math.tanh %428 : vector<8x128xf32>
    %430 = arith.subf %403, %429 : vector<8x128xf32>
    %431 = arith.mulf %423, %430 : vector<8x128xf32>
    %432 = arith.addf %429, %431 : vector<8x128xf32>
    %c8_i32_134 = arith.constant 8 : i32
    %433 = arith.muli %c5_i32_129, %c8_i32_134 : i32
    %c0_i32_135 = arith.constant 0 : i32
    %434 = arith.addi %c0_i32_135, %433 : i32
    %435 = tpu.assume_multiple %434, 8 : i32
    %436 = arith.index_cast %435 : i32 to index
    %c0_136 = arith.constant 0 : index
    %437 = vector.load %arg17[%436, %c0_136] : memref<64x128xf32, #tpu.memory_space<vmem>>, vector<8x128xf32>
    tpu.vector_store %arg17[%436, %c0_136], %432 {strides = array<i32>} : memref<64x128xf32, #tpu.memory_space<vmem>>, vector<8x128xf32>,
    %c6_i32_137 = arith.constant 6 : i32
    %c8_i32_138 = arith.constant 8 : i32
    %438 = arith.muli %c6_i32_137, %c8_i32_138 : i32
    %439 = tpu.assume_multiple %438, 8 : i32
    %440 = arith.index_cast %439 : i32 to index
    %c0_139 = arith.constant 0 : index
    %441 = vector.load %arg18[%440, %c0_139] : memref<64x384xf32, #tpu.memory_space<vmem>>, vector<8x384xf32>
    %cst_140 = arith.constant dense<0.000000e+00> : vector<8x384xf32>
    %442 = tpu.matmul %432, %253, %cst_140 {dimension_numbers = #tpu.dot_dimension_numbers<[1], [0], [0], [1], [0, 0, 1, 1], [], []>} : vector<8x128xf32>, vector<128x384xf32>, vector<8x384xf32> -> vector<8x384xf32>
    %443 = vector.extract_strided_slice %441 {offsets = [0, 0], sizes = [8, 256], strides = [1, 1]} : vector<8x384xf32> to vector<8x256xf32>
    %444 = vector.extract_strided_slice %442 {offsets = [0, 0], sizes = [8, 256], strides = [1, 1]} : vector<8x384xf32> to vector<8x256xf32>
    %445 = arith.addf %443, %444 : vector<8x256xf32>
    %446 = arith.negf %445 : vector<8x256xf32>
    %447 = math.exp %446 : vector<8x256xf32>
    %cst_141 = arith.constant 1.000000e+00 : f32
    %448 = vector.broadcast %cst_141 : f32 to vector<8x256xf32>
    %449 = arith.addf %448, %447 : vector<8x256xf32>
    %450 = arith.divf %448, %449 : vector<8x256xf32>
    %451 = vector.extract_strided_slice %450 {offsets = [0, 0], sizes = [8, 128], strides = [1, 1]} : vector<8x256xf32> to vector<8x128xf32>
    %452 = vector.extract_strided_slice %450 {offsets = [0, 128], sizes = [8, 128], strides = [1, 1]} : vector<8x256xf32> to vector<8x128xf32>
    %453 = vector.extract_strided_slice %441 {offsets = [0, 256], sizes = [8, 128], strides = [1, 1]} : vector<8x384xf32> to vector<8x128xf32>
    %454 = vector.extract_strided_slice %442 {offsets = [0, 256], sizes = [8, 128], strides = [1, 1]} : vector<8x384xf32> to vector<8x128xf32>
    %455 = arith.addf %454, %257 : vector<8x128xf32>
    %456 = arith.mulf %451, %455 : vector<8x128xf32>
    %457 = arith.addf %453, %456 : vector<8x128xf32>
    %458 = math.tanh %457 : vector<8x128xf32>
    %459 = arith.subf %432, %458 : vector<8x128xf32>
    %460 = arith.mulf %452, %459 : vector<8x128xf32>
    %461 = arith.addf %458, %460 : vector<8x128xf32>
    %c8_i32_142 = arith.constant 8 : i32
    %462 = arith.muli %c6_i32_137, %c8_i32_142 : i32
    %c0_i32_143 = arith.constant 0 : i32
    %463 = arith.addi %c0_i32_143, %462 : i32
    %464 = tpu.assume_multiple %463, 8 : i32
    %465 = arith.index_cast %464 : i32 to index
    %c0_144 = arith.constant 0 : index
    %466 = vector.load %arg17[%465, %c0_144] : memref<64x128xf32, #tpu.memory_space<vmem>>, vector<8x128xf32>
    tpu.vector_store %arg17[%465, %c0_144], %461 {strides = array<i32>} : memref<64x128xf32, #tpu.memory_space<vmem>>, vector<8x128xf32>,
    %c7_i32_145 = arith.constant 7 : i32
    %c8_i32_146 = arith.constant 8 : i32
    %467 = arith.muli %c7_i32_145, %c8_i32_146 : i32
    %468 = tpu.assume_multiple %467, 8 : i32
    %469 = arith.index_cast %468 : i32 to index
    %c0_147 = arith.constant 0 : index
    %470 = vector.load %arg18[%469, %c0_147] : memref<64x384xf32, #tpu.memory_space<vmem>>, vector<8x384xf32>
    %cst_148 = arith.constant dense<0.000000e+00> : vector<8x384xf32>
    %471 = tpu.matmul %461, %253, %cst_148 {dimension_numbers = #tpu.dot_dimension_numbers<[1], [0], [0], [1], [0, 0, 1, 1], [], []>} : vector<8x128xf32>, vector<128x384xf32>, vector<8x384xf32> -> vector<8x384xf32>
    %472 = vector.extract_strided_slice %470 {offsets = [0, 0], sizes = [8, 256], strides = [1, 1]} : vector<8x384xf32> to vector<8x256xf32>
    %473 = vector.extract_strided_slice %471 {offsets = [0, 0], sizes = [8, 256], strides = [1, 1]} : vector<8x384xf32> to vector<8x256xf32>
    %474 = arith.addf %472, %473 : vector<8x256xf32>
    %475 = arith.negf %474 : vector<8x256xf32>
    %476 = math.exp %475 : vector<8x256xf32>
    %cst_149 = arith.constant 1.000000e+00 : f32
    %477 = vector.broadcast %cst_149 : f32 to vector<8x256xf32>
    %478 = arith.addf %477, %476 : vector<8x256xf32>
    %479 = arith.divf %477, %478 : vector<8x256xf32>
    %480 = vector.extract_strided_slice %479 {offsets = [0, 0], sizes = [8, 128], strides = [1, 1]} : vector<8x256xf32> to vector<8x128xf32>
    %481 = vector.extract_strided_slice %479 {offsets = [0, 128], sizes = [8, 128], strides = [1, 1]} : vector<8x256xf32> to vector<8x128xf32>
    %482 = vector.extract_strided_slice %470 {offsets = [0, 256], sizes = [8, 128], strides = [1, 1]} : vector<8x384xf32> to vector<8x128xf32>
    %483 = vector.extract_strided_slice %471 {offsets = [0, 256], sizes = [8, 128], strides = [1, 1]} : vector<8x384xf32> to vector<8x128xf32>
    %484 = arith.addf %483, %257 : vector<8x128xf32>
    %485 = arith.mulf %480, %484 : vector<8x128xf32>
    %486 = arith.addf %482, %485 : vector<8x128xf32>
    %487 = math.tanh %486 : vector<8x128xf32>
    %488 = arith.subf %461, %487 : vector<8x128xf32>
    %489 = arith.mulf %481, %488 : vector<8x128xf32>
    %490 = arith.addf %487, %489 : vector<8x128xf32>
    %c8_i32_150 = arith.constant 8 : i32
    %491 = arith.muli %c7_i32_145, %c8_i32_150 : i32
    %c0_i32_151 = arith.constant 0 : i32
    %492 = arith.addi %c0_i32_151, %491 : i32
    %493 = tpu.assume_multiple %492, 8 : i32
    %494 = arith.index_cast %493 : i32 to index
    %c0_152 = arith.constant 0 : index
    %495 = vector.load %arg17[%494, %c0_152] : memref<64x128xf32, #tpu.memory_space<vmem>>, vector<8x128xf32>
    tpu.vector_store %arg17[%494, %c0_152], %490 {strides = array<i32>} : memref<64x128xf32, #tpu.memory_space<vmem>>, vector<8x128xf32>,
    %c8_i32_153 = arith.constant 8 : i32
    %c0_154 = arith.constant 0 : index
    %c0_155 = arith.constant 0 : index
    %496 = vector.load %arg17[%c0_154, %c0_155] : memref<64x128xf32, #tpu.memory_space<vmem>>, vector<64x128xf32>
    %c0_156 = arith.constant 0 : index
    %c0_157 = arith.constant 0 : index
    %497 = vector.load %arg12[%c0_156, %c0_157] : memref<128x128xf32, #tpu.memory_space<vmem>>, vector<128x128xf32>
    %cst_158 = arith.constant dense<0.000000e+00> : vector<64x128xf32>
    %498 = tpu.matmul %496, %497, %cst_158 {dimension_numbers = #tpu.dot_dimension_numbers<[1], [0], [0], [1], [0, 0, 1, 1], [], []>} : vector<64x128xf32>, vector<128x128xf32>, vector<64x128xf32> -> vector<64x128xf32>
    %c0_159 = arith.constant 0 : index
    %c0_160 = arith.constant 0 : index
    %499 = vector.load %arg13[%c0_159, %c0_160] : memref<1x128xf32, #tpu.memory_space<vmem>>, vector<1x128xf32>
    %500 = vector.broadcast %499 : vector<1x128xf32> to vector<64x128xf32>
    %501 = arith.addf %498, %500 : vector<64x128xf32>
    %cst_161 = arith.constant 0.000000e+00 : f32
    %502 = vector.broadcast %cst_161 : f32 to vector<64x128xf32>
    %503 = arith.maximumf %501, %502 : vector<64x128xf32>
    %c0_162 = arith.constant 0 : index
    %c0_163 = arith.constant 0 : index
    %504 = vector.load %arg14[%c0_162, %c0_163] : memref<128x128xf32, #tpu.memory_space<vmem>>, vector<128x128xf32>
    %cst_164 = arith.constant dense<0.000000e+00> : vector<64x128xf32>
    %505 = tpu.matmul %503, %504, %cst_164 {dimension_numbers = #tpu.dot_dimension_numbers<[1], [0], [0], [1], [0, 0, 1, 1], [], []>} : vector<64x128xf32>, vector<128x128xf32>, vector<64x128xf32> -> vector<64x128xf32>
    %c0_165 = arith.constant 0 : index
    %c0_166 = arith.constant 0 : index
    %506 = vector.load %arg15[%c0_165, %c0_166] : memref<1x128xf32, #tpu.memory_space<vmem>>, vector<1x128xf32>
    %507 = vector.broadcast %506 : vector<1x128xf32> to vector<64x128xf32>
    %508 = arith.addf %505, %507 : vector<64x128xf32>
    %509 = vector.shape_cast %508 : vector<64x128xf32> to vector<8x8x128xf32>
    %c0_167 = arith.constant 0 : index
    %c0_168 = arith.constant 0 : index
    %c0_169 = arith.constant 0 : index
    %510 = vector.load %arg16[%c0_167, %c0_168, %c0_169] : memref<8x8x128xf32, #tpu.memory_space<vmem>>, vector<8x8x128xf32>
    tpu.vector_store %arg16[%c0_167, %c0_168, %c0_169], %509 {strides = array<i32>} : memref<8x8x128xf32, #tpu.memory_space<vmem>>, vector<8x8x128xf32>,
    return
  }
  func.func @transform_0(%arg0: i32) -> (i32, i32, i32) {
    %c0_i32 = arith.constant 0 : i32
    %c0_i32_0 = arith.constant 0 : i32
    %c0_i32_1 = arith.constant 0 : i32
    return %c0_i32, %arg0, %c0_i32_0 : i32, i32, i32
  }
  func.func @transform_1(%arg0: i32) -> (i32, i32) {
    %c0_i32 = arith.constant 0 : i32
    %c0_i32_0 = arith.constant 0 : i32
    %c0_i32_1 = arith.constant 0 : i32
    return %c0_i32, %c0_i32_0 : i32, i32
  }
  func.func @transform_2(%arg0: i32) -> (i32, i32) {
    %c0_i32 = arith.constant 0 : i32
    %c0_i32_0 = arith.constant 0 : i32
    %c0_i32_1 = arith.constant 0 : i32
    return %c0_i32, %c0_i32_0 : i32, i32
  }
  func.func @transform_3(%arg0: i32) -> (i32, i32) {
    %c0_i32 = arith.constant 0 : i32
    %c0_i32_0 = arith.constant 0 : i32
    %c0_i32_1 = arith.constant 0 : i32
    return %c0_i32, %c0_i32_0 : i32, i32
  }
  func.func @transform_4(%arg0: i32) -> (i32, i32) {
    %c0_i32 = arith.constant 0 : i32
    %c0_i32_0 = arith.constant 0 : i32
    %c0_i32_1 = arith.constant 0 : i32
    return %c0_i32, %c0_i32_0 : i32, i32
  }
  func.func @transform_5(%arg0: i32) -> (i32, i32) {
    %c0_i32 = arith.constant 0 : i32
    %c0_i32_0 = arith.constant 0 : i32
    %c0_i32_1 = arith.constant 0 : i32
    return %c0_i32, %c0_i32_0 : i32, i32
  }
  func.func @transform_6(%arg0: i32) -> (i32, i32) {
    %c0_i32 = arith.constant 0 : i32
    %c0_i32_0 = arith.constant 0 : i32
    %c0_i32_1 = arith.constant 0 : i32
    return %c0_i32, %c0_i32_0 : i32, i32
  }
  func.func @transform_7(%arg0: i32) -> (i32, i32) {
    %c0_i32 = arith.constant 0 : i32
    %c0_i32_0 = arith.constant 0 : i32
    %c0_i32_1 = arith.constant 0 : i32
    return %c0_i32, %c0_i32_0 : i32, i32
  }
  func.func @transform_8(%arg0: i32) -> (i32, i32) {
    %c0_i32 = arith.constant 0 : i32
    %c0_i32_0 = arith.constant 0 : i32
    %c0_i32_1 = arith.constant 0 : i32
    return %c0_i32, %c0_i32_0 : i32, i32
  }
  func.func @transform_9(%arg0: i32) -> (i32, i32) {
    %c0_i32 = arith.constant 0 : i32
    %c0_i32_0 = arith.constant 0 : i32
    %c0_i32_1 = arith.constant 0 : i32
    return %c0_i32, %c0_i32_0 : i32, i32
  }
  func.func @transform_10(%arg0: i32) -> (i32, i32) {
    %c0_i32 = arith.constant 0 : i32
    %c0_i32_0 = arith.constant 0 : i32
    %c0_i32_1 = arith.constant 0 : i32
    return %c0_i32, %c0_i32_0 : i32, i32
  }
  func.func @transform_11(%arg0: i32) -> (i32, i32) {
    %c0_i32 = arith.constant 0 : i32
    %c0_i32_0 = arith.constant 0 : i32
    %c0_i32_1 = arith.constant 0 : i32
    return %c0_i32, %c0_i32_0 : i32, i32
  }
  func.func @transform_12(%arg0: i32) -> (i32, i32) {
    %c0_i32 = arith.constant 0 : i32
    %c0_i32_0 = arith.constant 0 : i32
    %c0_i32_1 = arith.constant 0 : i32
    return %c0_i32, %c0_i32_0 : i32, i32
  }
  func.func @transform_13(%arg0: i32) -> (i32, i32) {
    %c0_i32 = arith.constant 0 : i32
    %c0_i32_0 = arith.constant 0 : i32
    %c0_i32_1 = arith.constant 0 : i32
    return %c0_i32, %c0_i32_0 : i32, i32
  }
  func.func @transform_14(%arg0: i32) -> (i32, i32) {
    %c0_i32 = arith.constant 0 : i32
    %c0_i32_0 = arith.constant 0 : i32
    %c0_i32_1 = arith.constant 0 : i32
    return %c0_i32, %c0_i32_0 : i32, i32
  }
  func.func @transform_15(%arg0: i32) -> (i32, i32, i32) {
    %c0_i32 = arith.constant 0 : i32
    %c0_i32_0 = arith.constant 0 : i32
    %c0_i32_1 = arith.constant 0 : i32
    return %c0_i32, %arg0, %c0_i32_0 : i32, i32, i32
  }
}

</mosaic_0001>

<llo_original>
// kernel: _gru_plain_forward.1
$region0: #{_gru_plain_forward.1}
  #allocation0 [shape = 'u32[]', space=smem, size = 0x4, offset = 0x4, fixed_abs, tag = 'smem constant byte address 0x4 - core index']
  #allocation1 [shape = 'u32[72,128]{1,0:T(1,128)}', space=vmem, size = 0x9000, scoped, tag = 'internal scratch']
  #allocation2 [shape = 'f32[64,128]{1,0:T(8,128)}', space=vmem, size = 0x8000, scoped, tag = 'scratch operand']
  #allocation3 [shape = 'f32[64,384]{1,0:T(8,128)}', space=vmem, size = 0x18000, scoped, tag = 'scratch operand']
  %s0 = inlined_call_operand.vmem [shape: f32[8,8,8], index: 0, kind: input, shape index: {}]
  %s1 = inlined_call_operand.vmem [shape: f32[8,128], index: 1, kind: input, shape index: {}]
  %s2 = inlined_call_operand.vmem [shape: f32[1,128], index: 2, kind: input, shape index: {}]
  %s3 = inlined_call_operand.hbm [shape: f32[128,384], index: 3, kind: input, shape index: {}]
  %s4 = inlined_call_operand.hbm [shape: f32[128,384], index: 4, kind: input, shape index: {}]
  %s5 = inlined_call_operand.vmem [shape: f32[1,384], index: 5, kind: input, shape index: {}]
  %s6 = inlined_call_operand.vmem [shape: f32[1,128], index: 6, kind: input, shape index: {}]
  %s7 = inlined_call_operand.hbm [shape: f32[128,384], index: 7, kind: input, shape index: {}]
  %s8 = inlined_call_operand.hbm [shape: f32[128,384], index: 8, kind: input, shape index: {}]
  %s9 = inlined_call_operand.vmem [shape: f32[1,384], index: 9, kind: input, shape index: {}]
  %s10 = inlined_call_operand.vmem [shape: f32[1,128], index: 10, kind: input, shape index: {}]
  %s11 = inlined_call_operand.hbm [shape: f32[128,128], index: 11, kind: input, shape index: {}]
  %s12 = inlined_call_operand.vmem [shape: f32[1,128], index: 12, kind: input, shape index: {}]
  %s13 = inlined_call_operand.hbm [shape: f32[128,128], index: 13, kind: input, shape index: {}]
  %s14 = inlined_call_operand.vmem [shape: f32[1,128], index: 14, kind: input, shape index: {}]
  %s15 = inlined_call_operand.vmem [shape: f32[8,8,128], index: 15, kind: output, shape index: {}]
  %s16 = sld [smem:[#allocation0]]
  $region94: #{_gru_plain_forward.1} parent=0
    _
  %s18 = ssub.s32 1, %s16
  %s19 = scalar_select 0, %s18, %s16
  $region1: #{_gru_plain_forward.1} parent=0
    #allocation4 [shape = 'u8[196608]{0}', space=vmem, size = 0x30000, scoped, tag = 'input window, operand 3, single buffered']
    #allocation5 [shape = 's32[1]{0}', space=sflag, size = 0x4, scoped, tag = 'scoped memory for _gru_plain_forward.1']
    #allocation6 [shape = 'u8[196608]{0}', space=vmem, size = 0x30000, scoped, tag = 'input window, operand 4, single buffered']
    #allocation7 [shape = 's32[1]{0}', space=sflag, size = 0x4, scoped, tag = 'scoped memory for _gru_plain_forward.1']
    #allocation8 [shape = 'u8[196608]{0}', space=vmem, size = 0x30000, scoped, tag = 'input window, operand 7, single buffered']
    #allocation9 [shape = 'u8[196608]{0}', space=vmem, size = 0x30000, scoped, tag = 'input window, operand 8, single buffered']
    #allocation10 [shape = 's32[1]{0}', space=sflag, size = 0x4, scoped, tag = 'scoped memory for _gru_plain_forward.1']
    #allocation11 [shape = 'u8[65536]{0}', space=vmem, size = 0x10000, scoped, tag = 'input window, operand 11, single buffered']
    #allocation12 [shape = 'u8[65536]{0}', space=vmem, size = 0x10000, scoped, tag = 'input window, operand 13, single buffered']
    #allocation13 [shape = 's32[1]{0}', space=sflag, size = 0x4, scoped, tag = 'scoped memory for _gru_plain_forward.1']
    %20 = vsyncpa [#allocation5], 0
    %21 = vsyncpa [#allocation7], 0
    %22 = vsyncpa [#allocation10], 0
    %23 = vsyncpa [#allocation13], 0
    // Predicated region
    $region2: #{_gru_plain_forward.1} parent=1 // pred_check
      _
    $region3: #{_gru_plain_forward.1} parent=1 // pred_check_branch
      %25 = sbr.rel (0) target = $region5
    $region4: #{_gru_plain_forward.1} parent=1 // pred_region
      _
    $region5: #{_gru_plain_forward.1} parent=1 // pred_fallthru
      _
    // Predicated region
    $region6: #{_gru_plain_forward.1} parent=1 // pred_check
      _
    $region7: #{_gru_plain_forward.1} parent=1 // pred_check_branch
      %27 = sbr.rel (0) target = $region9
    $region8: #{_gru_plain_forward.1} parent=1 // pred_region
      _
    $region9: #{_gru_plain_forward.1} parent=1 // pred_fallthru
      _
    // Predicated region
    $region10: #{_gru_plain_forward.1} parent=1 // pred_check
      _
    $region11: #{_gru_plain_forward.1} parent=1 // pred_check_branch
      %29 = sbr.rel (0) target = $region13
    $region12: #{_gru_plain_forward.1} parent=1 // pred_region
      _
    $region13: #{_gru_plain_forward.1} parent=1 // pred_fallthru
      _
    // Predicated region
    $region14: #{_gru_plain_forward.1} parent=1 // pred_check
      _
    $region15: #{_gru_plain_forward.1} parent=1 // pred_check_branch
      %31 = sbr.rel (0) target = $region17
    $region16: #{_gru_plain_forward.1} parent=1 // pred_region
      %33 = vsyncadd [#allocation5], 0
      %s34 = sshll.u32 %s3, 4
      %s35 = int_to_ptr.hbm [resolvable:$true] %s34
      %s36 = sshll.u32 [#allocation4], 4
      %s37 = int_to_ptr.vmem [resolvable:$true] %s36
      %42 = dma.hbm_to_vmem [thread:$0]  %s35, 6144, %s37, [#allocation5], 384, 384, 24
    $region17: #{_gru_plain_forward.1} parent=1 // pred_fallthru
      _
    // Predicated region
    $region18: #{_gru_plain_forward.1} parent=1 // pred_check
      _
    $region19: #{_gru_plain_forward.1} parent=1 // pred_check_branch
      %44 = sbr.rel (0) target = $region21
    $region20: #{_gru_plain_forward.1} parent=1 // pred_region
      %46 = vsyncadd [#allocation7], 0
      %s47 = sshll.u32 %s4, 4
      %s48 = int_to_ptr.hbm [resolvable:$true] %s47
      %s49 = sshll.u32 [#allocation6], 4
      %s50 = int_to_ptr.vmem [resolvable:$true] %s49
      %55 = dma.hbm_to_vmem [thread:$0]  %s48, 6144, %s50, [#allocation7], 384, 384, 24
    $region21: #{_gru_plain_forward.1} parent=1 // pred_fallthru
      _
    // Predicated region
    $region22: #{_gru_plain_forward.1} parent=1 // pred_check
      _
    $region23: #{_gru_plain_forward.1} parent=1 // pred_check_branch
      %57 = sbr.rel (0) target = $region25
    $region24: #{_gru_plain_forward.1} parent=1 // pred_region
      _
    $region25: #{_gru_plain_forward.1} parent=1 // pred_fallthru
      _
    // Predicated region
    $region26: #{_gru_plain_forward.1} parent=1 // pred_check
      _
    $region27: #{_gru_plain_forward.1} parent=1 // pred_check_branch
      %59 = sbr.rel (0) target = $region29
    $region28: #{_gru_plain_forward.1} parent=1 // pred_region
      _
    $region29: #{_gru_plain_forward.1} parent=1 // pred_fallthru
      _
    // Predicated region
    $region30: #{_gru_plain_forward.1} parent=1 // pred_check
      _
    $region31: #{_gru_plain_forward.1} parent=1 // pred_check_branch
      %61 = sbr.rel (0) target = $region33
    $region32: #{_gru_plain_forward.1} parent=1 // pred_region
      %63 = vsyncadd [#allocation7], 0
      %s64 = sshll.u32 %s7, 4
      %s65 = int_to_ptr.hbm [resolvable:$true] %s64
      %s66 = sshll.u32 [#allocation8], 4
      %s67 = int_to_ptr.vmem [resolvable:$true] %s66
      %72 = dma.hbm_to_vmem [thread:$0]  %s65, 6144, %s67, [#allocation7], 384, 384, 24
    $region33: #{_gru_plain_forward.1} parent=1 // pred_fallthru
      _
    // Predicated region
    $region34: #{_gru_plain_forward.1} parent=1 // pred_check
      _
    $region35: #{_gru_plain_forward.1} parent=1 // pred_check_branch
      %74 = sbr.rel (0) target = $region37
    $region36: #{_gru_plain_forward.1} parent=1 // pred_region
      %76 = vsyncadd [#allocation10], 0
      %s77 = sshll.u32 %s8, 4
      %s78 = int_to_ptr.hbm [resolvable:$true] %s77
      %s79 = sshll.u32 [#allocation9], 4
      %s80 = int_to_ptr.vmem [resolvable:$true] %s79
      %85 = dma.hbm_to_vmem [thread:$0]  %s78, 6144, %s80, [#allocation10], 384, 384, 24
    $region37: #{_gru_plain_forward.1} parent=1 // pred_fallthru
      _
    // Predicated region
    $region38: #{_gru_plain_forward.1} parent=1 // pred_check
      _
    $region39: #{_gru_plain_forward.1} parent=1 // pred_check_branch
      %87 = sbr.rel (0) target = $region41
    $region40: #{_gru_plain_forward.1} parent=1 // pred_region
      _
    $region41: #{_gru_plain_forward.1} parent=1 // pred_fallthru
      _
    // Predicated region
    $region42: #{_gru_plain_forward.1} parent=1 // pred_check
      _
    $region43: #{_gru_plain_forward.1} parent=1 // pred_check_branch
      %89 = sbr.rel (0) target = $region45
    $region44: #{_gru_plain_forward.1} parent=1 // pred_region
      _
    $region45: #{_gru_plain_forward.1} parent=1 // pred_fallthru
      _
    // Predicated region
    $region46: #{_gru_plain_forward.1} parent=1 // pred_check
      _
    $region47: #{_gru_plain_forward.1} parent=1 // pred_check_branch
      %91 = sbr.rel (0) target = $region49
    $region48: #{_gru_plain_forward.1} parent=1 // pred_region
      %93 = vsyncadd [#allocation10], 0
      %s94 = sshll.u32 %s11, 4
      %s95 = int_to_ptr.hbm [resolvable:$true] %s94
      %s96 = sshll.u32 [#allocation11], 4
      %s97 = int_to_ptr.vmem [resolvable:$true] %s96
      %102 = dma.hbm_to_vmem [thread:$0]  %s95, 2048, %s97, [#allocation10], 128, 128, 8
    $region49: #{_gru_plain_forward.1} parent=1 // pred_fallthru
      _
    // Predicated region
    $region50: #{_gru_plain_forward.1} parent=1 // pred_check
      _
    $region51: #{_gru_plain_forward.1} parent=1 // pred_check_branch
      %104 = sbr.rel (0) target = $region53
    $region52: #{_gru_plain_forward.1} parent=1 // pred_region
      _
    $region53: #{_gru_plain_forward.1} parent=1 // pred_fallthru
      _
    // Predicated region
    $region54: #{_gru_plain_forward.1} parent=1 // pred_check
      _
    $region55: #{_gru_plain_forward.1} parent=1 // pred_check_branch
      %106 = sbr.rel (0) target = $region57
    $region56: #{_gru_plain_forward.1} parent=1 // pred_region
      %108 = vsyncadd [#allocation13], 0
      %s109 = sshll.u32 %s13, 4
      %s110 = int_to_ptr.hbm [resolvable:$true] %s109
      %s111 = sshll.u32 [#allocation12], 4
      %s112 = int_to_ptr.vmem [resolvable:$true] %s111
      %117 = dma.hbm_to_vmem [thread:$0]  %s110, 2048, %s112, [#allocation13], 128, 128, 8
    $region57: #{_gru_plain_forward.1} parent=1 // pred_fallthru
      _
    // Predicated region
    $region58: #{_gru_plain_forward.1} parent=1 // pred_check
      _
    $region59: #{_gru_plain_forward.1} parent=1 // pred_check_branch
      %119 = sbr.rel (0) target = $region61
    $region60: #{_gru_plain_forward.1} parent=1 // pred_region
      _
    $region61: #{_gru_plain_forward.1} parent=1 // pred_fallthru
      _
    // Predicated region
    $region62: #{_gru_plain_forward.1} parent=1 // pred_check
      _
    $region63: #{_gru_plain_forward.1} parent=1 // pred_check_branch
      %121 = sbr.rel (0) target = $region65
    $region64: #{_gru_plain_forward.1} parent=1 // pred_region
      %123 = dma.done [#allocation5], 6144
    $region65: #{_gru_plain_forward.1} parent=1 // pred_fallthru
      _
    // Predicated region
    $region66: #{_gru_plain_forward.1} parent=1 // pred_check
      _
    $region67: #{_gru_plain_forward.1} parent=1 // pred_check_branch
      %125 = sbr.rel (0) target = $region69
    $region68: #{_gru_plain_forward.1} parent=1 // pred_region
      %127 = dma.done [#allocation7], 6144
    $region69: #{_gru_plain_forward.1} parent=1 // pred_fallthru
      _
    // Predicated region
    $region70: #{_gru_plain_forward.1} parent=1 // pred_check
      _
    $region71: #{_gru_plain_forward.1} parent=1 // pred_check_branch
      %129 = sbr.rel (0) target = $region73
    $region72: #{_gru_plain_forward.1} parent=1 // pred_region
      %131 = dma.done [#allocation7], 6144
    $region73: #{_gru_plain_forward.1} parent=1 // pred_fallthru
      _
    // Predicated region
    $region74: #{_gru_plain_forward.1} parent=1 // pred_check
      _
    $region75: #{_gru_plain_forward.1} parent=1 // pred_check_branch
      %133 = sbr.rel (0) target = $region77
    $region76: #{_gru_plain_forward.1} parent=1 // pred_region
      %135 = dma.done [#allocation10], 6144
    $region77: #{_gru_plain_forward.1} parent=1 // pred_fallthru
      _
    // Predicated region
    $region78: #{_gru_plain_forward.1} parent=1 // pred_check
      _
    $region79: #{_gru_plain_forward.1} parent=1 // pred_check_branch
      %137 = sbr.rel (0) target = $region81
    $region80: #{_gru_plain_forward.1} parent=1 // pred_region
      %139 = dma.done [#allocation10], 2048
    $region81: #{_gru_plain_forward.1} parent=1 // pred_fallthru
      _
    // Predicated region
    $region82: #{_gru_plain_forward.1} parent=1 // pred_check
      _
    $region83: #{_gru_plain_forward.1} parent=1 // pred_check_branch
      %141 = sbr.rel (0) target = $region85
    $region84: #{_gru_plain_forward.1} parent=1 // pred_region
      %143 = dma.done [#allocation13], 2048
    $region85: #{_gru_plain_forward.1} parent=1 // pred_fallthru
      _
    %v144 = vld [vmem:[%s1] sm:$0xff]
    %v145 = vld [vmem:[%s2] sm:$0x1]
    %v146 = vld [vmem:[#allocation4] sm:$0xff]
    %v147 = vld [vmem:[#allocation4 + $0x8] sm:$0xff]
    %v148 = vld [vmem:[#allocation4 + $0x10] sm:$0xff]
    %v149 = vld [vmem:[#allocation4 + $0x18] sm:$0xff]
    %v150 = vld [vmem:[#allocation4 + $0x20] sm:$0xff]
    %v151 = vld [vmem:[#allocation4 + $0x28] sm:$0xff]
    %v152 = vld [vmem:[#allocation4 + $0x30] sm:$0xff]
    %v153 = vld [vmem:[#allocation4 + $0x38] sm:$0xff]
    %v154 = vld [vmem:[#allocation4 + $0x40] sm:$0xff]
    %v155 = vld [vmem:[#allocation4 + $0x48] sm:$0xff]
    %v156 = vld [vmem:[#allocation4 + $0x50] sm:$0xff]
    %v157 = vld [vmem:[#allocation4 + $0x58] sm:$0xff]
    %v158 = vld [vmem:[#allocation4 + $0x60] sm:$0xff]
    %v159 = vld [vmem:[#allocation4 + $0x68] sm:$0xff]
    %v160 = vld [vmem:[#allocation4 + $0x70] sm:$0xff]
    %v161 = vld [vmem:[#allocation4 + $0x78] sm:$0xff]
    %v162 = vld [vmem:[#allocation4 + $0x80] sm:$0xff]
    %v163 = vld [vmem:[#allocation4 + $0x88] sm:$0xff]
    %v164 = vld [vmem:[#allocation4 + $0x90] sm:$0xff]
    %v165 = vld [vmem:[#allocation4 + $0x98] sm:$0xff]
    %v166 = vld [vmem:[#allocation4 + $0xa0] sm:$0xff]
    %v167 = vld [vmem:[#allocation4 + $0xa8] sm:$0xff]
    %v168 = vld [vmem:[#allocation4 + $0xb0] sm:$0xff]
    %v169 = vld [vmem:[#allocation4 + $0xb8] sm:$0xff]
    %v170 = vld [vmem:[#allocation4 + $0xc0] sm:$0xff]
    %v171 = vld [vmem:[#allocation4 + $0xc8] sm:$0xff]
    %v172 = vld [vmem:[#allocation4 + $0xd0] sm:$0xff]
    %v173 = vld [vmem:[#allocation4 + $0xd8] sm:$0xff]
    %v174 = vld [vmem:[#allocation4 + $0xe0] sm:$0xff]
    %v175 = vld [vmem:[#allocation4 + $0xe8] sm:$0xff]
    %v176 = vld [vmem:[#allocation4 + $0xf0] sm:$0xff]
    %v177 = vld [vmem:[#allocation4 + $0xf8] sm:$0xff]
    %v178 = vld [vmem:[#allocation4 + $0x100] sm:$0xff]
    %v179 = vld [vmem:[#allocation4 + $0x108] sm:$0xff]
    %v180 = vld [vmem:[#allocation4 + $0x110] sm:$0xff]
    %v181 = vld [vmem:[#allocation4 + $0x118] sm:$0xff]
    %v182 = vld [vmem:[#allocation4 + $0x120] sm:$0xff]
    %v183 = vld [vmem:[#allocation4 + $0x128] sm:$0xff]
    %v184 = vld [vmem:[#allocation4 + $0x130] sm:$0xff]
    %v185 = vld [vmem:[#allocation4 + $0x138] sm:$0xff]
    %v186 = vld [vmem:[#allocation4 + $0x140] sm:$0xff]
    %v187 = vld [vmem:[#allocation4 + $0x148] sm:$0xff]
    %v188 = vld [vmem:[#allocation4 + $0x150] sm:$0xff]
    %v189 = vld [vmem:[#allocation4 + $0x158] sm:$0xff]
    %v190 = vld [vmem:[#allocation4 + $0x160] sm:$0xff]
    %v191 = vld [vmem:[#allocation4 + $0x168] sm:$0xff]
    %v192 = vld [vmem:[#allocation4 + $0x170] sm:$0xff]
    %v193 = vld [vmem:[#allocation4 + $0x178] sm:$0xff]
    %v194 = vld [vmem:[#allocation6] sm:$0xff]
    %v195 = vld [vmem:[#allocation6 + $0x8] sm:$0xff]
    %v196 = vld [vmem:[#allocation6 + $0x10] sm:$0xff]
    %v197 = vld [vmem:[#allocation6 + $0x18] sm:$0xff]
    %v198 = vld [vmem:[#allocation6 + $0x20] sm:$0xff]
    %v199 = vld [vmem:[#allocation6 + $0x28] sm:$0xff]
    %v200 = vld [vmem:[#allocation6 + $0x30] sm:$0xff]
    %v201 = vld [vmem:[#allocation6 + $0x38] sm:$0xff]
    %v202 = vld [vmem:[#allocation6 + $0x40] sm:$0xff]
    %v203 = vld [vmem:[#allocation6 + $0x48] sm:$0xff]
    %v204 = vld [vmem:[#allocation6 + $0x50] sm:$0xff]
    %v205 = vld [vmem:[#allocation6 + $0x58] sm:$0xff]
    %v206 = vld [vmem:[#allocation6 + $0x60] sm:$0xff]
    %v207 = vld [vmem:[#allocation6 + $0x68] sm:$0xff]
    %v208 = vld [vmem:[#allocation6 + $0x70] sm:$0xff]
    %v209 = vld [vmem:[#allocation6 + $0x78] sm:$0xff]
    %v210 = vld [vmem:[#allocation6 + $0x80] sm:$0xff]
    %v211 = vld [vmem:[#allocation6 + $0x88] sm:$0xff]
    %v212 = vld [vmem:[#allocation6 + $0x90] sm:$0xff]
    %v213 = vld [vmem:[#allocation6 + $0x98] sm:$0xff]
    %v214 = vld [vmem:[#allocation6 + $0xa0] sm:$0xff]
    %v215 = vld [vmem:[#allocation6 + $0xa8] sm:$0xff]
    %v216 = vld [vmem:[#allocation6 + $0xb0] sm:$0xff]
    %v217 = vld [vmem:[#allocation6 + $0xb8] sm:$0xff]
    %v218 = vld [vmem:[#allocation6 + $0xc0] sm:$0xff]
    %v219 = vld [vmem:[#allocation6 + $0xc8] sm:$0xff]
    %v220 = vld [vmem:[#allocation6 + $0xd0] sm:$0xff]
    %v221 = vld [vmem:[#allocation6 + $0xd8] sm:$0xff]
    %v222 = vld [vmem:[#allocation6 + $0xe0] sm:$0xff]
    %v223 = vld [vmem:[#allocation6 + $0xe8] sm:$0xff]
    %v224 = vld [vmem:[#allocation6 + $0xf0] sm:$0xff]
    %v225 = vld [vmem:[#allocation6 + $0xf8] sm:$0xff]
    %v226 = vld [vmem:[#allocation6 + $0x100] sm:$0xff]
    %v227 = vld [vmem:[#allocation6 + $0x108] sm:$0xff]
    %v228 = vld [vmem:[#allocation6 + $0x110] sm:$0xff]
    %v229 = vld [vmem:[#allocation6 + $0x118] sm:$0xff]
    %v230 = vld [vmem:[#allocation6 + $0x120] sm:$0xff]
    %v231 = vld [vmem:[#allocation6 + $0x128] sm:$0xff]
    %v232 = vld [vmem:[#allocation6 + $0x130] sm:$0xff]
    %v233 = vld [vmem:[#allocation6 + $0x138] sm:$0xff]
    %v234 = vld [vmem:[#allocation6 + $0x140] sm:$0xff]
    %v235 = vld [vmem:[#allocation6 + $0x148] sm:$0xff]
    %v236 = vld [vmem:[#allocation6 + $0x150] sm:$0xff]
    %v237 = vld [vmem:[#allocation6 + $0x158] sm:$0xff]
    %v238 = vld [vmem:[#allocation6 + $0x160] sm:$0xff]
    %v239 = vld [vmem:[#allocation6 + $0x168] sm:$0xff]
    %v240 = vld [vmem:[#allocation6 + $0x170] sm:$0xff]
    %v241 = vld [vmem:[#allocation6 + $0x178] sm:$0xff]
    %v242 = vld [vmem:[%s5] sm:$0x7]
    %v243 = vld [vmem:[%s6] sm:$0x1]
    %v245 = vperm.slane %v243, 0
    %v247 = vld [vmem:[%s0] sm:$0xff]
    %v248 = vld [vmem:[%s0 + $0x8] sm:$0xff]
    %v249 = vld [vmem:[%s0 + $0x10] sm:$0xff]
    %v250 = vld [vmem:[%s0 + $0x18] sm:$0xff]
    %v251 = vld [vmem:[%s0 + $0x20] sm:$0xff]
    %v252 = vld [vmem:[%s0 + $0x28] sm:$0xff]
    %v253 = vld [vmem:[%s0 + $0x30] sm:$0xff]
    %v254 = vld [vmem:[%s0 + $0x38] sm:$0xff]
    %v256 = vperm.slane %v145, 0
    %vm258 = vcmask 64512
    %v260 = vsel %vm258, %v247, 0
    %v263 = vsel %vm258, %v248, 0
    %v266 = vsel %vm258, %v249, 0
    %v269 = vsel %vm258, %v250, 0
    %v272 = vsel %vm258, %v251, 0
    %v275 = vsel %vm258, %v252, 0
    %v278 = vsel %vm258, %v253, 0
    %v281 = vsel %vm258, %v254, 0
    %283 = vmatpush.msra.mxu0 0.0
    %284 = vmatpush.msra.mxu0 0.0
    %285 = vmatpush.msra.mxu0 0.0
    %286 = vmatpush.msra.mxu0 0.0
    %287 = vmatpush.msra.mxu0 0.0
    %288 = vmatpush.msra.mxu0 0.0
    %289 = vmatpush.msra.mxu0 0.0
    %290 = vmatpush.msra.mxu0 0.0
    %291 = vmatpush.msra.mxu0 0.0
    %292 = vmatpush.msra.mxu0 0.0
    %293 = vmatpush.msra.mxu0 0.0
    %294 = vmatpush.msra.mxu0 0.0
    %295 = vmatpush.msra.mxu0 0.0
    %296 = vmatpush.msra.mxu0 0.0
    %297 = vmatpush.msra.mxu0 0.0
    %298 = vmatpush.msra.mxu0 %v144
    %299 = vmatmul.f32.gmra.mxu0 %v260
    %v300 = vpop.f32.mrf.mxu0
    %v301 = vadd.f32 %v256, %v300
    %302 = vmatmul.f32.gmra.mxu0 %v263
    %v303 = vpop.f32.mrf.mxu0
    %v304 = vadd.f32 %v256, %v303
    %305 = vmatmul.f32.gmra.mxu0 %v266
    %v306 = vpop.f32.mrf.mxu0
    %v307 = vadd.f32 %v256, %v306
    %308 = vmatmul.f32.gmra.mxu0 %v269
    %v309 = vpop.f32.mrf.mxu0
    %v310 = vadd.f32 %v256, %v309
    %311 = vmatmul.f32.gmra.mxu0 %v272
    %v312 = vpop.f32.mrf.mxu0
    %v313 = vadd.f32 %v256, %v312
    %314 = vmatmul.f32.gmra.mxu0 %v275
    %v315 = vpop.f32.mrf.mxu0
    %v316 = vadd.f32 %v256, %v315
    %317 = vmatmul.f32.gmra.mxu0 %v278
    %v318 = vpop.f32.mrf.mxu0
    %v319 = vadd.f32 %v256, %v318
    %320 = vmatmul.f32.gmra.mxu0 %v281
    %v321 = vpop.f32.mrf.mxu0
    %v322 = vadd.f32 %v256, %v321
    %323 = vdwg.mxu0
    %v324 = vmax.f32 %v301, 0.0
    %v325 = vmax.f32 %v304, 0.0
    %v326 = vmax.f32 %v307, 0.0
    %v327 = vmax.f32 %v310, 0.0
    %v328 = vmax.f32 %v313, 0.0
    %v329 = vmax.f32 %v316, 0.0
    %v330 = vmax.f32 %v319, 0.0
    %v331 = vmax.f32 %v322, 0.0
    %v333 = vperm.slane %v242, 0
    %v334 = vperm.slane %v242, 1
    %v335 = vperm.slane %v242, 2
    %339 = vmatpush.msra.mxu0 %v191
    %340 = vmatpush.msra.mxu0 %v188
    %341 = vmatpush.msra.mxu0 %v185
    %342 = vmatpush.msra.mxu0 %v182
    %343 = vmatpush.msra.mxu0 %v179
    %344 = vmatpush.msra.mxu0 %v176
    %345 = vmatpush.msra.mxu0 %v173
    %346 = vmatpush.msra.mxu0 %v170
    %347 = vmatpush.msra.mxu0 %v167
    %348 = vmatpush.msra.mxu0 %v164
    %349 = vmatpush.msra.mxu0 %v161
    %350 = vmatpush.msra.mxu0 %v158
    %351 = vmatpush.msra.mxu0 %v155
    %352 = vmatpush.msra.mxu0 %v152
    %353 = vmatpush.msra.mxu0 %v149
    %354 = vmatpush.msra.mxu0 %v146
    %355 = vmatmul.f32.gmra.mxu0 %v324
    %v356 = vpop.f32.mrf.mxu0
    %v357 = vadd.f32 %v333, %v356
    %358 = vmatmul.f32.gmra.mxu0 %v325
    %v359 = vpop.f32.mrf.mxu0
    %v360 = vadd.f32 %v333, %v359
    %361 = vmatmul.f32.gmra.mxu0 %v326
    %v362 = vpop.f32.mrf.mxu0
    %v363 = vadd.f32 %v333, %v362
    %364 = vmatmul.f32.gmra.mxu0 %v327
    %v365 = vpop.f32.mrf.mxu0
    %v366 = vadd.f32 %v333, %v365
    %367 = vmatmul.f32.gmra.mxu0 %v328
    %v368 = vpop.f32.mrf.mxu0
    %v369 = vadd.f32 %v333, %v368
    %370 = vmatmul.f32.gmra.mxu0 %v329
    %v371 = vpop.f32.mrf.mxu0
    %v372 = vadd.f32 %v333, %v371
    %373 = vmatmul.f32.gmra.mxu0 %v330
    %v374 = vpop.f32.mrf.mxu0
    %v375 = vadd.f32 %v333, %v374
    %376 = vmatmul.f32.gmra.mxu0 %v331
    %v377 = vpop.f32.mrf.mxu0
    %v378 = vadd.f32 %v333, %v377
    %379 = vdwg.mxu0
    %380 = vmatpush.msra.mxu0 %v192
    %381 = vmatpush.msra.mxu0 %v189
    %382 = vmatpush.msra.mxu0 %v186
    %383 = vmatpush.msra.mxu0 %v183
    %384 = vmatpush.msra.mxu0 %v180
    %385 = vmatpush.msra.mxu0 %v177
    %386 = vmatpush.msra.mxu0 %v174
    %387 = vmatpush.msra.mxu0 %v171
    %388 = vmatpush.msra.mxu0 %v168
    %389 = vmatpush.msra.mxu0 %v165
    %390 = vmatpush.msra.mxu0 %v162
    %391 = vmatpush.msra.mxu0 %v159
    %392 = vmatpush.msra.mxu0 %v156
    %393 = vmatpush.msra.mxu0 %v153
    %394 = vmatpush.msra.mxu0 %v150
    %395 = vmatpush.msra.mxu0 %v147
    %396 = vmatmul.f32.gmra.mxu0 %v324
    %v397 = vpop.f32.mrf.mxu0
    %v398 = vadd.f32 %v334, %v397
    %399 = vmatmul.f32.gmra.mxu0 %v325
    %v400 = vpop.f32.mrf.mxu0
    %v401 = vadd.f32 %v334, %v400
    %402 = vmatmul.f32.gmra.mxu0 %v326
    %v403 = vpop.f32.mrf.mxu0
    %v404 = vadd.f32 %v334, %v403
    %405 = vmatmul.f32.gmra.mxu0 %v327
    %v406 = vpop.f32.mrf.mxu0
    %v407 = vadd.f32 %v334, %v406
    %408 = vmatmul.f32.gmra.mxu0 %v328
    %v409 = vpop.f32.mrf.mxu0
    %v410 = vadd.f32 %v334, %v409
    %411 = vmatmul.f32.gmra.mxu0 %v329
    %v412 = vpop.f32.mrf.mxu0
    %v413 = vadd.f32 %v334, %v412
    %414 = vmatmul.f32.gmra.mxu0 %v330
    %v415 = vpop.f32.mrf.mxu0
    %v416 = vadd.f32 %v334, %v415
    %417 = vmatmul.f32.gmra.mxu0 %v331
    %v418 = vpop.f32.mrf.mxu0
    %v419 = vadd.f32 %v334, %v418
    %420 = vdwg.mxu0
    %421 = vmatpush.msra.mxu0 %v193
    %422 = vmatpush.msra.mxu0 %v190
    %423 = vmatpush.msra.mxu0 %v187
    %424 = vmatpush.msra.mxu0 %v184
    %425 = vmatpush.msra.mxu0 %v181
    %426 = vmatpush.msra.mxu0 %v178
    %427 = vmatpush.msra.mxu0 %v175
    %428 = vmatpush.msra.mxu0 %v172
    %429 = vmatpush.msra.mxu0 %v169
    %430 = vmatpush.msra.mxu0 %v166
    %431 = vmatpush.msra.mxu0 %v163
    %432 = vmatpush.msra.mxu0 %v160
    %433 = vmatpush.msra.mxu0 %v157
    %434 = vmatpush.msra.mxu0 %v154
    %435 = vmatpush.msra.mxu0 %v151
    %436 = vmatpush.msra.mxu0 %v148
    %437 = vmatmul.f32.gmra.mxu0 %v324
    %v438 = vpop.f32.mrf.mxu0
    %v439 = vadd.f32 %v335, %v438
    %440 = vmatmul.f32.gmra.mxu0 %v325
    %v441 = vpop.f32.mrf.mxu0
    %v442 = vadd.f32 %v335, %v441
    %443 = vmatmul.f32.gmra.mxu0 %v326
    %v444 = vpop.f32.mrf.mxu0
    %v445 = vadd.f32 %v335, %v444
    %446 = vmatmul.f32.gmra.mxu0 %v327
    %v447 = vpop.f32.mrf.mxu0
    %v448 = vadd.f32 %v335, %v447
    %449 = vmatmul.f32.gmra.mxu0 %v328
    %v450 = vpop.f32.mrf.mxu0
    %v451 = vadd.f32 %v335, %v450
    %452 = vmatmul.f32.gmra.mxu0 %v329
    %v453 = vpop.f32.mrf.mxu0
    %v454 = vadd.f32 %v335, %v453
    %455 = vmatmul.f32.gmra.mxu0 %v330
    %v456 = vpop.f32.mrf.mxu0
    %v457 = vadd.f32 %v335, %v456
    %458 = vmatmul.f32.gmra.mxu0 %v331
    %v459 = vpop.f32.mrf.mxu0
    %v460 = vadd.f32 %v335, %v459
    %461 = vdwg.mxu0
    %462 = vst [vmem:[#allocation3] sm:$0xff] %v357
    %463 = vst [vmem:[#allocation3 + $0x8] sm:$0xff] %v398
    %464 = vst [vmem:[#allocation3 + $0x10] sm:$0xff] %v439
    %465 = vst [vmem:[#allocation3 + $0x18] sm:$0xff] %v360
    %466 = vst [vmem:[#allocation3 + $0x20] sm:$0xff] %v401
    %467 = vst [vmem:[#allocation3 + $0x28] sm:$0xff] %v442
    %468 = vst [vmem:[#allocation3 + $0x30] sm:$0xff] %v363
    %469 = vst [vmem:[#allocation3 + $0x38] sm:$0xff] %v404
    %470 = vst [vmem:[#allocation3 + $0x40] sm:$0xff] %v445
    %471 = vst [vmem:[#allocation3 + $0x48] sm:$0xff] %v366
    %472 = vst [vmem:[#allocation3 + $0x50] sm:$0xff] %v407
    %473 = vst [vmem:[#allocation3 + $0x58] sm:$0xff] %v448
    %474 = vst [vmem:[#allocation3 + $0x60] sm:$0xff] %v369
    %475 = vst [vmem:[#allocation3 + $0x68] sm:$0xff] %v410
    %476 = vst [vmem:[#allocation3 + $0x70] sm:$0xff] %v451
    %477 = vst [vmem:[#allocation3 + $0x78] sm:$0xff] %v372
    %478 = vst [vmem:[#allocation3 + $0x80] sm:$0xff] %v413
    %479 = vst [vmem:[#allocation3 + $0x88] sm:$0xff] %v454
    %480 = vst [vmem:[#allocation3 + $0x90] sm:$0xff] %v375
    %481 = vst [vmem:[#allocation3 + $0x98] sm:$0xff] %v416
    %482 = vst [vmem:[#allocation3 + $0xa0] sm:$0xff] %v457
    %483 = vst [vmem:[#allocation3 + $0xa8] sm:$0xff] %v378
    %484 = vst [vmem:[#allocation3 + $0xb0] sm:$0xff] %v419
    %485 = vst [vmem:[#allocation3 + $0xb8] sm:$0xff] %v460
    %s486 = smul.u32 0, 3
    %s487 = smul.addr %s486, 8
    %s488 = scalar_lea.vmem [#allocation3], %s487
    %v489 = vld [vmem:[%s488] sm:$0xff]
    %v490 = vld [vmem:[%s488 + $0x8] sm:$0xff]
    %v491 = vld [vmem:[%s488 + $0x10] sm:$0xff]
    %492 = vmatpush.msra.mxu0 %v239
    %493 = vmatpush.msra.mxu0 %v236
    %494 = vmatpush.msra.mxu0 %v233
    %495 = vmatpush.msra.mxu0 %v230
    %496 = vmatpush.msra.mxu0 %v227
    %497 = vmatpush.msra.mxu0 %v224
    %498 = vmatpush.msra.mxu0 %v221
    %499 = vmatpush.msra.mxu0 %v218
    %500 = vmatpush.msra.mxu0 %v215
    %501 = vmatpush.msra.mxu0 %v212
    %502 = vmatpush.msra.mxu0 %v209
    %503 = vmatpush.msra.mxu0 %v206
    %504 = vmatpush.msra.mxu0 %v203
    %505 = vmatpush.msra.mxu0 %v200
    %506 = vmatpush.msra.mxu0 %v197
    %507 = vmatpush.msra.mxu0 %v194
    %508 = vmatmul.f32.gmra.mxu0 0.0
    %v509 = vpop.f32.mrf.mxu0
    %v510 = vadd.f32 0.0, %v509
    %511 = vdwg.mxu0
    %512 = vmatpush.msra.mxu0 %v240
    %513 = vmatpush.msra.mxu0 %v237
    %514 = vmatpush.msra.mxu0 %v234
    %515 = vmatpush.msra.mxu0 %v231
    %516 = vmatpush.msra.mxu0 %v228
    %517 = vmatpush.msra.mxu0 %v225
    %518 = vmatpush.msra.mxu0 %v222
    %519 = vmatpush.msra.mxu0 %v219
    %520 = vmatpush.msra.mxu0 %v216
    %521 = vmatpush.msra.mxu0 %v213
    %522 = vmatpush.msra.mxu0 %v210
    %523 = vmatpush.msra.mxu0 %v207
    %524 = vmatpush.msra.mxu0 %v204
    %525 = vmatpush.msra.mxu0 %v201
    %526 = vmatpush.msra.mxu0 %v198
    %527 = vmatpush.msra.mxu0 %v195
    %528 = vmatmul.f32.gmra.mxu0 0.0
    %v529 = vpop.f32.mrf.mxu0
    %v530 = vadd.f32 0.0, %v529
    %531 = vdwg.mxu0
    %532 = vmatpush.msra.mxu0 %v241
    %533 = vmatpush.msra.mxu0 %v238
    %534 = vmatpush.msra.mxu0 %v235
    %535 = vmatpush.msra.mxu0 %v232
    %536 = vmatpush.msra.mxu0 %v229
    %537 = vmatpush.msra.mxu0 %v226
    %538 = vmatpush.msra.mxu0 %v223
    %539 = vmatpush.msra.mxu0 %v220
    %540 = vmatpush.msra.mxu0 %v217
    %541 = vmatpush.msra.mxu0 %v214
    %542 = vmatpush.msra.mxu0 %v211
    %543 = vmatpush.msra.mxu0 %v208
    %544 = vmatpush.msra.mxu0 %v205
    %545 = vmatpush.msra.mxu0 %v202
    %546 = vmatpush.msra.mxu0 %v199
    %547 = vmatpush.msra.mxu0 %v196
    %548 = vmatmul.f32.gmra.mxu0 0.0
    %v549 = vpop.f32.mrf.mxu0
    %v550 = vadd.f32 0.0, %v549
    %551 = vdwg.mxu0
    %v552 = vadd.f32 %v489, %v510
    %v553 = vadd.f32 %v490, %v530
    %v554 = vxor.u32 %v552, 2147483648
    %v555 = vxor.u32 %v553, 2147483648
    %v556 = vmul.f32 %v554, 1.442695
    %v557 = vpow.pop %v556
    %v558 = vmul.f32 %v555, 1.442695
    %v559 = vpow.pop %v558
    %v560 = vadd.f32 %v557, 1.0
    %v561 = vadd.f32 %v559, 1.0
    %v562 = vrcp.pop %v560
    %v563 = vmul.f32 %v560, %v562
    %v564 = vsub.f32 1.0, %v563
    %v565 = vmul.f32 %v562, %v564
    %v566 = vadd.f32 %v562, %v565
    %vm567 = vweird.f32 %v560
    %vm568 = vweird.f32 %v562
    %vm569 = vmor %vm567, %vm568
    %v570 = vsel %vm569, %v562, %v566
    %v571 = vand.u32 2147483647, %v560
    %vm572 = vcmp.eq.f32.partialorder %v571, 8.507059e+37
    %v573 = vand.u32 %v560, 2147483648
    %v574 = vor.u32 1.1754944e-38, %v573
    %v575 = vsel %vm572, %v574, %v570
    %v576 = vmul.f32 1.0, %v575
    %v577 = vrcp.pop %v561
    %v578 = vmul.f32 %v561, %v577
    %v579 = vsub.f32 1.0, %v578
    %v580 = vmul.f32 %v577, %v579
    %v581 = vadd.f32 %v577, %v580
    %vm582 = vweird.f32 %v561
    %vm583 = vweird.f32 %v577
    %vm584 = vmor %vm582, %vm583
    %v585 = vsel %vm584, %v577, %v581
    %v586 = vand.u32 2147483647, %v561
    %vm587 = vcmp.eq.f32.partialorder %v586, 8.507059e+37
    %v588 = vand.u32 %v561, 2147483648
    %v589 = vor.u32 1.1754944e-38, %v588
    %v590 = vsel %vm587, %v589, %v585
    %v591 = vmul.f32 1.0, %v590
    %v592 = vadd.f32 %v550, %v245
    %v593 = vmul.f32 %v576, %v592
    %v594 = vadd.f32 %v491, %v593
    %v595 = vtanh.pop %v594
    %v596 = vsub.f32 0.0, %v595
    %v597 = vmul.f32 %v591, %v596
    %v598 = vadd.f32 %v595, %v597
    %599 = vst [vmem:[#allocation2] sm:$0xff] %v598
    %s600 = smul.u32 1, 3
    %s601 = smul.addr %s600, 8
    %s602 = scalar_lea.vmem [#allocation3], %s601
    %v603 = vld [vmem:[%s602] sm:$0xff]
    %v604 = vld [vmem:[%s602 + $0x8] sm:$0xff]
    %v605 = vld [vmem:[%s602 + $0x10] sm:$0xff]
    %606 = vmatpush.msra.mxu0 %v239
    %607 = vmatpush.msra.mxu0 %v236
    %608 = vmatpush.msra.mxu0 %v233
    %609 = vmatpush.msra.mxu0 %v230
    %610 = vmatpush.msra.mxu0 %v227
    %611 = vmatpush.msra.mxu0 %v224
    %612 = vmatpush.msra.mxu0 %v221
    %613 = vmatpush.msra.mxu0 %v218
    %614 = vmatpush.msra.mxu0 %v215
    %615 = vmatpush.msra.mxu0 %v212
    %616 = vmatpush.msra.mxu0 %v209
    %617 = vmatpush.msra.mxu0 %v206
    %618 = vmatpush.msra.mxu0 %v203
    %619 = vmatpush.msra.mxu0 %v200
    %620 = vmatpush.msra.mxu0 %v197
    %621 = vmatpush.msra.mxu0 %v194
    %622 = vmatmul.f32.gmra.mxu0 %v598
    %v623 = vpop.f32.mrf.mxu0
    %v624 = vadd.f32 0.0, %v623
    %625 = vdwg.mxu0
    %626 = vmatpush.msra.mxu0 %v240
    %627 = vmatpush.msra.mxu0 %v237
    %628 = vmatpush.msra.mxu0 %v234
    %629 = vmatpush.msra.mxu0 %v231
    %630 = vmatpush.msra.mxu0 %v228
    %631 = vmatpush.msra.mxu0 %v225
    %632 = vmatpush.msra.mxu0 %v222
    %633 = vmatpush.msra.mxu0 %v219
    %634 = vmatpush.msra.mxu0 %v216
    %635 = vmatpush.msra.mxu0 %v213
    %636 = vmatpush.msra.mxu0 %v210
    %637 = vmatpush.msra.mxu0 %v207
    %638 = vmatpush.msra.mxu0 %v204
    %639 = vmatpush.msra.mxu0 %v201
    %640 = vmatpush.msra.mxu0 %v198
    %641 = vmatpush.msra.mxu0 %v195
    %642 = vmatmul.f32.gmra.mxu0 %v598
    %v643 = vpop.f32.mrf.mxu0
    %v644 = vadd.f32 0.0, %v643
    %645 = vdwg.mxu0
    %646 = vmatpush.msra.mxu0 %v241
    %647 = vmatpush.msra.mxu0 %v238
    %648 = vmatpush.msra.mxu0 %v235
    %649 = vmatpush.msra.mxu0 %v232
    %650 = vmatpush.msra.mxu0 %v229
    %651 = vmatpush.msra.mxu0 %v226
    %652 = vmatpush.msra.mxu0 %v223
    %653 = vmatpush.msra.mxu0 %v220
    %654 = vmatpush.msra.mxu0 %v217
    %655 = vmatpush.msra.mxu0 %v214
    %656 = vmatpush.msra.mxu0 %v211
    %657 = vmatpush.msra.mxu0 %v208
    %658 = vmatpush.msra.mxu0 %v205
    %659 = vmatpush.msra.mxu0 %v202
    %660 = vmatpush.msra.mxu0 %v199
    %661 = vmatpush.msra.mxu0 %v196
    %662 = vmatmul.f32.gmra.mxu0 %v598
    %v663 = vpop.f32.mrf.mxu0
    %v664 = vadd.f32 0.0, %v663
    %665 = vdwg.mxu0
    %v666 = vadd.f32 %v603, %v624
    %v667 = vadd.f32 %v604, %v644
    %v668 = vxor.u32 %v666, 2147483648
    %v669 = vxor.u32 %v667, 2147483648
    %v670 = vmul.f32 %v668, 1.442695
    %v671 = vpow.pop %v670
    %v672 = vmul.f32 %v669, 1.442695
    %v673 = vpow.pop %v672
    %v674 = vadd.f32 %v671, 1.0
    %v675 = vadd.f32 %v673, 1.0
    %v676 = vrcp.pop %v674
    %v677 = vmul.f32 %v674, %v676
    %v678 = vsub.f32 1.0, %v677
    %v679 = vmul.f32 %v676, %v678
    %v680 = vadd.f32 %v676, %v679
    %vm681 = vweird.f32 %v674
    %vm682 = vweird.f32 %v676
    %vm683 = vmor %vm681, %vm682
    %v684 = vsel %vm683, %v676, %v680
    %v685 = vand.u32 2147483647, %v674
    %vm686 = vcmp.eq.f32.partialorder %v685, 8.507059e+37
    %v687 = vand.u32 %v674, 2147483648
    %v688 = vor.u32 1.1754944e-38, %v687
    %v689 = vsel %vm686, %v688, %v684
    %v690 = vmul.f32 1.0, %v689
    %v691 = vrcp.pop %v675
    %v692 = vmul.f32 %v675, %v691
    %v693 = vsub.f32 1.0, %v692
    %v694 = vmul.f32 %v691, %v693
    %v695 = vadd.f32 %v691, %v694
    %vm696 = vweird.f32 %v675
    %vm697 = vweird.f32 %v691
    %vm698 = vmor %vm696, %vm697
    %v699 = vsel %vm698, %v691, %v695
    %v700 = vand.u32 2147483647, %v675
    %vm701 = vcmp.eq.f32.partialorder %v700, 8.507059e+37
    %v702 = vand.u32 %v675, 2147483648
    %v703 = vor.u32 1.1754944e-38, %v702
    %v704 = vsel %vm701, %v703, %v699
    %v705 = vmul.f32 1.0, %v704
    %v706 = vadd.f32 %v664, %v245
    %v707 = vmul.f32 %v690, %v706
    %v708 = vadd.f32 %v605, %v707
    %v709 = vtanh.pop %v708
    %v710 = vsub.f32 %v598, %v709
    %v711 = vmul.f32 %v705, %v710
    %v712 = vadd.f32 %v709, %v711
    %s713 = scalar_lea.vmem [#allocation2], 8
    %714 = vst [vmem:[%s713] sm:$0xff] %v712
    %s715 = smul.u32 2, 3
    %s716 = smul.addr %s715, 8
    %s717 = scalar_lea.vmem [#allocation3], %s716
    %v718 = vld [vmem:[%s717] sm:$0xff]
    %v719 = vld [vmem:[%s717 + $0x8] sm:$0xff]
    %v720 = vld [vmem:[%s717 + $0x10] sm:$0xff]
    %721 = vmatpush.msra.mxu0 %v239
    %722 = vmatpush.msra.mxu0 %v236
    %723 = vmatpush.msra.mxu0 %v233
    %724 = vmatpush.msra.mxu0 %v230
    %725 = vmatpush.msra.mxu0 %v227
    %726 = vmatpush.msra.mxu0 %v224
    %727 = vmatpush.msra.mxu0 %v221
    %728 = vmatpush.msra.mxu0 %v218
    %729 = vmatpush.msra.mxu0 %v215
    %730 = vmatpush.msra.mxu0 %v212
    %731 = vmatpush.msra.mxu0 %v209
    %732 = vmatpush.msra.mxu0 %v206
    %733 = vmatpush.msra.mxu0 %v203
    %734 = vmatpush.msra.mxu0 %v200
    %735 = vmatpush.msra.mxu0 %v197
    %736 = vmatpush.msra.mxu0 %v194
    %737 = vmatmul.f32.gmra.mxu0 %v712
    %v738 = vpop.f32.mrf.mxu0
    %v739 = vadd.f32 0.0, %v738
    %740 = vdwg.mxu0
    %741 = vmatpush.msra.mxu0 %v240
    %742 = vmatpush.msra.mxu0 %v237
    %743 = vmatpush.msra.mxu0 %v234
    %744 = vmatpush.msra.mxu0 %v231
    %745 = vmatpush.msra.mxu0 %v228
    %746 = vmatpush.msra.mxu0 %v225
    %747 = vmatpush.msra.mxu0 %v222
    %748 = vmatpush.msra.mxu0 %v219
    %749 = vmatpush.msra.mxu0 %v216
    %750 = vmatpush.msra.mxu0 %v213
    %751 = vmatpush.msra.mxu0 %v210
    %752 = vmatpush.msra.mxu0 %v207
    %753 = vmatpush.msra.mxu0 %v204
    %754 = vmatpush.msra.mxu0 %v201
    %755 = vmatpush.msra.mxu0 %v198
    %756 = vmatpush.msra.mxu0 %v195
    %757 = vmatmul.f32.gmra.mxu0 %v712
    %v758 = vpop.f32.mrf.mxu0
    %v759 = vadd.f32 0.0, %v758
    %760 = vdwg.mxu0
    %761 = vmatpush.msra.mxu0 %v241
    %762 = vmatpush.msra.mxu0 %v238
    %763 = vmatpush.msra.mxu0 %v235
    %764 = vmatpush.msra.mxu0 %v232
    %765 = vmatpush.msra.mxu0 %v229
    %766 = vmatpush.msra.mxu0 %v226
    %767 = vmatpush.msra.mxu0 %v223
    %768 = vmatpush.msra.mxu0 %v220
    %769 = vmatpush.msra.mxu0 %v217
    %770 = vmatpush.msra.mxu0 %v214
    %771 = vmatpush.msra.mxu0 %v211
    %772 = vmatpush.msra.mxu0 %v208
    %773 = vmatpush.msra.mxu0 %v205
    %774 = vmatpush.msra.mxu0 %v202
    %775 = vmatpush.msra.mxu0 %v199
    %776 = vmatpush.msra.mxu0 %v196
    %777 = vmatmul.f32.gmra.mxu0 %v712
    %v778 = vpop.f32.mrf.mxu0
    %v779 = vadd.f32 0.0, %v778
    %780 = vdwg.mxu0
    %v781 = vadd.f32 %v718, %v739
    %v782 = vadd.f32 %v719, %v759
    %v783 = vxor.u32 %v781, 2147483648
    %v784 = vxor.u32 %v782, 2147483648
    %v785 = vmul.f32 %v783, 1.442695
    %v786 = vpow.pop %v785
    %v787 = vmul.f32 %v784, 1.442695
    %v788 = vpow.pop %v787
    %v789 = vadd.f32 %v786, 1.0
    %v790 = vadd.f32 %v788, 1.0
    %v791 = vrcp.pop %v789
    %v792 = vmul.f32 %v789, %v791
    %v793 = vsub.f32 1.0, %v792
    %v794 = vmul.f32 %v791, %v793
    %v795 = vadd.f32 %v791, %v794
    %vm796 = vweird.f32 %v789
    %vm797 = vweird.f32 %v791
    %vm798 = vmor %vm796, %vm797
    %v799 = vsel %vm798, %v791, %v795
    %v800 = vand.u32 2147483647, %v789
    %vm801 = vcmp.eq.f32.partialorder %v800, 8.507059e+37
    %v802 = vand.u32 %v789, 2147483648
    %v803 = vor.u32 1.1754944e-38, %v802
    %v804 = vsel %vm801, %v803, %v799
    %v805 = vmul.f32 1.0, %v804
    %v806 = vrcp.pop %v790
    %v807 = vmul.f32 %v790, %v806
    %v808 = vsub.f32 1.0, %v807
    %v809 = vmul.f32 %v806, %v808
    %v810 = vadd.f32 %v806, %v809
    %vm811 = vweird.f32 %v790
    %vm812 = vweird.f32 %v806
    %vm813 = vmor %vm811, %vm812
    %v814 = vsel %vm813, %v806, %v810
    %v815 = vand.u32 2147483647, %v790
    %vm816 = vcmp.eq.f32.partialorder %v815, 8.507059e+37
    %v817 = vand.u32 %v790, 2147483648
    %v818 = vor.u32 1.1754944e-38, %v817
    %v819 = vsel %vm816, %v818, %v814
    %v820 = vmul.f32 1.0, %v819
    %v821 = vadd.f32 %v779, %v245
    %v822 = vmul.f32 %v805, %v821
    %v823 = vadd.f32 %v720, %v822
    %v824 = vtanh.pop %v823
    %v825 = vsub.f32 %v712, %v824
    %v826 = vmul.f32 %v820, %v825
    %v827 = vadd.f32 %v824, %v826
    %s828 = scalar_lea.vmem [#allocation2], 16
    %829 = vst [vmem:[%s828] sm:$0xff] %v827
    %s830 = smul.u32 3, 3
    %s831 = smul.addr %s830, 8
    %s832 = scalar_lea.vmem [#allocation3], %s831
    %v833 = vld [vmem:[%s832] sm:$0xff]
    %v834 = vld [vmem:[%s832 + $0x8] sm:$0xff]
    %v835 = vld [vmem:[%s832 + $0x10] sm:$0xff]
    %836 = vmatpush.msra.mxu0 %v239
    %837 = vmatpush.msra.mxu0 %v236
    %838 = vmatpush.msra.mxu0 %v233
    %839 = vmatpush.msra.mxu0 %v230
    %840 = vmatpush.msra.mxu0 %v227
    %841 = vmatpush.msra.mxu0 %v224
    %842 = vmatpush.msra.mxu0 %v221
    %843 = vmatpush.msra.mxu0 %v218
    %844 = vmatpush.msra.mxu0 %v215
    %845 = vmatpush.msra.mxu0 %v212
    %846 = vmatpush.msra.mxu0 %v209
    %847 = vmatpush.msra.mxu0 %v206
    %848 = vmatpush.msra.mxu0 %v203
    %849 = vmatpush.msra.mxu0 %v200
    %850 = vmatpush.msra.mxu0 %v197
    %851 = vmatpush.msra.mxu0 %v194
    %852 = vmatmul.f32.gmra.mxu0 %v827
    %v853 = vpop.f32.mrf.mxu0
    %v854 = vadd.f32 0.0, %v853
    %855 = vdwg.mxu0
    %856 = vmatpush.msra.mxu0 %v240
    %857 = vmatpush.msra.mxu0 %v237
    %858 = vmatpush.msra.mxu0 %v234
    %859 = vmatpush.msra.mxu0 %v231
    %860 = vmatpush.msra.mxu0 %v228
    %861 = vmatpush.msra.mxu0 %v225
    %862 = vmatpush.msra.mxu0 %v222
    %863 = vmatpush.msra.mxu0 %v219
    %864 = vmatpush.msra.mxu0 %v216
    %865 = vmatpush.msra.mxu0 %v213
    %866 = vmatpush.msra.mxu0 %v210
    %867 = vmatpush.msra.mxu0 %v207
    %868 = vmatpush.msra.mxu0 %v204
    %869 = vmatpush.msra.mxu0 %v201
    %870 = vmatpush.msra.mxu0 %v198
    %871 = vmatpush.msra.mxu0 %v195
    %872 = vmatmul.f32.gmra.mxu0 %v827
    %v873 = vpop.f32.mrf.mxu0
    %v874 = vadd.f32 0.0, %v873
    %875 = vdwg.mxu0
    %876 = vmatpush.msra.mxu0 %v241
    %877 = vmatpush.msra.mxu0 %v238
    %878 = vmatpush.msra.mxu0 %v235
    %879 = vmatpush.msra.mxu0 %v232
    %880 = vmatpush.msra.mxu0 %v229
    %881 = vmatpush.msra.mxu0 %v226
    %882 = vmatpush.msra.mxu0 %v223
    %883 = vmatpush.msra.mxu0 %v220
    %884 = vmatpush.msra.mxu0 %v217
    %885 = vmatpush.msra.mxu0 %v214
    %886 = vmatpush.msra.mxu0 %v211
    %887 = vmatpush.msra.mxu0 %v208
    %888 = vmatpush.msra.mxu0 %v205
    %889 = vmatpush.msra.mxu0 %v202
    %890 = vmatpush.msra.mxu0 %v199
    %891 = vmatpush.msra.mxu0 %v196
    %892 = vmatmul.f32.gmra.mxu0 %v827
    %v893 = vpop.f32.mrf.mxu0
    %v894 = vadd.f32 0.0, %v893
    %895 = vdwg.mxu0
    %v896 = vadd.f32 %v833, %v854
    %v897 = vadd.f32 %v834, %v874
    %v898 = vxor.u32 %v896, 2147483648
    %v899 = vxor.u32 %v897, 2147483648
    %v900 = vmul.f32 %v898, 1.442695
    %v901 = vpow.pop %v900
    %v902 = vmul.f32 %v899, 1.442695
    %v903 = vpow.pop %v902
    %v904 = vadd.f32 %v901, 1.0
    %v905 = vadd.f32 %v903, 1.0
    %v906 = vrcp.pop %v904
    %v907 = vmul.f32 %v904, %v906
    %v908 = vsub.f32 1.0, %v907
    %v909 = vmul.f32 %v906, %v908
    %v910 = vadd.f32 %v906, %v909
    %vm911 = vweird.f32 %v904
    %vm912 = vweird.f32 %v906
    %vm913 = vmor %vm911, %vm912
    %v914 = vsel %vm913, %v906, %v910
    %v915 = vand.u32 2147483647, %v904
    %vm916 = vcmp.eq.f32.partialorder %v915, 8.507059e+37
    %v917 = vand.u32 %v904, 2147483648
    %v918 = vor.u32 1.1754944e-38, %v917
    %v919 = vsel %vm916, %v918, %v914
    %v920 = vmul.f32 1.0, %v919
    %v921 = vrcp.pop %v905
    %v922 = vmul.f32 %v905, %v921
    %v923 = vsub.f32 1.0, %v922
    %v924 = vmul.f32 %v921, %v923
    %v925 = vadd.f32 %v921, %v924
    %vm926 = vweird.f32 %v905
    %vm927 = vweird.f32 %v921
    %vm928 = vmor %vm926, %vm927
    %v929 = vsel %vm928, %v921, %v925
    %v930 = vand.u32 2147483647, %v905
    %vm931 = vcmp.eq.f32.partialorder %v930, 8.507059e+37
    %v932 = vand.u32 %v905, 2147483648
    %v933 = vor.u32 1.1754944e-38, %v932
    %v934 = vsel %vm931, %v933, %v929
    %v935 = vmul.f32 1.0, %v934
    %v936 = vadd.f32 %v894, %v245
    %v937 = vmul.f32 %v920, %v936
    %v938 = vadd.f32 %v835, %v937
    %v939 = vtanh.pop %v938
    %v940 = vsub.f32 %v827, %v939
    %v941 = vmul.f32 %v935, %v940
    %v942 = vadd.f32 %v939, %v941
    %s943 = scalar_lea.vmem [#allocation2], 24
    %944 = vst [vmem:[%s943] sm:$0xff] %v942
    %s945 = smul.u32 4, 3
    %s946 = smul.addr %s945, 8
    %s947 = scalar_lea.vmem [#allocation3], %s946
    %v948 = vld [vmem:[%s947] sm:$0xff]
    %v949 = vld [vmem:[%s947 + $0x8] sm:$0xff]
    %v950 = vld [vmem:[%s947 + $0x10] sm:$0xff]
    %951 = vmatpush.msra.mxu0 %v239
    %952 = vmatpush.msra.mxu0 %v236
    %953 = vmatpush.msra.mxu0 %v233
    %954 = vmatpush.msra.mxu0 %v230
    %955 = vmatpush.msra.mxu0 %v227
    %956 = vmatpush.msra.mxu0 %v224
    %957 = vmatpush.msra.mxu0 %v221
    %958 = vmatpush.msra.mxu0 %v218
    %959 = vmatpush.msra.mxu0 %v215
    %960 = vmatpush.msra.mxu0 %v212
    %961 = vmatpush.msra.mxu0 %v209
    %962 = vmatpush.msra.mxu0 %v206
    %963 = vmatpush.msra.mxu0 %v203
    %964 = vmatpush.msra.mxu0 %v200
    %965 = vmatpush.msra.mxu0 %v197
    %966 = vmatpush.msra.mxu0 %v194
    %967 = vmatmul.f32.gmra.mxu0 %v942
    %v968 = vpop.f32.mrf.mxu0
    %v969 = vadd.f32 0.0, %v968
    %970 = vdwg.mxu0
    %971 = vmatpush.msra.mxu0 %v240
    %972 = vmatpush.msra.mxu0 %v237
    %973 = vmatpush.msra.mxu0 %v234
    %974 = vmatpush.msra.mxu0 %v231
    %975 = vmatpush.msra.mxu0 %v228
    %976 = vmatpush.msra.mxu0 %v225
    %977 = vmatpush.msra.mxu0 %v222
    %978 = vmatpush.msra.mxu0 %v219
    %979 = vmatpush.msra.mxu0 %v216
    %980 = vmatpush.msra.mxu0 %v213
    %981 = vmatpush.msra.mxu0 %v210
    %982 = vmatpush.msra.mxu0 %v207
    %983 = vmatpush.msra.mxu0 %v204
    %984 = vmatpush.msra.mxu0 %v201
    %985 = vmatpush.msra.mxu0 %v198
    %986 = vmatpush.msra.mxu0 %v195
    %987 = vmatmul.f32.gmra.mxu0 %v942
    %v988 = vpop.f32.mrf.mxu0
    %v989 = vadd.f32 0.0, %v988
    %990 = vdwg.mxu0
    %991 = vmatpush.msra.mxu0 %v241
    %992 = vmatpush.msra.mxu0 %v238
    %993 = vmatpush.msra.mxu0 %v235
    %994 = vmatpush.msra.mxu0 %v232
    %995 = vmatpush.msra.mxu0 %v229
    %996 = vmatpush.msra.mxu0 %v226
    %997 = vmatpush.msra.mxu0 %v223
    %998 = vmatpush.msra.mxu0 %v220
    %999 = vmatpush.msra.mxu0 %v217
    %1000 = vmatpush.msra.mxu0 %v214
    %1001 = vmatpush.msra.mxu0 %v211
    %1002 = vmatpush.msra.mxu0 %v208
    %1003 = vmatpush.msra.mxu0 %v205
    %1004 = vmatpush.msra.mxu0 %v202
    %1005 = vmatpush.msra.mxu0 %v199
    %1006 = vmatpush.msra.mxu0 %v196
    %1007 = vmatmul.f32.gmra.mxu0 %v942
    %v1008 = vpop.f32.mrf.mxu0
    %v1009 = vadd.f32 0.0, %v1008
    %1010 = vdwg.mxu0
    %v1011 = vadd.f32 %v948, %v969
    %v1012 = vadd.f32 %v949, %v989
    %v1013 = vxor.u32 %v1011, 2147483648
    %v1014 = vxor.u32 %v1012, 2147483648
    %v1015 = vmul.f32 %v1013, 1.442695
    %v1016 = vpow.pop %v1015
    %v1017 = vmul.f32 %v1014, 1.442695
    %v1018 = vpow.pop %v1017
    %v1019 = vadd.f32 %v1016, 1.0
    %v1020 = vadd.f32 %v1018, 1.0
    %v1021 = vrcp.pop %v1019
    %v1022 = vmul.f32 %v1019, %v1021
    %v1023 = vsub.f32 1.0, %v1022
    %v1024 = vmul.f32 %v1021, %v1023
    %v1025 = vadd.f32 %v1021, %v1024
    %vm1026 = vweird.f32 %v1019
    %vm1027 = vweird.f32 %v1021
    %vm1028 = vmor %vm1026, %vm1027
    %v1029 = vsel %vm1028, %v1021, %v1025
    %v1030 = vand.u32 2147483647, %v1019
    %vm1031 = vcmp.eq.f32.partialorder %v1030, 8.507059e+37
    %v1032 = vand.u32 %v1019, 2147483648
    %v1033 = vor.u32 1.1754944e-38, %v1032
    %v1034 = vsel %vm1031, %v1033, %v1029
    %v1035 = vmul.f32 1.0, %v1034
    %v1036 = vrcp.pop %v1020
    %v1037 = vmul.f32 %v1020, %v1036
    %v1038 = vsub.f32 1.0, %v1037
    %v1039 = vmul.f32 %v1036, %v1038
    %v1040 = vadd.f32 %v1036, %v1039
    %vm1041 = vweird.f32 %v1020
    %vm1042 = vweird.f32 %v1036
    %vm1043 = vmor %vm1041, %vm1042
    %v1044 = vsel %vm1043, %v1036, %v1040
    %v1045 = vand.u32 2147483647, %v1020
    %vm1046 = vcmp.eq.f32.partialorder %v1045, 8.507059e+37
    %v1047 = vand.u32 %v1020, 2147483648
    %v1048 = vor.u32 1.1754944e-38, %v1047
    %v1049 = vsel %vm1046, %v1048, %v1044
    %v1050 = vmul.f32 1.0, %v1049
    %v1051 = vadd.f32 %v1009, %v245
    %v1052 = vmul.f32 %v1035, %v1051
    %v1053 = vadd.f32 %v950, %v1052
    %v1054 = vtanh.pop %v1053
    %v1055 = vsub.f32 %v942, %v1054
    %v1056 = vmul.f32 %v1050, %v1055
    %v1057 = vadd.f32 %v1054, %v1056
    %s1058 = scalar_lea.vmem [#allocation2], 32
    %1059 = vst [vmem:[%s1058] sm:$0xff] %v1057
    %s1060 = smul.u32 5, 3
    %s1061 = smul.addr %s1060, 8
    %s1062 = scalar_lea.vmem [#allocation3], %s1061
    %v1063 = vld [vmem:[%s1062] sm:$0xff]
    %v1064 = vld [vmem:[%s1062 + $0x8] sm:$0xff]
    %v1065 = vld [vmem:[%s1062 + $0x10] sm:$0xff]
    %1066 = vmatpush.msra.mxu0 %v239
    %1067 = vmatpush.msra.mxu0 %v236
    %1068 = vmatpush.msra.mxu0 %v233
    %1069 = vmatpush.msra.mxu0 %v230
    %1070 = vmatpush.msra.mxu0 %v227
    %1071 = vmatpush.msra.mxu0 %v224
    %1072 = vmatpush.msra.mxu0 %v221
    %1073 = vmatpush.msra.mxu0 %v218
    %1074 = vmatpush.msra.mxu0 %v215
    %1075 = vmatpush.msra.mxu0 %v212
    %1076 = vmatpush.msra.mxu0 %v209
    %1077 = vmatpush.msra.mxu0 %v206
    %1078 = vmatpush.msra.mxu0 %v203
    %1079 = vmatpush.msra.mxu0 %v200
    %1080 = vmatpush.msra.mxu0 %v197
    %1081 = vmatpush.msra.mxu0 %v194
    %1082 = vmatmul.f32.gmra.mxu0 %v1057
    %v1083 = vpop.f32.mrf.mxu0
    %v1084 = vadd.f32 0.0, %v1083
    %1085 = vdwg.mxu0
    %1086 = vmatpush.msra.mxu0 %v240
    %1087 = vmatpush.msra.mxu0 %v237
    %1088 = vmatpush.msra.mxu0 %v234
    %1089 = vmatpush.msra.mxu0 %v231
    %1090 = vmatpush.msra.mxu0 %v228
    %1091 = vmatpush.msra.mxu0 %v225
    %1092 = vmatpush.msra.mxu0 %v222
    %1093 = vmatpush.msra.mxu0 %v219
    %1094 = vmatpush.msra.mxu0 %v216
    %1095 = vmatpush.msra.mxu0 %v213
    %1096 = vmatpush.msra.mxu0 %v210
    %1097 = vmatpush.msra.mxu0 %v207
    %1098 = vmatpush.msra.mxu0 %v204
    %1099 = vmatpush.msra.mxu0 %v201
    %1100 = vmatpush.msra.mxu0 %v198
    %1101 = vmatpush.msra.mxu0 %v195
    %1102 = vmatmul.f32.gmra.mxu0 %v1057
    %v1103 = vpop.f32.mrf.mxu0
    %v1104 = vadd.f32 0.0, %v1103
    %1105 = vdwg.mxu0
    %1106 = vmatpush.msra.mxu0 %v241
    %1107 = vmatpush.msra.mxu0 %v238
    %1108 = vmatpush.msra.mxu0 %v235
    %1109 = vmatpush.msra.mxu0 %v232
    %1110 = vmatpush.msra.mxu0 %v229
    %1111 = vmatpush.msra.mxu0 %v226
    %1112 = vmatpush.msra.mxu0 %v223
    %1113 = vmatpush.msra.mxu0 %v220
    %1114 = vmatpush.msra.mxu0 %v217
    %1115 = vmatpush.msra.mxu0 %v214
    %1116 = vmatpush.msra.mxu0 %v211
    %1117 = vmatpush.msra.mxu0 %v208
    %1118 = vmatpush.msra.mxu0 %v205
    %1119 = vmatpush.msra.mxu0 %v202
    %1120 = vmatpush.msra.mxu0 %v199
    %1121 = vmatpush.msra.mxu0 %v196
    %1122 = vmatmul.f32.gmra.mxu0 %v1057
    %v1123 = vpop.f32.mrf.mxu0
    %v1124 = vadd.f32 0.0, %v1123
    %1125 = vdwg.mxu0
    %v1126 = vadd.f32 %v1063, %v1084
    %v1127 = vadd.f32 %v1064, %v1104
    %v1128 = vxor.u32 %v1126, 2147483648
    %v1129 = vxor.u32 %v1127, 2147483648
    %v1130 = vmul.f32 %v1128, 1.442695
    %v1131 = vpow.pop %v1130
    %v1132 = vmul.f32 %v1129, 1.442695
    %v1133 = vpow.pop %v1132
    %v1134 = vadd.f32 %v1131, 1.0
    %v1135 = vadd.f32 %v1133, 1.0
    %v1136 = vrcp.pop %v1134
    %v1137 = vmul.f32 %v1134, %v1136
    %v1138 = vsub.f32 1.0, %v1137
    %v1139 = vmul.f32 %v1136, %v1138
    %v1140 = vadd.f32 %v1136, %v1139
    %vm1141 = vweird.f32 %v1134
    %vm1142 = vweird.f32 %v1136
    %vm1143 = vmor %vm1141, %vm1142
    %v1144 = vsel %vm1143, %v1136, %v1140
    %v1145 = vand.u32 2147483647, %v1134
    %vm1146 = vcmp.eq.f32.partialorder %v1145, 8.507059e+37
    %v1147 = vand.u32 %v1134, 2147483648
    %v1148 = vor.u32 1.1754944e-38, %v1147
    %v1149 = vsel %vm1146, %v1148, %v1144
    %v1150 = vmul.f32 1.0, %v1149
    %v1151 = vrcp.pop %v1135
    %v1152 = vmul.f32 %v1135, %v1151
    %v1153 = vsub.f32 1.0, %v1152
    %v1154 = vmul.f32 %v1151, %v1153
    %v1155 = vadd.f32 %v1151, %v1154
    %vm1156 = vweird.f32 %v1135
    %vm1157 = vweird.f32 %v1151
    %vm1158 = vmor %vm1156, %vm1157
    %v1159 = vsel %vm1158, %v1151, %v1155
    %v1160 = vand.u32 2147483647, %v1135
    %vm1161 = vcmp.eq.f32.partialorder %v1160, 8.507059e+37
    %v1162 = vand.u32 %v1135, 2147483648
    %v1163 = vor.u32 1.1754944e-38, %v1162
    %v1164 = vsel %vm1161, %v1163, %v1159
    %v1165 = vmul.f32 1.0, %v1164
    %v1166 = vadd.f32 %v1124, %v245
    %v1167 = vmul.f32 %v1150, %v1166
    %v1168 = vadd.f32 %v1065, %v1167
    %v1169 = vtanh.pop %v1168
    %v1170 = vsub.f32 %v1057, %v1169
    %v1171 = vmul.f32 %v1165, %v1170
    %v1172 = vadd.f32 %v1169, %v1171
    %s1173 = scalar_lea.vmem [#allocation2], 40
    %1174 = vst [vmem:[%s1173] sm:$0xff] %v1172
    %s1175 = smul.u32 6, 3
    %s1176 = smul.addr %s1175, 8
    %s1177 = scalar_lea.vmem [#allocation3], %s1176
    %v1178 = vld [vmem:[%s1177] sm:$0xff]
    %v1179 = vld [vmem:[%s1177 + $0x8] sm:$0xff]
    %v1180 = vld [vmem:[%s1177 + $0x10] sm:$0xff]
    %1181 = vmatpush.msra.mxu0 %v239
    %1182 = vmatpush.msra.mxu0 %v236
    %1183 = vmatpush.msra.mxu0 %v233
    %1184 = vmatpush.msra.mxu0 %v230
    %1185 = vmatpush.msra.mxu0 %v227
    %1186 = vmatpush.msra.mxu0 %v224
    %1187 = vmatpush.msra.mxu0 %v221
    %1188 = vmatpush.msra.mxu0 %v218
    %1189 = vmatpush.msra.mxu0 %v215
    %1190 = vmatpush.msra.mxu0 %v212
    %1191 = vmatpush.msra.mxu0 %v209
    %1192 = vmatpush.msra.mxu0 %v206
    %1193 = vmatpush.msra.mxu0 %v203
    %1194 = vmatpush.msra.mxu0 %v200
    %1195 = vmatpush.msra.mxu0 %v197
    %1196 = vmatpush.msra.mxu0 %v194
    %1197 = vmatmul.f32.gmra.mxu0 %v1172
    %v1198 = vpop.f32.mrf.mxu0
    %v1199 = vadd.f32 0.0, %v1198
    %1200 = vdwg.mxu0
    %1201 = vmatpush.msra.mxu0 %v240
    %1202 = vmatpush.msra.mxu0 %v237
    %1203 = vmatpush.msra.mxu0 %v234
    %1204 = vmatpush.msra.mxu0 %v231
    %1205 = vmatpush.msra.mxu0 %v228
    %1206 = vmatpush.msra.mxu0 %v225
    %1207 = vmatpush.msra.mxu0 %v222
    %1208 = vmatpush.msra.mxu0 %v219
    %1209 = vmatpush.msra.mxu0 %v216
    %1210 = vmatpush.msra.mxu0 %v213
    %1211 = vmatpush.msra.mxu0 %v210
    %1212 = vmatpush.msra.mxu0 %v207
    %1213 = vmatpush.msra.mxu0 %v204
    %1214 = vmatpush.msra.mxu0 %v201
    %1215 = vmatpush.msra.mxu0 %v198
    %1216 = vmatpush.msra.mxu0 %v195
    %1217 = vmatmul.f32.gmra.mxu0 %v1172
    %v1218 = vpop.f32.mrf.mxu0
    %v1219 = vadd.f32 0.0, %v1218
    %1220 = vdwg.mxu0
    %1221 = vmatpush.msra.mxu0 %v241
    %1222 = vmatpush.msra.mxu0 %v238
    %1223 = vmatpush.msra.mxu0 %v235
    %1224 = vmatpush.msra.mxu0 %v232
    %1225 = vmatpush.msra.mxu0 %v229
    %1226 = vmatpush.msra.mxu0 %v226
    %1227 = vmatpush.msra.mxu0 %v223
    %1228 = vmatpush.msra.mxu0 %v220
    %1229 = vmatpush.msra.mxu0 %v217
    %1230 = vmatpush.msra.mxu0 %v214
    %1231 = vmatpush.msra.mxu0 %v211
    %1232 = vmatpush.msra.mxu0 %v208
    %1233 = vmatpush.msra.mxu0 %v205
    %1234 = vmatpush.msra.mxu0 %v202
    %1235 = vmatpush.msra.mxu0 %v199
    %1236 = vmatpush.msra.mxu0 %v196
    %1237 = vmatmul.f32.gmra.mxu0 %v1172
    %v1238 = vpop.f32.mrf.mxu0
    %v1239 = vadd.f32 0.0, %v1238
    %1240 = vdwg.mxu0
    %v1241 = vadd.f32 %v1178, %v1199
    %v1242 = vadd.f32 %v1179, %v1219
    %v1243 = vxor.u32 %v1241, 2147483648
    %v1244 = vxor.u32 %v1242, 2147483648
    %v1245 = vmul.f32 %v1243, 1.442695
    %v1246 = vpow.pop %v1245
    %v1247 = vmul.f32 %v1244, 1.442695
    %v1248 = vpow.pop %v1247
    %v1249 = vadd.f32 %v1246, 1.0
    %v1250 = vadd.f32 %v1248, 1.0
    %v1251 = vrcp.pop %v1249
    %v1252 = vmul.f32 %v1249, %v1251
    %v1253 = vsub.f32 1.0, %v1252
    %v1254 = vmul.f32 %v1251, %v1253
    %v1255 = vadd.f32 %v1251, %v1254
    %vm1256 = vweird.f32 %v1249
    %vm1257 = vweird.f32 %v1251
    %vm1258 = vmor %vm1256, %vm1257
    %v1259 = vsel %vm1258, %v1251, %v1255
    %v1260 = vand.u32 2147483647, %v1249
    %vm1261 = vcmp.eq.f32.partialorder %v1260, 8.507059e+37
    %v1262 = vand.u32 %v1249, 2147483648
    %v1263 = vor.u32 1.1754944e-38, %v1262
    %v1264 = vsel %vm1261, %v1263, %v1259
    %v1265 = vmul.f32 1.0, %v1264
    %v1266 = vrcp.pop %v1250
    %v1267 = vmul.f32 %v1250, %v1266
    %v1268 = vsub.f32 1.0, %v1267
    %v1269 = vmul.f32 %v1266, %v1268
    %v1270 = vadd.f32 %v1266, %v1269
    %vm1271 = vweird.f32 %v1250
    %vm1272 = vweird.f32 %v1266
    %vm1273 = vmor %vm1271, %vm1272
    %v1274 = vsel %vm1273, %v1266, %v1270
    %v1275 = vand.u32 2147483647, %v1250
    %vm1276 = vcmp.eq.f32.partialorder %v1275, 8.507059e+37
    %v1277 = vand.u32 %v1250, 2147483648
    %v1278 = vor.u32 1.1754944e-38, %v1277
    %v1279 = vsel %vm1276, %v1278, %v1274
    %v1280 = vmul.f32 1.0, %v1279
    %v1281 = vadd.f32 %v1239, %v245
    %v1282 = vmul.f32 %v1265, %v1281
    %v1283 = vadd.f32 %v1180, %v1282
    %v1284 = vtanh.pop %v1283
    %v1285 = vsub.f32 %v1172, %v1284
    %v1286 = vmul.f32 %v1280, %v1285
    %v1287 = vadd.f32 %v1284, %v1286
    %s1288 = scalar_lea.vmem [#allocation2], 48
    %1289 = vst [vmem:[%s1288] sm:$0xff] %v1287
    %s1290 = smul.u32 7, 3
    %s1291 = smul.addr %s1290, 8
    %s1292 = scalar_lea.vmem [#allocation3], %s1291
    %v1293 = vld [vmem:[%s1292] sm:$0xff]
    %v1294 = vld [vmem:[%s1292 + $0x8] sm:$0xff]
    %v1295 = vld [vmem:[%s1292 + $0x10] sm:$0xff]
    %1296 = vmatpush.msra.mxu0 %v239
    %1297 = vmatpush.msra.mxu0 %v236
    %1298 = vmatpush.msra.mxu0 %v233
    %1299 = vmatpush.msra.mxu0 %v230
    %1300 = vmatpush.msra.mxu0 %v227
    %1301 = vmatpush.msra.mxu0 %v224
    %1302 = vmatpush.msra.mxu0 %v221
    %1303 = vmatpush.msra.mxu0 %v218
    %1304 = vmatpush.msra.mxu0 %v215
    %1305 = vmatpush.msra.mxu0 %v212
    %1306 = vmatpush.msra.mxu0 %v209
    %1307 = vmatpush.msra.mxu0 %v206
    %1308 = vmatpush.msra.mxu0 %v203
    %1309 = vmatpush.msra.mxu0 %v200
    %1310 = vmatpush.msra.mxu0 %v197
    %1311 = vmatpush.msra.mxu0 %v194
    %1312 = vmatmul.f32.gmra.mxu0 %v1287
    %v1313 = vpop.f32.mrf.mxu0
    %v1314 = vadd.f32 0.0, %v1313
    %1315 = vdwg.mxu0
    %1316 = vmatpush.msra.mxu0 %v240
    %1317 = vmatpush.msra.mxu0 %v237
    %1318 = vmatpush.msra.mxu0 %v234
    %1319 = vmatpush.msra.mxu0 %v231
    %1320 = vmatpush.msra.mxu0 %v228
    %1321 = vmatpush.msra.mxu0 %v225
    %1322 = vmatpush.msra.mxu0 %v222
    %1323 = vmatpush.msra.mxu0 %v219
    %1324 = vmatpush.msra.mxu0 %v216
    %1325 = vmatpush.msra.mxu0 %v213
    %1326 = vmatpush.msra.mxu0 %v210
    %1327 = vmatpush.msra.mxu0 %v207
    %1328 = vmatpush.msra.mxu0 %v204
    %1329 = vmatpush.msra.mxu0 %v201
    %1330 = vmatpush.msra.mxu0 %v198
    %1331 = vmatpush.msra.mxu0 %v195
    %1332 = vmatmul.f32.gmra.mxu0 %v1287
    %v1333 = vpop.f32.mrf.mxu0
    %v1334 = vadd.f32 0.0, %v1333
    %1335 = vdwg.mxu0
    %1336 = vmatpush.msra.mxu0 %v241
    %1337 = vmatpush.msra.mxu0 %v238
    %1338 = vmatpush.msra.mxu0 %v235
    %1339 = vmatpush.msra.mxu0 %v232
    %1340 = vmatpush.msra.mxu0 %v229
    %1341 = vmatpush.msra.mxu0 %v226
    %1342 = vmatpush.msra.mxu0 %v223
    %1343 = vmatpush.msra.mxu0 %v220
    %1344 = vmatpush.msra.mxu0 %v217
    %1345 = vmatpush.msra.mxu0 %v214
    %1346 = vmatpush.msra.mxu0 %v211
    %1347 = vmatpush.msra.mxu0 %v208
    %1348 = vmatpush.msra.mxu0 %v205
    %1349 = vmatpush.msra.mxu0 %v202
    %1350 = vmatpush.msra.mxu0 %v199
    %1351 = vmatpush.msra.mxu0 %v196
    %1352 = vmatmul.f32.gmra.mxu0 %v1287
    %v1353 = vpop.f32.mrf.mxu0
    %v1354 = vadd.f32 0.0, %v1353
    %1355 = vdwg.mxu0
    %v1356 = vadd.f32 %v1293, %v1314
    %v1357 = vadd.f32 %v1294, %v1334
    %v1358 = vxor.u32 %v1356, 2147483648
    %v1359 = vxor.u32 %v1357, 2147483648
    %v1360 = vmul.f32 %v1358, 1.442695
    %v1361 = vpow.pop %v1360
    %v1362 = vmul.f32 %v1359, 1.442695
    %v1363 = vpow.pop %v1362
    %v1364 = vadd.f32 %v1361, 1.0
    %v1365 = vadd.f32 %v1363, 1.0
    %v1366 = vrcp.pop %v1364
    %v1367 = vmul.f32 %v1364, %v1366
    %v1368 = vsub.f32 1.0, %v1367
    %v1369 = vmul.f32 %v1366, %v1368
    %v1370 = vadd.f32 %v1366, %v1369
    %vm1371 = vweird.f32 %v1364
    %vm1372 = vweird.f32 %v1366
    %vm1373 = vmor %vm1371, %vm1372
    %v1374 = vsel %vm1373, %v1366, %v1370
    %v1375 = vand.u32 2147483647, %v1364
    %vm1376 = vcmp.eq.f32.partialorder %v1375, 8.507059e+37
    %v1377 = vand.u32 %v1364, 2147483648
    %v1378 = vor.u32 1.1754944e-38, %v1377
    %v1379 = vsel %vm1376, %v1378, %v1374
    %v1380 = vmul.f32 1.0, %v1379
    %v1381 = vrcp.pop %v1365
    %v1382 = vmul.f32 %v1365, %v1381
    %v1383 = vsub.f32 1.0, %v1382
    %v1384 = vmul.f32 %v1381, %v1383
    %v1385 = vadd.f32 %v1381, %v1384
    %vm1386 = vweird.f32 %v1365
    %vm1387 = vweird.f32 %v1381
    %vm1388 = vmor %vm1386, %vm1387
    %v1389 = vsel %vm1388, %v1381, %v1385
    %v1390 = vand.u32 2147483647, %v1365
    %vm1391 = vcmp.eq.f32.partialorder %v1390, 8.507059e+37
    %v1392 = vand.u32 %v1365, 2147483648
    %v1393 = vor.u32 1.1754944e-38, %v1392
    %v1394 = vsel %vm1391, %v1393, %v1389
    %v1395 = vmul.f32 1.0, %v1394
    %v1396 = vadd.f32 %v1354, %v245
    %v1397 = vmul.f32 %v1380, %v1396
    %v1398 = vadd.f32 %v1295, %v1397
    %v1399 = vtanh.pop %v1398
    %v1400 = vsub.f32 %v1287, %v1399
    %v1401 = vmul.f32 %v1395, %v1400
    %v1402 = vadd.f32 %v1399, %v1401
    %s1403 = scalar_lea.vmem [#allocation2], 56
    %1404 = vst [vmem:[%s1403] sm:$0xff] %v1402
    %v1405 = vld [vmem:[#allocation8] sm:$0xff]
    %v1406 = vld [vmem:[#allocation8 + $0x8] sm:$0xff]
    %v1407 = vld [vmem:[#allocation8 + $0x10] sm:$0xff]
    %v1408 = vld [vmem:[#allocation8 + $0x18] sm:$0xff]
    %v1409 = vld [vmem:[#allocation8 + $0x20] sm:$0xff]
    %v1410 = vld [vmem:[#allocation8 + $0x28] sm:$0xff]
    %v1411 = vld [vmem:[#allocation8 + $0x30] sm:$0xff]
    %v1412 = vld [vmem:[#allocation8 + $0x38] sm:$0xff]
    %v1413 = vld [vmem:[#allocation8 + $0x40] sm:$0xff]
    %v1414 = vld [vmem:[#allocation8 + $0x48] sm:$0xff]
    %v1415 = vld [vmem:[#allocation8 + $0x50] sm:$0xff]
    %v1416 = vld [vmem:[#allocation8 + $0x58] sm:$0xff]
    %v1417 = vld [vmem:[#allocation8 + $0x60] sm:$0xff]
    %v1418 = vld [vmem:[#allocation8 + $0x68] sm:$0xff]
    %v1419 = vld [vmem:[#allocation8 + $0x70] sm:$0xff]
    %v1420 = vld [vmem:[#allocation8 + $0x78] sm:$0xff]
    %v1421 = vld [vmem:[#allocation8 + $0x80] sm:$0xff]
    %v1422 = vld [vmem:[#allocation8 + $0x88] sm:$0xff]
    %v1423 = vld [vmem:[#allocation8 + $0x90] sm:$0xff]
    %v1424 = vld [vmem:[#allocation8 + $0x98] sm:$0xff]
    %v1425 = vld [vmem:[#allocation8 + $0xa0] sm:$0xff]
    %v1426 = vld [vmem:[#allocation8 + $0xa8] sm:$0xff]
    %v1427 = vld [vmem:[#allocation8 + $0xb0] sm:$0xff]
    %v1428 = vld [vmem:[#allocation8 + $0xb8] sm:$0xff]
    %v1429 = vld [vmem:[#allocation8 + $0xc0] sm:$0xff]
    %v1430 = vld [vmem:[#allocation8 + $0xc8] sm:$0xff]
    %v1431 = vld [vmem:[#allocation8 + $0xd0] sm:$0xff]
    %v1432 = vld [vmem:[#allocation8 + $0xd8] sm:$0xff]
    %v1433 = vld [vmem:[#allocation8 + $0xe0] sm:$0xff]
    %v1434 = vld [vmem:[#allocation8 + $0xe8] sm:$0xff]
    %v1435 = vld [vmem:[#allocation8 + $0xf0] sm:$0xff]
    %v1436 = vld [vmem:[#allocation8 + $0xf8] sm:$0xff]
    %v1437 = vld [vmem:[#allocation8 + $0x100] sm:$0xff]
    %v1438 = vld [vmem:[#allocation8 + $0x108] sm:$0xff]
    %v1439 = vld [vmem:[#allocation8 + $0x110] sm:$0xff]
    %v1440 = vld [vmem:[#allocation8 + $0x118] sm:$0xff]
    %v1441 = vld [vmem:[#allocation8 + $0x120] sm:$0xff]
    %v1442 = vld [vmem:[#allocation8 + $0x128] sm:$0xff]
    %v1443 = vld [vmem:[#allocation8 + $0x130] sm:$0xff]
    %v1444 = vld [vmem:[#allocation8 + $0x138] sm:$0xff]
    %v1445 = vld [vmem:[#allocation8 + $0x140] sm:$0xff]
    %v1446 = vld [vmem:[#allocation8 + $0x148] sm:$0xff]
    %v1447 = vld [vmem:[#allocation8 + $0x150] sm:$0xff]
    %v1448 = vld [vmem:[#allocation8 + $0x158] sm:$0xff]
    %v1449 = vld [vmem:[#allocation8 + $0x160] sm:$0xff]
    %v1450 = vld [vmem:[#allocation8 + $0x168] sm:$0xff]
    %v1451 = vld [vmem:[#allocation8 + $0x170] sm:$0xff]
    %v1452 = vld [vmem:[#allocation8 + $0x178] sm:$0xff]
    %v1453 = vld [vmem:[#allocation9] sm:$0xff]
    %v1454 = vld [vmem:[#allocation9 + $0x8] sm:$0xff]
    %v1455 = vld [vmem:[#allocation9 + $0x10] sm:$0xff]
    %v1456 = vld [vmem:[#allocation9 + $0x18] sm:$0xff]
    %v1457 = vld [vmem:[#allocation9 + $0x20] sm:$0xff]
    %v1458 = vld [vmem:[#allocation9 + $0x28] sm:$0xff]
    %v1459 = vld [vmem:[#allocation9 + $0x30] sm:$0xff]
    %v1460 = vld [vmem:[#allocation9 + $0x38] sm:$0xff]
    %v1461 = vld [vmem:[#allocation9 + $0x40] sm:$0xff]
    %v1462 = vld [vmem:[#allocation9 + $0x48] sm:$0xff]
    %v1463 = vld [vmem:[#allocation9 + $0x50] sm:$0xff]
    %v1464 = vld [vmem:[#allocation9 + $0x58] sm:$0xff]
    %v1465 = vld [vmem:[#allocation9 + $0x60] sm:$0xff]
    %v1466 = vld [vmem:[#allocation9 + $0x68] sm:$0xff]
    %v1467 = vld [vmem:[#allocation9 + $0x70] sm:$0xff]
    %v1468 = vld [vmem:[#allocation9 + $0x78] sm:$0xff]
    %v1469 = vld [vmem:[#allocation9 + $0x80] sm:$0xff]
    %v1470 = vld [vmem:[#allocation9 + $0x88] sm:$0xff]
    %v1471 = vld [vmem:[#allocation9 + $0x90] sm:$0xff]
    %v1472 = vld [vmem:[#allocation9 + $0x98] sm:$0xff]
    %v1473 = vld [vmem:[#allocation9 + $0xa0] sm:$0xff]
    %v1474 = vld [vmem:[#allocation9 + $0xa8] sm:$0xff]
    %v1475 = vld [vmem:[#allocation9 + $0xb0] sm:$0xff]
    %v1476 = vld [vmem:[#allocation9 + $0xb8] sm:$0xff]
    %v1477 = vld [vmem:[#allocation9 + $0xc0] sm:$0xff]
    %v1478 = vld [vmem:[#allocation9 + $0xc8] sm:$0xff]
    %v1479 = vld [vmem:[#allocation9 + $0xd0] sm:$0xff]
    %v1480 = vld [vmem:[#allocation9 + $0xd8] sm:$0xff]
    %v1481 = vld [vmem:[#allocation9 + $0xe0] sm:$0xff]
    %v1482 = vld [vmem:[#allocation9 + $0xe8] sm:$0xff]
    %v1483 = vld [vmem:[#allocation9 + $0xf0] sm:$0xff]
    %v1484 = vld [vmem:[#allocation9 + $0xf8] sm:$0xff]
    %v1485 = vld [vmem:[#allocation9 + $0x100] sm:$0xff]
    %v1486 = vld [vmem:[#allocation9 + $0x108] sm:$0xff]
    %v1487 = vld [vmem:[#allocation9 + $0x110] sm:$0xff]
    %v1488 = vld [vmem:[#allocation9 + $0x118] sm:$0xff]
    %v1489 = vld [vmem:[#allocation9 + $0x120] sm:$0xff]
    %v1490 = vld [vmem:[#allocation9 + $0x128] sm:$0xff]
    %v1491 = vld [vmem:[#allocation9 + $0x130] sm:$0xff]
    %v1492 = vld [vmem:[#allocation9 + $0x138] sm:$0xff]
    %v1493 = vld [vmem:[#allocation9 + $0x140] sm:$0xff]
    %v1494 = vld [vmem:[#allocation9 + $0x148] sm:$0xff]
    %v1495 = vld [vmem:[#allocation9 + $0x150] sm:$0xff]
    %v1496 = vld [vmem:[#allocation9 + $0x158] sm:$0xff]
    %v1497 = vld [vmem:[#allocation9 + $0x160] sm:$0xff]
    %v1498 = vld [vmem:[#allocation9 + $0x168] sm:$0xff]
    %v1499 = vld [vmem:[#allocation9 + $0x170] sm:$0xff]
    %v1500 = vld [vmem:[#allocation9 + $0x178] sm:$0xff]
    %v1501 = vld [vmem:[%s9] sm:$0x7]
    %v1502 = vld [vmem:[%s10] sm:$0x1]
    %v1504 = vperm.slane %v1502, 0
    %v1506 = vld [vmem:[#allocation2] sm:$0xff]
    %v1507 = vld [vmem:[#allocation2 + $0x8] sm:$0xff]
    %v1508 = vld [vmem:[#allocation2 + $0x10] sm:$0xff]
    %v1509 = vld [vmem:[#allocation2 + $0x18] sm:$0xff]
    %v1510 = vld [vmem:[#allocation2 + $0x20] sm:$0xff]
    %v1511 = vld [vmem:[#allocation2 + $0x28] sm:$0xff]
    %v1512 = vld [vmem:[#allocation2 + $0x30] sm:$0xff]
    %v1513 = vld [vmem:[#allocation2 + $0x38] sm:$0xff]
    %v1515 = vperm.slane %v1501, 0
    %v1516 = vperm.slane %v1501, 1
    %v1517 = vperm.slane %v1501, 2
    %1521 = vmatpush.msra.mxu0 %v1450
    %1522 = vmatpush.msra.mxu0 %v1447
    %1523 = vmatpush.msra.mxu0 %v1444
    %1524 = vmatpush.msra.mxu0 %v1441
    %1525 = vmatpush.msra.mxu0 %v1438
    %1526 = vmatpush.msra.mxu0 %v1435
    %1527 = vmatpush.msra.mxu0 %v1432
    %1528 = vmatpush.msra.mxu0 %v1429
    %1529 = vmatpush.msra.mxu0 %v1426
    %1530 = vmatpush.msra.mxu0 %v1423
    %1531 = vmatpush.msra.mxu0 %v1420
    %1532 = vmatpush.msra.mxu0 %v1417
    %1533 = vmatpush.msra.mxu0 %v1414
    %1534 = vmatpush.msra.mxu0 %v1411
    %1535 = vmatpush.msra.mxu0 %v1408
    %1536 = vmatpush.msra.mxu0 %v1405
    %1537 = vmatmul.f32.gmra.mxu0 %v1506
    %v1538 = vpop.f32.mrf.mxu0
    %v1539 = vadd.f32 %v1515, %v1538
    %1540 = vmatmul.f32.gmra.mxu0 %v1507
    %v1541 = vpop.f32.mrf.mxu0
    %v1542 = vadd.f32 %v1515, %v1541
    %1543 = vmatmul.f32.gmra.mxu0 %v1508
    %v1544 = vpop.f32.mrf.mxu0
    %v1545 = vadd.f32 %v1515, %v1544
    %1546 = vmatmul.f32.gmra.mxu0 %v1509
    %v1547 = vpop.f32.mrf.mxu0
    %v1548 = vadd.f32 %v1515, %v1547
    %1549 = vmatmul.f32.gmra.mxu0 %v1510
    %v1550 = vpop.f32.mrf.mxu0
    %v1551 = vadd.f32 %v1515, %v1550
    %1552 = vmatmul.f32.gmra.mxu0 %v1511
    %v1553 = vpop.f32.mrf.mxu0
    %v1554 = vadd.f32 %v1515, %v1553
    %1555 = vmatmul.f32.gmra.mxu0 %v1512
    %v1556 = vpop.f32.mrf.mxu0
    %v1557 = vadd.f32 %v1515, %v1556
    %1558 = vmatmul.f32.gmra.mxu0 %v1513
    %v1559 = vpop.f32.mrf.mxu0
    %v1560 = vadd.f32 %v1515, %v1559
    %1561 = vdwg.mxu0
    %1562 = vmatpush.msra.mxu0 %v1451
    %1563 = vmatpush.msra.mxu0 %v1448
    %1564 = vmatpush.msra.mxu0 %v1445
    %1565 = vmatpush.msra.mxu0 %v1442
    %1566 = vmatpush.msra.mxu0 %v1439
    %1567 = vmatpush.msra.mxu0 %v1436
    %1568 = vmatpush.msra.mxu0 %v1433
    %1569 = vmatpush.msra.mxu0 %v1430
    %1570 = vmatpush.msra.mxu0 %v1427
    %1571 = vmatpush.msra.mxu0 %v1424
    %1572 = vmatpush.msra.mxu0 %v1421
    %1573 = vmatpush.msra.mxu0 %v1418
    %1574 = vmatpush.msra.mxu0 %v1415
    %1575 = vmatpush.msra.mxu0 %v1412
    %1576 = vmatpush.msra.mxu0 %v1409
    %1577 = vmatpush.msra.mxu0 %v1406
    %1578 = vmatmul.f32.gmra.mxu0 %v1506
    %v1579 = vpop.f32.mrf.mxu0
    %v1580 = vadd.f32 %v1516, %v1579
    %1581 = vmatmul.f32.gmra.mxu0 %v1507
    %v1582 = vpop.f32.mrf.mxu0
    %v1583 = vadd.f32 %v1516, %v1582
    %1584 = vmatmul.f32.gmra.mxu0 %v1508
    %v1585 = vpop.f32.mrf.mxu0
    %v1586 = vadd.f32 %v1516, %v1585
    %1587 = vmatmul.f32.gmra.mxu0 %v1509
    %v1588 = vpop.f32.mrf.mxu0
    %v1589 = vadd.f32 %v1516, %v1588
    %1590 = vmatmul.f32.gmra.mxu0 %v1510
    %v1591 = vpop.f32.mrf.mxu0
    %v1592 = vadd.f32 %v1516, %v1591
    %1593 = vmatmul.f32.gmra.mxu0 %v1511
    %v1594 = vpop.f32.mrf.mxu0
    %v1595 = vadd.f32 %v1516, %v1594
    %1596 = vmatmul.f32.gmra.mxu0 %v1512
    %v1597 = vpop.f32.mrf.mxu0
    %v1598 = vadd.f32 %v1516, %v1597
    %1599 = vmatmul.f32.gmra.mxu0 %v1513
    %v1600 = vpop.f32.mrf.mxu0
    %v1601 = vadd.f32 %v1516, %v1600
    %1602 = vdwg.mxu0
    %1603 = vmatpush.msra.mxu0 %v1452
    %1604 = vmatpush.msra.mxu0 %v1449
    %1605 = vmatpush.msra.mxu0 %v1446
    %1606 = vmatpush.msra.mxu0 %v1443
    %1607 = vmatpush.msra.mxu0 %v1440
    %1608 = vmatpush.msra.mxu0 %v1437
    %1609 = vmatpush.msra.mxu0 %v1434
    %1610 = vmatpush.msra.mxu0 %v1431
    %1611 = vmatpush.msra.mxu0 %v1428
    %1612 = vmatpush.msra.mxu0 %v1425
    %1613 = vmatpush.msra.mxu0 %v1422
    %1614 = vmatpush.msra.mxu0 %v1419
    %1615 = vmatpush.msra.mxu0 %v1416
    %1616 = vmatpush.msra.mxu0 %v1413
    %1617 = vmatpush.msra.mxu0 %v1410
    %1618 = vmatpush.msra.mxu0 %v1407
    %1619 = vmatmul.f32.gmra.mxu0 %v1506
    %v1620 = vpop.f32.mrf.mxu0
    %v1621 = vadd.f32 %v1517, %v1620
    %1622 = vmatmul.f32.gmra.mxu0 %v1507
    %v1623 = vpop.f32.mrf.mxu0
    %v1624 = vadd.f32 %v1517, %v1623
    %1625 = vmatmul.f32.gmra.mxu0 %v1508
    %v1626 = vpop.f32.mrf.mxu0
    %v1627 = vadd.f32 %v1517, %v1626
    %1628 = vmatmul.f32.gmra.mxu0 %v1509
    %v1629 = vpop.f32.mrf.mxu0
    %v1630 = vadd.f32 %v1517, %v1629
    %1631 = vmatmul.f32.gmra.mxu0 %v1510
    %v1632 = vpop.f32.mrf.mxu0
    %v1633 = vadd.f32 %v1517, %v1632
    %1634 = vmatmul.f32.gmra.mxu0 %v1511
    %v1635 = vpop.f32.mrf.mxu0
    %v1636 = vadd.f32 %v1517, %v1635
    %1637 = vmatmul.f32.gmra.mxu0 %v1512
    %v1638 = vpop.f32.mrf.mxu0
    %v1639 = vadd.f32 %v1517, %v1638
    %1640 = vmatmul.f32.gmra.mxu0 %v1513
    %v1641 = vpop.f32.mrf.mxu0
    %v1642 = vadd.f32 %v1517, %v1641
    %1643 = vdwg.mxu0
    %1644 = vst [vmem:[#allocation3] sm:$0xff] %v1539
    %1645 = vst [vmem:[#allocation3 + $0x8] sm:$0xff] %v1580
    %1646 = vst [vmem:[#allocation3 + $0x10] sm:$0xff] %v1621
    %1647 = vst [vmem:[#allocation3 + $0x18] sm:$0xff] %v1542
    %1648 = vst [vmem:[#allocation3 + $0x20] sm:$0xff] %v1583
    %1649 = vst [vmem:[#allocation3 + $0x28] sm:$0xff] %v1624
    %1650 = vst [vmem:[#allocation3 + $0x30] sm:$0xff] %v1545
    %1651 = vst [vmem:[#allocation3 + $0x38] sm:$0xff] %v1586
    %1652 = vst [vmem:[#allocation3 + $0x40] sm:$0xff] %v1627
    %1653 = vst [vmem:[#allocation3 + $0x48] sm:$0xff] %v1548
    %1654 = vst [vmem:[#allocation3 + $0x50] sm:$0xff] %v1589
    %1655 = vst [vmem:[#allocation3 + $0x58] sm:$0xff] %v1630
    %1656 = vst [vmem:[#allocation3 + $0x60] sm:$0xff] %v1551
    %1657 = vst [vmem:[#allocation3 + $0x68] sm:$0xff] %v1592
    %1658 = vst [vmem:[#allocation3 + $0x70] sm:$0xff] %v1633
    %1659 = vst [vmem:[#allocation3 + $0x78] sm:$0xff] %v1554
    %1660 = vst [vmem:[#allocation3 + $0x80] sm:$0xff] %v1595
    %1661 = vst [vmem:[#allocation3 + $0x88] sm:$0xff] %v1636
    %1662 = vst [vmem:[#allocation3 + $0x90] sm:$0xff] %v1557
    %1663 = vst [vmem:[#allocation3 + $0x98] sm:$0xff] %v1598
    %1664 = vst [vmem:[#allocation3 + $0xa0] sm:$0xff] %v1639
    %1665 = vst [vmem:[#allocation3 + $0xa8] sm:$0xff] %v1560
    %1666 = vst [vmem:[#allocation3 + $0xb0] sm:$0xff] %v1601
    %1667 = vst [vmem:[#allocation3 + $0xb8] sm:$0xff] %v1642
    %v1668 = vld [vmem:[%s488] sm:$0xff]
    %v1669 = vld [vmem:[%s488 + $0x8] sm:$0xff]
    %v1670 = vld [vmem:[%s488 + $0x10] sm:$0xff]
    %1671 = vmatpush.msra.mxu0 %v1498
    %1672 = vmatpush.msra.mxu0 %v1495
    %1673 = vmatpush.msra.mxu0 %v1492
    %1674 = vmatpush.msra.mxu0 %v1489
    %1675 = vmatpush.msra.mxu0 %v1486
    %1676 = vmatpush.msra.mxu0 %v1483
    %1677 = vmatpush.msra.mxu0 %v1480
    %1678 = vmatpush.msra.mxu0 %v1477
    %1679 = vmatpush.msra.mxu0 %v1474
    %1680 = vmatpush.msra.mxu0 %v1471
    %1681 = vmatpush.msra.mxu0 %v1468
    %1682 = vmatpush.msra.mxu0 %v1465
    %1683 = vmatpush.msra.mxu0 %v1462
    %1684 = vmatpush.msra.mxu0 %v1459
    %1685 = vmatpush.msra.mxu0 %v1456
    %1686 = vmatpush.msra.mxu0 %v1453
    %1687 = vmatmul.f32.gmra.mxu0 0.0
    %v1688 = vpop.f32.mrf.mxu0
    %v1689 = vadd.f32 0.0, %v1688
    %1690 = vdwg.mxu0
    %1691 = vmatpush.msra.mxu0 %v1499
    %1692 = vmatpush.msra.mxu0 %v1496
    %1693 = vmatpush.msra.mxu0 %v1493
    %1694 = vmatpush.msra.mxu0 %v1490
    %1695 = vmatpush.msra.mxu0 %v1487
    %1696 = vmatpush.msra.mxu0 %v1484
    %1697 = vmatpush.msra.mxu0 %v1481
    %1698 = vmatpush.msra.mxu0 %v1478
    %1699 = vmatpush.msra.mxu0 %v1475
    %1700 = vmatpush.msra.mxu0 %v1472
    %1701 = vmatpush.msra.mxu0 %v1469
    %1702 = vmatpush.msra.mxu0 %v1466
    %1703 = vmatpush.msra.mxu0 %v1463
    %1704 = vmatpush.msra.mxu0 %v1460
    %1705 = vmatpush.msra.mxu0 %v1457
    %1706 = vmatpush.msra.mxu0 %v1454
    %1707 = vmatmul.f32.gmra.mxu0 0.0
    %v1708 = vpop.f32.mrf.mxu0
    %v1709 = vadd.f32 0.0, %v1708
    %1710 = vdwg.mxu0
    %1711 = vmatpush.msra.mxu0 %v1500
    %1712 = vmatpush.msra.mxu0 %v1497
    %1713 = vmatpush.msra.mxu0 %v1494
    %1714 = vmatpush.msra.mxu0 %v1491
    %1715 = vmatpush.msra.mxu0 %v1488
    %1716 = vmatpush.msra.mxu0 %v1485
    %1717 = vmatpush.msra.mxu0 %v1482
    %1718 = vmatpush.msra.mxu0 %v1479
    %1719 = vmatpush.msra.mxu0 %v1476
    %1720 = vmatpush.msra.mxu0 %v1473
    %1721 = vmatpush.msra.mxu0 %v1470
    %1722 = vmatpush.msra.mxu0 %v1467
    %1723 = vmatpush.msra.mxu0 %v1464
    %1724 = vmatpush.msra.mxu0 %v1461
    %1725 = vmatpush.msra.mxu0 %v1458
    %1726 = vmatpush.msra.mxu0 %v1455
    %1727 = vmatmul.f32.gmra.mxu0 0.0
    %v1728 = vpop.f32.mrf.mxu0
    %v1729 = vadd.f32 0.0, %v1728
    %1730 = vdwg.mxu0
    %v1731 = vadd.f32 %v1668, %v1689
    %v1732 = vadd.f32 %v1669, %v1709
    %v1733 = vxor.u32 %v1731, 2147483648
    %v1734 = vxor.u32 %v1732, 2147483648
    %v1735 = vmul.f32 %v1733, 1.442695
    %v1736 = vpow.pop %v1735
    %v1737 = vmul.f32 %v1734, 1.442695
    %v1738 = vpow.pop %v1737
    %v1739 = vadd.f32 %v1736, 1.0
    %v1740 = vadd.f32 %v1738, 1.0
    %v1741 = vrcp.pop %v1739
    %v1742 = vmul.f32 %v1739, %v1741
    %v1743 = vsub.f32 1.0, %v1742
    %v1744 = vmul.f32 %v1741, %v1743
    %v1745 = vadd.f32 %v1741, %v1744
    %vm1746 = vweird.f32 %v1739
    %vm1747 = vweird.f32 %v1741
    %vm1748 = vmor %vm1746, %vm1747
    %v1749 = vsel %vm1748, %v1741, %v1745
    %v1750 = vand.u32 2147483647, %v1739
    %vm1751 = vcmp.eq.f32.partialorder %v1750, 8.507059e+37
    %v1752 = vand.u32 %v1739, 2147483648
    %v1753 = vor.u32 1.1754944e-38, %v1752
    %v1754 = vsel %vm1751, %v1753, %v1749
    %v1755 = vmul.f32 1.0, %v1754
    %v1756 = vrcp.pop %v1740
    %v1757 = vmul.f32 %v1740, %v1756
    %v1758 = vsub.f32 1.0, %v1757
    %v1759 = vmul.f32 %v1756, %v1758
    %v1760 = vadd.f32 %v1756, %v1759
    %vm1761 = vweird.f32 %v1740
    %vm1762 = vweird.f32 %v1756
    %vm1763 = vmor %vm1761, %vm1762
    %v1764 = vsel %vm1763, %v1756, %v1760
    %v1765 = vand.u32 2147483647, %v1740
    %vm1766 = vcmp.eq.f32.partialorder %v1765, 8.507059e+37
    %v1767 = vand.u32 %v1740, 2147483648
    %v1768 = vor.u32 1.1754944e-38, %v1767
    %v1769 = vsel %vm1766, %v1768, %v1764
    %v1770 = vmul.f32 1.0, %v1769
    %v1771 = vadd.f32 %v1729, %v1504
    %v1772 = vmul.f32 %v1755, %v1771
    %v1773 = vadd.f32 %v1670, %v1772
    %v1774 = vtanh.pop %v1773
    %v1775 = vsub.f32 0.0, %v1774
    %v1776 = vmul.f32 %v1770, %v1775
    %v1777 = vadd.f32 %v1774, %v1776
    %1778 = vst [vmem:[#allocation2] sm:$0xff] %v1777
    %v1779 = vld [vmem:[%s602] sm:$0xff]
    %v1780 = vld [vmem:[%s602 + $0x8] sm:$0xff]
    %v1781 = vld [vmem:[%s602 + $0x10] sm:$0xff]
    %1782 = vmatpush.msra.mxu0 %v1498
    %1783 = vmatpush.msra.mxu0 %v1495
    %1784 = vmatpush.msra.mxu0 %v1492
    %1785 = vmatpush.msra.mxu0 %v1489
    %1786 = vmatpush.msra.mxu0 %v1486
    %1787 = vmatpush.msra.mxu0 %v1483
    %1788 = vmatpush.msra.mxu0 %v1480
    %1789 = vmatpush.msra.mxu0 %v1477
    %1790 = vmatpush.msra.mxu0 %v1474
    %1791 = vmatpush.msra.mxu0 %v1471
    %1792 = vmatpush.msra.mxu0 %v1468
    %1793 = vmatpush.msra.mxu0 %v1465
    %1794 = vmatpush.msra.mxu0 %v1462
    %1795 = vmatpush.msra.mxu0 %v1459
    %1796 = vmatpush.msra.mxu0 %v1456
    %1797 = vmatpush.msra.mxu0 %v1453
    %1798 = vmatmul.f32.gmra.mxu0 %v1777
    %v1799 = vpop.f32.mrf.mxu0
    %v1800 = vadd.f32 0.0, %v1799
    %1801 = vdwg.mxu0
    %1802 = vmatpush.msra.mxu0 %v1499
    %1803 = vmatpush.msra.mxu0 %v1496
    %1804 = vmatpush.msra.mxu0 %v1493
    %1805 = vmatpush.msra.mxu0 %v1490
    %1806 = vmatpush.msra.mxu0 %v1487
    %1807 = vmatpush.msra.mxu0 %v1484
    %1808 = vmatpush.msra.mxu0 %v1481
    %1809 = vmatpush.msra.mxu0 %v1478
    %1810 = vmatpush.msra.mxu0 %v1475
    %1811 = vmatpush.msra.mxu0 %v1472
    %1812 = vmatpush.msra.mxu0 %v1469
    %1813 = vmatpush.msra.mxu0 %v1466
    %1814 = vmatpush.msra.mxu0 %v1463
    %1815 = vmatpush.msra.mxu0 %v1460
    %1816 = vmatpush.msra.mxu0 %v1457
    %1817 = vmatpush.msra.mxu0 %v1454
    %1818 = vmatmul.f32.gmra.mxu0 %v1777
    %v1819 = vpop.f32.mrf.mxu0
    %v1820 = vadd.f32 0.0, %v1819
    %1821 = vdwg.mxu0
    %1822 = vmatpush.msra.mxu0 %v1500
    %1823 = vmatpush.msra.mxu0 %v1497
    %1824 = vmatpush.msra.mxu0 %v1494
    %1825 = vmatpush.msra.mxu0 %v1491
    %1826 = vmatpush.msra.mxu0 %v1488
    %1827 = vmatpush.msra.mxu0 %v1485
    %1828 = vmatpush.msra.mxu0 %v1482
    %1829 = vmatpush.msra.mxu0 %v1479
    %1830 = vmatpush.msra.mxu0 %v1476
    %1831 = vmatpush.msra.mxu0 %v1473
    %1832 = vmatpush.msra.mxu0 %v1470
    %1833 = vmatpush.msra.mxu0 %v1467
    %1834 = vmatpush.msra.mxu0 %v1464
    %1835 = vmatpush.msra.mxu0 %v1461
    %1836 = vmatpush.msra.mxu0 %v1458
    %1837 = vmatpush.msra.mxu0 %v1455
    %1838 = vmatmul.f32.gmra.mxu0 %v1777
    %v1839 = vpop.f32.mrf.mxu0
    %v1840 = vadd.f32 0.0, %v1839
    %1841 = vdwg.mxu0
    %v1842 = vadd.f32 %v1779, %v1800
    %v1843 = vadd.f32 %v1780, %v1820
    %v1844 = vxor.u32 %v1842, 2147483648
    %v1845 = vxor.u32 %v1843, 2147483648
    %v1846 = vmul.f32 %v1844, 1.442695
    %v1847 = vpow.pop %v1846
    %v1848 = vmul.f32 %v1845, 1.442695
    %v1849 = vpow.pop %v1848
    %v1850 = vadd.f32 %v1847, 1.0
    %v1851 = vadd.f32 %v1849, 1.0
    %v1852 = vrcp.pop %v1850
    %v1853 = vmul.f32 %v1850, %v1852
    %v1854 = vsub.f32 1.0, %v1853
    %v1855 = vmul.f32 %v1852, %v1854
    %v1856 = vadd.f32 %v1852, %v1855
    %vm1857 = vweird.f32 %v1850
    %vm1858 = vweird.f32 %v1852
    %vm1859 = vmor %vm1857, %vm1858
    %v1860 = vsel %vm1859, %v1852, %v1856
    %v1861 = vand.u32 2147483647, %v1850
    %vm1862 = vcmp.eq.f32.partialorder %v1861, 8.507059e+37
    %v1863 = vand.u32 %v1850, 2147483648
    %v1864 = vor.u32 1.1754944e-38, %v1863
    %v1865 = vsel %vm1862, %v1864, %v1860
    %v1866 = vmul.f32 1.0, %v1865
    %v1867 = vrcp.pop %v1851
    %v1868 = vmul.f32 %v1851, %v1867
    %v1869 = vsub.f32 1.0, %v1868
    %v1870 = vmul.f32 %v1867, %v1869
    %v1871 = vadd.f32 %v1867, %v1870
    %vm1872 = vweird.f32 %v1851
    %vm1873 = vweird.f32 %v1867
    %vm1874 = vmor %vm1872, %vm1873
    %v1875 = vsel %vm1874, %v1867, %v1871
    %v1876 = vand.u32 2147483647, %v1851
    %vm1877 = vcmp.eq.f32.partialorder %v1876, 8.507059e+37
    %v1878 = vand.u32 %v1851, 2147483648
    %v1879 = vor.u32 1.1754944e-38, %v1878
    %v1880 = vsel %vm1877, %v1879, %v1875
    %v1881 = vmul.f32 1.0, %v1880
    %v1882 = vadd.f32 %v1840, %v1504
    %v1883 = vmul.f32 %v1866, %v1882
    %v1884 = vadd.f32 %v1781, %v1883
    %v1885 = vtanh.pop %v1884
    %v1886 = vsub.f32 %v1777, %v1885
    %v1887 = vmul.f32 %v1881, %v1886
    %v1888 = vadd.f32 %v1885, %v1887
    %1889 = vst [vmem:[%s713] sm:$0xff] %v1888
    %v1890 = vld [vmem:[%s717] sm:$0xff]
    %v1891 = vld [vmem:[%s717 + $0x8] sm:$0xff]
    %v1892 = vld [vmem:[%s717 + $0x10] sm:$0xff]
    %1893 = vmatpush.msra.mxu0 %v1498
    %1894 = vmatpush.msra.mxu0 %v1495
    %1895 = vmatpush.msra.mxu0 %v1492
    %1896 = vmatpush.msra.mxu0 %v1489
    %1897 = vmatpush.msra.mxu0 %v1486
    %1898 = vmatpush.msra.mxu0 %v1483
    %1899 = vmatpush.msra.mxu0 %v1480
    %1900 = vmatpush.msra.mxu0 %v1477
    %1901 = vmatpush.msra.mxu0 %v1474
    %1902 = vmatpush.msra.mxu0 %v1471
    %1903 = vmatpush.msra.mxu0 %v1468
    %1904 = vmatpush.msra.mxu0 %v1465
    %1905 = vmatpush.msra.mxu0 %v1462
    %1906 = vmatpush.msra.mxu0 %v1459
    %1907 = vmatpush.msra.mxu0 %v1456
    %1908 = vmatpush.msra.mxu0 %v1453
    %1909 = vmatmul.f32.gmra.mxu0 %v1888
    %v1910 = vpop.f32.mrf.mxu0
    %v1911 = vadd.f32 0.0, %v1910
    %1912 = vdwg.mxu0
    %1913 = vmatpush.msra.mxu0 %v1499
    %1914 = vmatpush.msra.mxu0 %v1496
    %1915 = vmatpush.msra.mxu0 %v1493
    %1916 = vmatpush.msra.mxu0 %v1490
    %1917 = vmatpush.msra.mxu0 %v1487
    %1918 = vmatpush.msra.mxu0 %v1484
    %1919 = vmatpush.msra.mxu0 %v1481
    %1920 = vmatpush.msra.mxu0 %v1478
    %1921 = vmatpush.msra.mxu0 %v1475
    %1922 = vmatpush.msra.mxu0 %v1472
    %1923 = vmatpush.msra.mxu0 %v1469
    %1924 = vmatpush.msra.mxu0 %v1466
    %1925 = vmatpush.msra.mxu0 %v1463
    %1926 = vmatpush.msra.mxu0 %v1460
    %1927 = vmatpush.msra.mxu0 %v1457
    %1928 = vmatpush.msra.mxu0 %v1454
    %1929 = vmatmul.f32.gmra.mxu0 %v1888
    %v1930 = vpop.f32.mrf.mxu0
    %v1931 = vadd.f32 0.0, %v1930
    %1932 = vdwg.mxu0
    %1933 = vmatpush.msra.mxu0 %v1500
    %1934 = vmatpush.msra.mxu0 %v1497
    %1935 = vmatpush.msra.mxu0 %v1494
    %1936 = vmatpush.msra.mxu0 %v1491
    %1937 = vmatpush.msra.mxu0 %v1488
    %1938 = vmatpush.msra.mxu0 %v1485
    %1939 = vmatpush.msra.mxu0 %v1482
    %1940 = vmatpush.msra.mxu0 %v1479
    %1941 = vmatpush.msra.mxu0 %v1476
    %1942 = vmatpush.msra.mxu0 %v1473
    %1943 = vmatpush.msra.mxu0 %v1470
    %1944 = vmatpush.msra.mxu0 %v1467
    %1945 = vmatpush.msra.mxu0 %v1464
    %1946 = vmatpush.msra.mxu0 %v1461
    %1947 = vmatpush.msra.mxu0 %v1458
    %1948 = vmatpush.msra.mxu0 %v1455
    %1949 = vmatmul.f32.gmra.mxu0 %v1888
    %v1950 = vpop.f32.mrf.mxu0
    %v1951 = vadd.f32 0.0, %v1950
    %1952 = vdwg.mxu0
    %v1953 = vadd.f32 %v1890, %v1911
    %v1954 = vadd.f32 %v1891, %v1931
    %v1955 = vxor.u32 %v1953, 2147483648
    %v1956 = vxor.u32 %v1954, 2147483648
    %v1957 = vmul.f32 %v1955, 1.442695
    %v1958 = vpow.pop %v1957
    %v1959 = vmul.f32 %v1956, 1.442695
    %v1960 = vpow.pop %v1959
    %v1961 = vadd.f32 %v1958, 1.0
    %v1962 = vadd.f32 %v1960, 1.0
    %v1963 = vrcp.pop %v1961
    %v1964 = vmul.f32 %v1961, %v1963
    %v1965 = vsub.f32 1.0, %v1964
    %v1966 = vmul.f32 %v1963, %v1965
    %v1967 = vadd.f32 %v1963, %v1966
    %vm1968 = vweird.f32 %v1961
    %vm1969 = vweird.f32 %v1963
    %vm1970 = vmor %vm1968, %vm1969
    %v1971 = vsel %vm1970, %v1963, %v1967
    %v1972 = vand.u32 2147483647, %v1961
    %vm1973 = vcmp.eq.f32.partialorder %v1972, 8.507059e+37
    %v1974 = vand.u32 %v1961, 2147483648
    %v1975 = vor.u32 1.1754944e-38, %v1974
    %v1976 = vsel %vm1973, %v1975, %v1971
    %v1977 = vmul.f32 1.0, %v1976
    %v1978 = vrcp.pop %v1962
    %v1979 = vmul.f32 %v1962, %v1978
    %v1980 = vsub.f32 1.0, %v1979
    %v1981 = vmul.f32 %v1978, %v1980
    %v1982 = vadd.f32 %v1978, %v1981
    %vm1983 = vweird.f32 %v1962
    %vm1984 = vweird.f32 %v1978
    %vm1985 = vmor %vm1983, %vm1984
    %v1986 = vsel %vm1985, %v1978, %v1982
    %v1987 = vand.u32 2147483647, %v1962
    %vm1988 = vcmp.eq.f32.partialorder %v1987, 8.507059e+37
    %v1989 = vand.u32 %v1962, 2147483648
    %v1990 = vor.u32 1.1754944e-38, %v1989
    %v1991 = vsel %vm1988, %v1990, %v1986
    %v1992 = vmul.f32 1.0, %v1991
    %v1993 = vadd.f32 %v1951, %v1504
    %v1994 = vmul.f32 %v1977, %v1993
    %v1995 = vadd.f32 %v1892, %v1994
    %v1996 = vtanh.pop %v1995
    %v1997 = vsub.f32 %v1888, %v1996
    %v1998 = vmul.f32 %v1992, %v1997
    %v1999 = vadd.f32 %v1996, %v1998
    %2000 = vst [vmem:[%s828] sm:$0xff] %v1999
    %v2001 = vld [vmem:[%s832] sm:$0xff]
    %v2002 = vld [vmem:[%s832 + $0x8] sm:$0xff]
    %v2003 = vld [vmem:[%s832 + $0x10] sm:$0xff]
    %2004 = vmatpush.msra.mxu0 %v1498
    %2005 = vmatpush.msra.mxu0 %v1495
    %2006 = vmatpush.msra.mxu0 %v1492
    %2007 = vmatpush.msra.mxu0 %v1489
    %2008 = vmatpush.msra.mxu0 %v1486
    %2009 = vmatpush.msra.mxu0 %v1483
    %2010 = vmatpush.msra.mxu0 %v1480
    %2011 = vmatpush.msra.mxu0 %v1477
    %2012 = vmatpush.msra.mxu0 %v1474
    %2013 = vmatpush.msra.mxu0 %v1471
    %2014 = vmatpush.msra.mxu0 %v1468
    %2015 = vmatpush.msra.mxu0 %v1465
    %2016 = vmatpush.msra.mxu0 %v1462
    %2017 = vmatpush.msra.mxu0 %v1459
    %2018 = vmatpush.msra.mxu0 %v1456
    %2019 = vmatpush.msra.mxu0 %v1453
    %2020 = vmatmul.f32.gmra.mxu0 %v1999
    %v2021 = vpop.f32.mrf.mxu0
    %v2022 = vadd.f32 0.0, %v2021
    %2023 = vdwg.mxu0
    %2024 = vmatpush.msra.mxu0 %v1499
    %2025 = vmatpush.msra.mxu0 %v1496
    %2026 = vmatpush.msra.mxu0 %v1493
    %2027 = vmatpush.msra.mxu0 %v1490
    %2028 = vmatpush.msra.mxu0 %v1487
    %2029 = vmatpush.msra.mxu0 %v1484
    %2030 = vmatpush.msra.mxu0 %v1481
    %2031 = vmatpush.msra.mxu0 %v1478
    %2032 = vmatpush.msra.mxu0 %v1475
    %2033 = vmatpush.msra.mxu0 %v1472
    %2034 = vmatpush.msra.mxu0 %v1469
    %2035 = vmatpush.msra.mxu0 %v1466
    %2036 = vmatpush.msra.mxu0 %v1463
    %2037 = vmatpush.msra.mxu0 %v1460
    %2038 = vmatpush.msra.mxu0 %v1457
    %2039 = vmatpush.msra.mxu0 %v1454
    %2040 = vmatmul.f32.gmra.mxu0 %v1999
    %v2041 = vpop.f32.mrf.mxu0
    %v2042 = vadd.f32 0.0, %v2041
    %2043 = vdwg.mxu0
    %2044 = vmatpush.msra.mxu0 %v1500
    %2045 = vmatpush.msra.mxu0 %v1497
    %2046 = vmatpush.msra.mxu0 %v1494
    %2047 = vmatpush.msra.mxu0 %v1491
    %2048 = vmatpush.msra.mxu0 %v1488
    %2049 = vmatpush.msra.mxu0 %v1485
    %2050 = vmatpush.msra.mxu0 %v1482
    %2051 = vmatpush.msra.mxu0 %v1479
    %2052 = vmatpush.msra.mxu0 %v1476
    %2053 = vmatpush.msra.mxu0 %v1473
    %2054 = vmatpush.msra.mxu0 %v1470
    %2055 = vmatpush.msra.mxu0 %v1467
    %2056 = vmatpush.msra.mxu0 %v1464
    %2057 = vmatpush.msra.mxu0 %v1461
    %2058 = vmatpush.msra.mxu0 %v1458
    %2059 = vmatpush.msra.mxu0 %v1455
    %2060 = vmatmul.f32.gmra.mxu0 %v1999
    %v2061 = vpop.f32.mrf.mxu0
    %v2062 = vadd.f32 0.0, %v2061
    %2063 = vdwg.mxu0
    %v2064 = vadd.f32 %v2001, %v2022
    %v2065 = vadd.f32 %v2002, %v2042
    %v2066 = vxor.u32 %v2064, 2147483648
    %v2067 = vxor.u32 %v2065, 2147483648
    %v2068 = vmul.f32 %v2066, 1.442695
    %v2069 = vpow.pop %v2068
    %v2070 = vmul.f32 %v2067, 1.442695
    %v2071 = vpow.pop %v2070
    %v2072 = vadd.f32 %v2069, 1.0
    %v2073 = vadd.f32 %v2071, 1.0
    %v2074 = vrcp.pop %v2072
    %v2075 = vmul.f32 %v2072, %v2074
    %v2076 = vsub.f32 1.0, %v2075
    %v2077 = vmul.f32 %v2074, %v2076
    %v2078 = vadd.f32 %v2074, %v2077
    %vm2079 = vweird.f32 %v2072
    %vm2080 = vweird.f32 %v2074
    %vm2081 = vmor %vm2079, %vm2080
    %v2082 = vsel %vm2081, %v2074, %v2078
    %v2083 = vand.u32 2147483647, %v2072
    %vm2084 = vcmp.eq.f32.partialorder %v2083, 8.507059e+37
    %v2085 = vand.u32 %v2072, 2147483648
    %v2086 = vor.u32 1.1754944e-38, %v2085
    %v2087 = vsel %vm2084, %v2086, %v2082
    %v2088 = vmul.f32 1.0, %v2087
    %v2089 = vrcp.pop %v2073
    %v2090 = vmul.f32 %v2073, %v2089
    %v2091 = vsub.f32 1.0, %v2090
    %v2092 = vmul.f32 %v2089, %v2091
    %v2093 = vadd.f32 %v2089, %v2092
    %vm2094 = vweird.f32 %v2073
    %vm2095 = vweird.f32 %v2089
    %vm2096 = vmor %vm2094, %vm2095
    %v2097 = vsel %vm2096, %v2089, %v2093
    %v2098 = vand.u32 2147483647, %v2073
    %vm2099 = vcmp.eq.f32.partialorder %v2098, 8.507059e+37
    %v2100 = vand.u32 %v2073, 2147483648
    %v2101 = vor.u32 1.1754944e-38, %v2100
    %v2102 = vsel %vm2099, %v2101, %v2097
    %v2103 = vmul.f32 1.0, %v2102
    %v2104 = vadd.f32 %v2062, %v1504
    %v2105 = vmul.f32 %v2088, %v2104
    %v2106 = vadd.f32 %v2003, %v2105
    %v2107 = vtanh.pop %v2106
    %v2108 = vsub.f32 %v1999, %v2107
    %v2109 = vmul.f32 %v2103, %v2108
    %v2110 = vadd.f32 %v2107, %v2109
    %2111 = vst [vmem:[%s943] sm:$0xff] %v2110
    %v2112 = vld [vmem:[%s947] sm:$0xff]
    %v2113 = vld [vmem:[%s947 + $0x8] sm:$0xff]
    %v2114 = vld [vmem:[%s947 + $0x10] sm:$0xff]
    %2115 = vmatpush.msra.mxu0 %v1498
    %2116 = vmatpush.msra.mxu0 %v1495
    %2117 = vmatpush.msra.mxu0 %v1492
    %2118 = vmatpush.msra.mxu0 %v1489
    %2119 = vmatpush.msra.mxu0 %v1486
    %2120 = vmatpush.msra.mxu0 %v1483
    %2121 = vmatpush.msra.mxu0 %v1480
    %2122 = vmatpush.msra.mxu0 %v1477
    %2123 = vmatpush.msra.mxu0 %v1474
    %2124 = vmatpush.msra.mxu0 %v1471
    %2125 = vmatpush.msra.mxu0 %v1468
    %2126 = vmatpush.msra.mxu0 %v1465
    %2127 = vmatpush.msra.mxu0 %v1462
    %2128 = vmatpush.msra.mxu0 %v1459
    %2129 = vmatpush.msra.mxu0 %v1456
    %2130 = vmatpush.msra.mxu0 %v1453
    %2131 = vmatmul.f32.gmra.mxu0 %v2110
    %v2132 = vpop.f32.mrf.mxu0
    %v2133 = vadd.f32 0.0, %v2132
    %2134 = vdwg.mxu0
    %2135 = vmatpush.msra.mxu0 %v1499
    %2136 = vmatpush.msra.mxu0 %v1496
    %2137 = vmatpush.msra.mxu0 %v1493
    %2138 = vmatpush.msra.mxu0 %v1490
    %2139 = vmatpush.msra.mxu0 %v1487
    %2140 = vmatpush.msra.mxu0 %v1484
    %2141 = vmatpush.msra.mxu0 %v1481
    %2142 = vmatpush.msra.mxu0 %v1478
    %2143 = vmatpush.msra.mxu0 %v1475
    %2144 = vmatpush.msra.mxu0 %v1472
    %2145 = vmatpush.msra.mxu0 %v1469
    %2146 = vmatpush.msra.mxu0 %v1466
    %2147 = vmatpush.msra.mxu0 %v1463
    %2148 = vmatpush.msra.mxu0 %v1460
    %2149 = vmatpush.msra.mxu0 %v1457
    %2150 = vmatpush.msra.mxu0 %v1454
    %2151 = vmatmul.f32.gmra.mxu0 %v2110
    %v2152 = vpop.f32.mrf.mxu0
    %v2153 = vadd.f32 0.0, %v2152
    %2154 = vdwg.mxu0
    %2155 = vmatpush.msra.mxu0 %v1500
    %2156 = vmatpush.msra.mxu0 %v1497
    %2157 = vmatpush.msra.mxu0 %v1494
    %2158 = vmatpush.msra.mxu0 %v1491
    %2159 = vmatpush.msra.mxu0 %v1488
    %2160 = vmatpush.msra.mxu0 %v1485
    %2161 = vmatpush.msra.mxu0 %v1482
    %2162 = vmatpush.msra.mxu0 %v1479
    %2163 = vmatpush.msra.mxu0 %v1476
    %2164 = vmatpush.msra.mxu0 %v1473
    %2165 = vmatpush.msra.mxu0 %v1470
    %2166 = vmatpush.msra.mxu0 %v1467
    %2167 = vmatpush.msra.mxu0 %v1464
    %2168 = vmatpush.msra.mxu0 %v1461
    %2169 = vmatpush.msra.mxu0 %v1458
    %2170 = vmatpush.msra.mxu0 %v1455
    %2171 = vmatmul.f32.gmra.mxu0 %v2110
    %v2172 = vpop.f32.mrf.mxu0
    %v2173 = vadd.f32 0.0, %v2172
    %2174 = vdwg.mxu0
    %v2175 = vadd.f32 %v2112, %v2133
    %v2176 = vadd.f32 %v2113, %v2153
    %v2177 = vxor.u32 %v2175, 2147483648
    %v2178 = vxor.u32 %v2176, 2147483648
    %v2179 = vmul.f32 %v2177, 1.442695
    %v2180 = vpow.pop %v2179
    %v2181 = vmul.f32 %v2178, 1.442695
    %v2182 = vpow.pop %v2181
    %v2183 = vadd.f32 %v2180, 1.0
    %v2184 = vadd.f32 %v2182, 1.0
    %v2185 = vrcp.pop %v2183
    %v2186 = vmul.f32 %v2183, %v2185
    %v2187 = vsub.f32 1.0, %v2186
    %v2188 = vmul.f32 %v2185, %v2187
    %v2189 = vadd.f32 %v2185, %v2188
    %vm2190 = vweird.f32 %v2183
    %vm2191 = vweird.f32 %v2185
    %vm2192 = vmor %vm2190, %vm2191
    %v2193 = vsel %vm2192, %v2185, %v2189
    %v2194 = vand.u32 2147483647, %v2183
    %vm2195 = vcmp.eq.f32.partialorder %v2194, 8.507059e+37
    %v2196 = vand.u32 %v2183, 2147483648
    %v2197 = vor.u32 1.1754944e-38, %v2196
    %v2198 = vsel %vm2195, %v2197, %v2193
    %v2199 = vmul.f32 1.0, %v2198
    %v2200 = vrcp.pop %v2184
    %v2201 = vmul.f32 %v2184, %v2200
    %v2202 = vsub.f32 1.0, %v2201
    %v2203 = vmul.f32 %v2200, %v2202
    %v2204 = vadd.f32 %v2200, %v2203
    %vm2205 = vweird.f32 %v2184
    %vm2206 = vweird.f32 %v2200
    %vm2207 = vmor %vm2205, %vm2206
    %v2208 = vsel %vm2207, %v2200, %v2204
    %v2209 = vand.u32 2147483647, %v2184
    %vm2210 = vcmp.eq.f32.partialorder %v2209, 8.507059e+37
    %v2211 = vand.u32 %v2184, 2147483648
    %v2212 = vor.u32 1.1754944e-38, %v2211
    %v2213 = vsel %vm2210, %v2212, %v2208
    %v2214 = vmul.f32 1.0, %v2213
    %v2215 = vadd.f32 %v2173, %v1504
    %v2216 = vmul.f32 %v2199, %v2215
    %v2217 = vadd.f32 %v2114, %v2216
    %v2218 = vtanh.pop %v2217
    %v2219 = vsub.f32 %v2110, %v2218
    %v2220 = vmul.f32 %v2214, %v2219
    %v2221 = vadd.f32 %v2218, %v2220
    %2222 = vst [vmem:[%s1058] sm:$0xff] %v2221
    %v2223 = vld [vmem:[%s1062] sm:$0xff]
    %v2224 = vld [vmem:[%s1062 + $0x8] sm:$0xff]
    %v2225 = vld [vmem:[%s1062 + $0x10] sm:$0xff]
    %2226 = vmatpush.msra.mxu0 %v1498
    %2227 = vmatpush.msra.mxu0 %v1495
    %2228 = vmatpush.msra.mxu0 %v1492
    %2229 = vmatpush.msra.mxu0 %v1489
    %2230 = vmatpush.msra.mxu0 %v1486
    %2231 = vmatpush.msra.mxu0 %v1483
    %2232 = vmatpush.msra.mxu0 %v1480
    %2233 = vmatpush.msra.mxu0 %v1477
    %2234 = vmatpush.msra.mxu0 %v1474
    %2235 = vmatpush.msra.mxu0 %v1471
    %2236 = vmatpush.msra.mxu0 %v1468
    %2237 = vmatpush.msra.mxu0 %v1465
    %2238 = vmatpush.msra.mxu0 %v1462
    %2239 = vmatpush.msra.mxu0 %v1459
    %2240 = vmatpush.msra.mxu0 %v1456
    %2241 = vmatpush.msra.mxu0 %v1453
    %2242 = vmatmul.f32.gmra.mxu0 %v2221
    %v2243 = vpop.f32.mrf.mxu0
    %v2244 = vadd.f32 0.0, %v2243
    %2245 = vdwg.mxu0
    %2246 = vmatpush.msra.mxu0 %v1499
    %2247 = vmatpush.msra.mxu0 %v1496
    %2248 = vmatpush.msra.mxu0 %v1493
    %2249 = vmatpush.msra.mxu0 %v1490
    %2250 = vmatpush.msra.mxu0 %v1487
    %2251 = vmatpush.msra.mxu0 %v1484
    %2252 = vmatpush.msra.mxu0 %v1481
    %2253 = vmatpush.msra.mxu0 %v1478
    %2254 = vmatpush.msra.mxu0 %v1475
    %2255 = vmatpush.msra.mxu0 %v1472
    %2256 = vmatpush.msra.mxu0 %v1469
    %2257 = vmatpush.msra.mxu0 %v1466
    %2258 = vmatpush.msra.mxu0 %v1463
    %2259 = vmatpush.msra.mxu0 %v1460
    %2260 = vmatpush.msra.mxu0 %v1457
    %2261 = vmatpush.msra.mxu0 %v1454
    %2262 = vmatmul.f32.gmra.mxu0 %v2221
    %v2263 = vpop.f32.mrf.mxu0
    %v2264 = vadd.f32 0.0, %v2263
    %2265 = vdwg.mxu0
    %2266 = vmatpush.msra.mxu0 %v1500
    %2267 = vmatpush.msra.mxu0 %v1497
    %2268 = vmatpush.msra.mxu0 %v1494
    %2269 = vmatpush.msra.mxu0 %v1491
    %2270 = vmatpush.msra.mxu0 %v1488
    %2271 = vmatpush.msra.mxu0 %v1485
    %2272 = vmatpush.msra.mxu0 %v1482
    %2273 = vmatpush.msra.mxu0 %v1479
    %2274 = vmatpush.msra.mxu0 %v1476
    %2275 = vmatpush.msra.mxu0 %v1473
    %2276 = vmatpush.msra.mxu0 %v1470
    %2277 = vmatpush.msra.mxu0 %v1467
    %2278 = vmatpush.msra.mxu0 %v1464
    %2279 = vmatpush.msra.mxu0 %v1461
    %2280 = vmatpush.msra.mxu0 %v1458
    %2281 = vmatpush.msra.mxu0 %v1455
    %2282 = vmatmul.f32.gmra.mxu0 %v2221
    %v2283 = vpop.f32.mrf.mxu0
    %v2284 = vadd.f32 0.0, %v2283
    %2285 = vdwg.mxu0
    %v2286 = vadd.f32 %v2223, %v2244
    %v2287 = vadd.f32 %v2224, %v2264
    %v2288 = vxor.u32 %v2286, 2147483648
    %v2289 = vxor.u32 %v2287, 2147483648
    %v2290 = vmul.f32 %v2288, 1.442695
    %v2291 = vpow.pop %v2290
    %v2292 = vmul.f32 %v2289, 1.442695
    %v2293 = vpow.pop %v2292
    %v2294 = vadd.f32 %v2291, 1.0
    %v2295 = vadd.f32 %v2293, 1.0
    %v2296 = vrcp.pop %v2294
    %v2297 = vmul.f32 %v2294, %v2296
    %v2298 = vsub.f32 1.0, %v2297
    %v2299 = vmul.f32 %v2296, %v2298
    %v2300 = vadd.f32 %v2296, %v2299
    %vm2301 = vweird.f32 %v2294
    %vm2302 = vweird.f32 %v2296
    %vm2303 = vmor %vm2301, %vm2302
    %v2304 = vsel %vm2303, %v2296, %v2300
    %v2305 = vand.u32 2147483647, %v2294
    %vm2306 = vcmp.eq.f32.partialorder %v2305, 8.507059e+37
    %v2307 = vand.u32 %v2294, 2147483648
    %v2308 = vor.u32 1.1754944e-38, %v2307
    %v2309 = vsel %vm2306, %v2308, %v2304
    %v2310 = vmul.f32 1.0, %v2309
    %v2311 = vrcp.pop %v2295
    %v2312 = vmul.f32 %v2295, %v2311
    %v2313 = vsub.f32 1.0, %v2312
    %v2314 = vmul.f32 %v2311, %v2313
    %v2315 = vadd.f32 %v2311, %v2314
    %vm2316 = vweird.f32 %v2295
    %vm2317 = vweird.f32 %v2311
    %vm2318 = vmor %vm2316, %vm2317
    %v2319 = vsel %vm2318, %v2311, %v2315
    %v2320 = vand.u32 2147483647, %v2295
    %vm2321 = vcmp.eq.f32.partialorder %v2320, 8.507059e+37
    %v2322 = vand.u32 %v2295, 2147483648
    %v2323 = vor.u32 1.1754944e-38, %v2322
    %v2324 = vsel %vm2321, %v2323, %v2319
    %v2325 = vmul.f32 1.0, %v2324
    %v2326 = vadd.f32 %v2284, %v1504
    %v2327 = vmul.f32 %v2310, %v2326
    %v2328 = vadd.f32 %v2225, %v2327
    %v2329 = vtanh.pop %v2328
    %v2330 = vsub.f32 %v2221, %v2329
    %v2331 = vmul.f32 %v2325, %v2330
    %v2332 = vadd.f32 %v2329, %v2331
    %2333 = vst [vmem:[%s1173] sm:$0xff] %v2332
    %v2334 = vld [vmem:[%s1177] sm:$0xff]
    %v2335 = vld [vmem:[%s1177 + $0x8] sm:$0xff]
    %v2336 = vld [vmem:[%s1177 + $0x10] sm:$0xff]
    %2337 = vmatpush.msra.mxu0 %v1498
    %2338 = vmatpush.msra.mxu0 %v1495
    %2339 = vmatpush.msra.mxu0 %v1492
    %2340 = vmatpush.msra.mxu0 %v1489
    %2341 = vmatpush.msra.mxu0 %v1486
    %2342 = vmatpush.msra.mxu0 %v1483
    %2343 = vmatpush.msra.mxu0 %v1480
    %2344 = vmatpush.msra.mxu0 %v1477
    %2345 = vmatpush.msra.mxu0 %v1474
    %2346 = vmatpush.msra.mxu0 %v1471
    %2347 = vmatpush.msra.mxu0 %v1468
    %2348 = vmatpush.msra.mxu0 %v1465
    %2349 = vmatpush.msra.mxu0 %v1462
    %2350 = vmatpush.msra.mxu0 %v1459
    %2351 = vmatpush.msra.mxu0 %v1456
    %2352 = vmatpush.msra.mxu0 %v1453
    %2353 = vmatmul.f32.gmra.mxu0 %v2332
    %v2354 = vpop.f32.mrf.mxu0
    %v2355 = vadd.f32 0.0, %v2354
    %2356 = vdwg.mxu0
    %2357 = vmatpush.msra.mxu0 %v1499
    %2358 = vmatpush.msra.mxu0 %v1496
    %2359 = vmatpush.msra.mxu0 %v1493
    %2360 = vmatpush.msra.mxu0 %v1490
    %2361 = vmatpush.msra.mxu0 %v1487
    %2362 = vmatpush.msra.mxu0 %v1484
    %2363 = vmatpush.msra.mxu0 %v1481
    %2364 = vmatpush.msra.mxu0 %v1478
    %2365 = vmatpush.msra.mxu0 %v1475
    %2366 = vmatpush.msra.mxu0 %v1472
    %2367 = vmatpush.msra.mxu0 %v1469
    %2368 = vmatpush.msra.mxu0 %v1466
    %2369 = vmatpush.msra.mxu0 %v1463
    %2370 = vmatpush.msra.mxu0 %v1460
    %2371 = vmatpush.msra.mxu0 %v1457
    %2372 = vmatpush.msra.mxu0 %v1454
    %2373 = vmatmul.f32.gmra.mxu0 %v2332
    %v2374 = vpop.f32.mrf.mxu0
    %v2375 = vadd.f32 0.0, %v2374
    %2376 = vdwg.mxu0
    %2377 = vmatpush.msra.mxu0 %v1500
    %2378 = vmatpush.msra.mxu0 %v1497
    %2379 = vmatpush.msra.mxu0 %v1494
    %2380 = vmatpush.msra.mxu0 %v1491
    %2381 = vmatpush.msra.mxu0 %v1488
    %2382 = vmatpush.msra.mxu0 %v1485
    %2383 = vmatpush.msra.mxu0 %v1482
    %2384 = vmatpush.msra.mxu0 %v1479
    %2385 = vmatpush.msra.mxu0 %v1476
    %2386 = vmatpush.msra.mxu0 %v1473
    %2387 = vmatpush.msra.mxu0 %v1470
    %2388 = vmatpush.msra.mxu0 %v1467
    %2389 = vmatpush.msra.mxu0 %v1464
    %2390 = vmatpush.msra.mxu0 %v1461
    %2391 = vmatpush.msra.mxu0 %v1458
    %2392 = vmatpush.msra.mxu0 %v1455
    %2393 = vmatmul.f32.gmra.mxu0 %v2332
    %v2394 = vpop.f32.mrf.mxu0
    %v2395 = vadd.f32 0.0, %v2394
    %2396 = vdwg.mxu0
    %v2397 = vadd.f32 %v2334, %v2355
    %v2398 = vadd.f32 %v2335, %v2375
    %v2399 = vxor.u32 %v2397, 2147483648
    %v2400 = vxor.u32 %v2398, 2147483648
    %v2401 = vmul.f32 %v2399, 1.442695
    %v2402 = vpow.pop %v2401
    %v2403 = vmul.f32 %v2400, 1.442695
    %v2404 = vpow.pop %v2403
    %v2405 = vadd.f32 %v2402, 1.0
    %v2406 = vadd.f32 %v2404, 1.0
    %v2407 = vrcp.pop %v2405
    %v2408 = vmul.f32 %v2405, %v2407
    %v2409 = vsub.f32 1.0, %v2408
    %v2410 = vmul.f32 %v2407, %v2409
    %v2411 = vadd.f32 %v2407, %v2410
    %vm2412 = vweird.f32 %v2405
    %vm2413 = vweird.f32 %v2407
    %vm2414 = vmor %vm2412, %vm2413
    %v2415 = vsel %vm2414, %v2407, %v2411
    %v2416 = vand.u32 2147483647, %v2405
    %vm2417 = vcmp.eq.f32.partialorder %v2416, 8.507059e+37
    %v2418 = vand.u32 %v2405, 2147483648
    %v2419 = vor.u32 1.1754944e-38, %v2418
    %v2420 = vsel %vm2417, %v2419, %v2415
    %v2421 = vmul.f32 1.0, %v2420
    %v2422 = vrcp.pop %v2406
    %v2423 = vmul.f32 %v2406, %v2422
    %v2424 = vsub.f32 1.0, %v2423
    %v2425 = vmul.f32 %v2422, %v2424
    %v2426 = vadd.f32 %v2422, %v2425
    %vm2427 = vweird.f32 %v2406
    %vm2428 = vweird.f32 %v2422
    %vm2429 = vmor %vm2427, %vm2428
    %v2430 = vsel %vm2429, %v2422, %v2426
    %v2431 = vand.u32 2147483647, %v2406
    %vm2432 = vcmp.eq.f32.partialorder %v2431, 8.507059e+37
    %v2433 = vand.u32 %v2406, 2147483648
    %v2434 = vor.u32 1.1754944e-38, %v2433
    %v2435 = vsel %vm2432, %v2434, %v2430
    %v2436 = vmul.f32 1.0, %v2435
    %v2437 = vadd.f32 %v2395, %v1504
    %v2438 = vmul.f32 %v2421, %v2437
    %v2439 = vadd.f32 %v2336, %v2438
    %v2440 = vtanh.pop %v2439
    %v2441 = vsub.f32 %v2332, %v2440
    %v2442 = vmul.f32 %v2436, %v2441
    %v2443 = vadd.f32 %v2440, %v2442
    %2444 = vst [vmem:[%s1288] sm:$0xff] %v2443
    %v2445 = vld [vmem:[%s1292] sm:$0xff]
    %v2446 = vld [vmem:[%s1292 + $0x8] sm:$0xff]
    %v2447 = vld [vmem:[%s1292 + $0x10] sm:$0xff]
    %2448 = vmatpush.msra.mxu0 %v1498
    %2449 = vmatpush.msra.mxu0 %v1495
    %2450 = vmatpush.msra.mxu0 %v1492
    %2451 = vmatpush.msra.mxu0 %v1489
    %2452 = vmatpush.msra.mxu0 %v1486
    %2453 = vmatpush.msra.mxu0 %v1483
    %2454 = vmatpush.msra.mxu0 %v1480
    %2455 = vmatpush.msra.mxu0 %v1477
    %2456 = vmatpush.msra.mxu0 %v1474
    %2457 = vmatpush.msra.mxu0 %v1471
    %2458 = vmatpush.msra.mxu0 %v1468
    %2459 = vmatpush.msra.mxu0 %v1465
    %2460 = vmatpush.msra.mxu0 %v1462
    %2461 = vmatpush.msra.mxu0 %v1459
    %2462 = vmatpush.msra.mxu0 %v1456
    %2463 = vmatpush.msra.mxu0 %v1453
    %2464 = vmatmul.f32.gmra.mxu0 %v2443
    %v2465 = vpop.f32.mrf.mxu0
    %v2466 = vadd.f32 0.0, %v2465
    %2467 = vdwg.mxu0
    %2468 = vmatpush.msra.mxu0 %v1499
    %2469 = vmatpush.msra.mxu0 %v1496
    %2470 = vmatpush.msra.mxu0 %v1493
    %2471 = vmatpush.msra.mxu0 %v1490
    %2472 = vmatpush.msra.mxu0 %v1487
    %2473 = vmatpush.msra.mxu0 %v1484
    %2474 = vmatpush.msra.mxu0 %v1481
    %2475 = vmatpush.msra.mxu0 %v1478
    %2476 = vmatpush.msra.mxu0 %v1475
    %2477 = vmatpush.msra.mxu0 %v1472
    %2478 = vmatpush.msra.mxu0 %v1469
    %2479 = vmatpush.msra.mxu0 %v1466
    %2480 = vmatpush.msra.mxu0 %v1463
    %2481 = vmatpush.msra.mxu0 %v1460
    %2482 = vmatpush.msra.mxu0 %v1457
    %2483 = vmatpush.msra.mxu0 %v1454
    %2484 = vmatmul.f32.gmra.mxu0 %v2443
    %v2485 = vpop.f32.mrf.mxu0
    %v2486 = vadd.f32 0.0, %v2485
    %2487 = vdwg.mxu0
    %2488 = vmatpush.msra.mxu0 %v1500
    %2489 = vmatpush.msra.mxu0 %v1497
    %2490 = vmatpush.msra.mxu0 %v1494
    %2491 = vmatpush.msra.mxu0 %v1491
    %2492 = vmatpush.msra.mxu0 %v1488
    %2493 = vmatpush.msra.mxu0 %v1485
    %2494 = vmatpush.msra.mxu0 %v1482
    %2495 = vmatpush.msra.mxu0 %v1479
    %2496 = vmatpush.msra.mxu0 %v1476
    %2497 = vmatpush.msra.mxu0 %v1473
    %2498 = vmatpush.msra.mxu0 %v1470
    %2499 = vmatpush.msra.mxu0 %v1467
    %2500 = vmatpush.msra.mxu0 %v1464
    %2501 = vmatpush.msra.mxu0 %v1461
    %2502 = vmatpush.msra.mxu0 %v1458
    %2503 = vmatpush.msra.mxu0 %v1455
    %2504 = vmatmul.f32.gmra.mxu0 %v2443
    %v2505 = vpop.f32.mrf.mxu0
    %v2506 = vadd.f32 0.0, %v2505
    %2507 = vdwg.mxu0
    %v2508 = vadd.f32 %v2445, %v2466
    %v2509 = vadd.f32 %v2446, %v2486
    %v2510 = vxor.u32 %v2508, 2147483648
    %v2511 = vxor.u32 %v2509, 2147483648
    %v2512 = vmul.f32 %v2510, 1.442695
    %v2513 = vpow.pop %v2512
    %v2514 = vmul.f32 %v2511, 1.442695
    %v2515 = vpow.pop %v2514
    %v2516 = vadd.f32 %v2513, 1.0
    %v2517 = vadd.f32 %v2515, 1.0
    %v2518 = vrcp.pop %v2516
    %v2519 = vmul.f32 %v2516, %v2518
    %v2520 = vsub.f32 1.0, %v2519
    %v2521 = vmul.f32 %v2518, %v2520
    %v2522 = vadd.f32 %v2518, %v2521
    %vm2523 = vweird.f32 %v2516
    %vm2524 = vweird.f32 %v2518
    %vm2525 = vmor %vm2523, %vm2524
    %v2526 = vsel %vm2525, %v2518, %v2522
    %v2527 = vand.u32 2147483647, %v2516
    %vm2528 = vcmp.eq.f32.partialorder %v2527, 8.507059e+37
    %v2529 = vand.u32 %v2516, 2147483648
    %v2530 = vor.u32 1.1754944e-38, %v2529
    %v2531 = vsel %vm2528, %v2530, %v2526
    %v2532 = vmul.f32 1.0, %v2531
    %v2533 = vrcp.pop %v2517
    %v2534 = vmul.f32 %v2517, %v2533
    %v2535 = vsub.f32 1.0, %v2534
    %v2536 = vmul.f32 %v2533, %v2535
    %v2537 = vadd.f32 %v2533, %v2536
    %vm2538 = vweird.f32 %v2517
    %vm2539 = vweird.f32 %v2533
    %vm2540 = vmor %vm2538, %vm2539
    %v2541 = vsel %vm2540, %v2533, %v2537
    %v2542 = vand.u32 2147483647, %v2517
    %vm2543 = vcmp.eq.f32.partialorder %v2542, 8.507059e+37
    %v2544 = vand.u32 %v2517, 2147483648
    %v2545 = vor.u32 1.1754944e-38, %v2544
    %v2546 = vsel %vm2543, %v2545, %v2541
    %v2547 = vmul.f32 1.0, %v2546
    %v2548 = vadd.f32 %v2506, %v1504
    %v2549 = vmul.f32 %v2532, %v2548
    %v2550 = vadd.f32 %v2447, %v2549
    %v2551 = vtanh.pop %v2550
    %v2552 = vsub.f32 %v2443, %v2551
    %v2553 = vmul.f32 %v2547, %v2552
    %v2554 = vadd.f32 %v2551, %v2553
    %2555 = vst [vmem:[%s1403] sm:$0xff] %v2554
    %v2556 = vld [vmem:[#allocation2] sm:$0xff]
    %v2557 = vld [vmem:[#allocation2 + $0x8] sm:$0xff]
    %v2558 = vld [vmem:[#allocation2 + $0x10] sm:$0xff]
    %v2559 = vld [vmem:[#allocation2 + $0x18] sm:$0xff]
    %v2560 = vld [vmem:[#allocation2 + $0x20] sm:$0xff]
    %v2561 = vld [vmem:[#allocation2 + $0x28] sm:$0xff]
    %v2562 = vld [vmem:[#allocation2 + $0x30] sm:$0xff]
    %v2563 = vld [vmem:[#allocation2 + $0x38] sm:$0xff]
    %v2564 = vld [vmem:[#allocation11] sm:$0xff]
    %v2565 = vld [vmem:[#allocation11 + $0x8] sm:$0xff]
    %v2566 = vld [vmem:[#allocation11 + $0x10] sm:$0xff]
    %v2567 = vld [vmem:[#allocation11 + $0x18] sm:$0xff]
    %v2568 = vld [vmem:[#allocation11 + $0x20] sm:$0xff]
    %v2569 = vld [vmem:[#allocation11 + $0x28] sm:$0xff]
    %v2570 = vld [vmem:[#allocation11 + $0x30] sm:$0xff]
    %v2571 = vld [vmem:[#allocation11 + $0x38] sm:$0xff]
    %v2572 = vld [vmem:[#allocation11 + $0x40] sm:$0xff]
    %v2573 = vld [vmem:[#allocation11 + $0x48] sm:$0xff]
    %v2574 = vld [vmem:[#allocation11 + $0x50] sm:$0xff]
    %v2575 = vld [vmem:[#allocation11 + $0x58] sm:$0xff]
    %v2576 = vld [vmem:[#allocation11 + $0x60] sm:$0xff]
    %v2577 = vld [vmem:[#allocation11 + $0x68] sm:$0xff]
    %v2578 = vld [vmem:[#allocation11 + $0x70] sm:$0xff]
    %v2579 = vld [vmem:[#allocation11 + $0x78] sm:$0xff]
    %v2580 = vld [vmem:[%s12] sm:$0x1]
    %v2582 = vperm.slane %v2580, 0
    %2584 = vmatpush.msra.mxu0 %v2579
    %2585 = vmatpush.msra.mxu0 %v2578
    %2586 = vmatpush.msra.mxu0 %v2577
    %2587 = vmatpush.msra.mxu0 %v2576
    %2588 = vmatpush.msra.mxu0 %v2575
    %2589 = vmatpush.msra.mxu0 %v2574
    %2590 = vmatpush.msra.mxu0 %v2573
    %2591 = vmatpush.msra.mxu0 %v2572
    %2592 = vmatpush.msra.mxu0 %v2571
    %2593 = vmatpush.msra.mxu0 %v2570
    %2594 = vmatpush.msra.mxu0 %v2569
    %2595 = vmatpush.msra.mxu0 %v2568
    %2596 = vmatpush.msra.mxu0 %v2567
    %2597 = vmatpush.msra.mxu0 %v2566
    %2598 = vmatpush.msra.mxu0 %v2565
    %2599 = vmatpush.msra.mxu0 %v2564
    %2600 = vmatmul.f32.gmra.mxu0 %v2556
    %v2601 = vpop.f32.mrf.mxu0
    %v2602 = vadd.f32 %v2582, %v2601
    %2603 = vmatmul.f32.gmra.mxu0 %v2557
    %v2604 = vpop.f32.mrf.mxu0
    %v2605 = vadd.f32 %v2582, %v2604
    %2606 = vmatmul.f32.gmra.mxu0 %v2558
    %v2607 = vpop.f32.mrf.mxu0
    %v2608 = vadd.f32 %v2582, %v2607
    %2609 = vmatmul.f32.gmra.mxu0 %v2559
    %v2610 = vpop.f32.mrf.mxu0
    %v2611 = vadd.f32 %v2582, %v2610
    %2612 = vmatmul.f32.gmra.mxu0 %v2560
    %v2613 = vpop.f32.mrf.mxu0
    %v2614 = vadd.f32 %v2582, %v2613
    %2615 = vmatmul.f32.gmra.mxu0 %v2561
    %v2616 = vpop.f32.mrf.mxu0
    %v2617 = vadd.f32 %v2582, %v2616
    %2618 = vmatmul.f32.gmra.mxu0 %v2562
    %v2619 = vpop.f32.mrf.mxu0
    %v2620 = vadd.f32 %v2582, %v2619
    %2621 = vmatmul.f32.gmra.mxu0 %v2563
    %v2622 = vpop.f32.mrf.mxu0
    %v2623 = vadd.f32 %v2582, %v2622
    %2624 = vdwg.mxu0
    %v2625 = vmax.f32 %v2602, 0.0
    %v2626 = vmax.f32 %v2605, 0.0
    %v2627 = vmax.f32 %v2608, 0.0
    %v2628 = vmax.f32 %v2611, 0.0
    %v2629 = vmax.f32 %v2614, 0.0
    %v2630 = vmax.f32 %v2617, 0.0
    %v2631 = vmax.f32 %v2620, 0.0
    %v2632 = vmax.f32 %v2623, 0.0
    %v2633 = vld [vmem:[#allocation12] sm:$0xff]
    %v2634 = vld [vmem:[#allocation12 + $0x8] sm:$0xff]
    %v2635 = vld [vmem:[#allocation12 + $0x10] sm:$0xff]
    %v2636 = vld [vmem:[#allocation12 + $0x18] sm:$0xff]
    %v2637 = vld [vmem:[#allocation12 + $0x20] sm:$0xff]
    %v2638 = vld [vmem:[#allocation12 + $0x28] sm:$0xff]
    %v2639 = vld [vmem:[#allocation12 + $0x30] sm:$0xff]
    %v2640 = vld [vmem:[#allocation12 + $0x38] sm:$0xff]
    %v2641 = vld [vmem:[#allocation12 + $0x40] sm:$0xff]
    %v2642 = vld [vmem:[#allocation12 + $0x48] sm:$0xff]
    %v2643 = vld [vmem:[#allocation12 + $0x50] sm:$0xff]
    %v2644 = vld [vmem:[#allocation12 + $0x58] sm:$0xff]
    %v2645 = vld [vmem:[#allocation12 + $0x60] sm:$0xff]
    %v2646 = vld [vmem:[#allocation12 + $0x68] sm:$0xff]
    %v2647 = vld [vmem:[#allocation12 + $0x70] sm:$0xff]
    %v2648 = vld [vmem:[#allocation12 + $0x78] sm:$0xff]
    %v2649 = vld [vmem:[%s14] sm:$0x1]
    %v2651 = vperm.slane %v2649, 0
    %2653 = vmatpush.msra.mxu0 %v2648
    %2654 = vmatpush.msra.mxu0 %v2647
    %2655 = vmatpush.msra.mxu0 %v2646
    %2656 = vmatpush.msra.mxu0 %v2645
    %2657 = vmatpush.msra.mxu0 %v2644
    %2658 = vmatpush.msra.mxu0 %v2643
    %2659 = vmatpush.msra.mxu0 %v2642
    %2660 = vmatpush.msra.mxu0 %v2641
    %2661 = vmatpush.msra.mxu0 %v2640
    %2662 = vmatpush.msra.mxu0 %v2639
    %2663 = vmatpush.msra.mxu0 %v2638
    %2664 = vmatpush.msra.mxu0 %v2637
    %2665 = vmatpush.msra.mxu0 %v2636
    %2666 = vmatpush.msra.mxu0 %v2635
    %2667 = vmatpush.msra.mxu0 %v2634
    %2668 = vmatpush.msra.mxu0 %v2633
    %2669 = vmatmul.f32.gmra.mxu0 %v2625
    %v2670 = vpop.f32.mrf.mxu0
    %v2671 = vadd.f32 %v2651, %v2670
    %2672 = vmatmul.f32.gmra.mxu0 %v2626
    %v2673 = vpop.f32.mrf.mxu0
    %v2674 = vadd.f32 %v2651, %v2673
    %2675 = vmatmul.f32.gmra.mxu0 %v2627
    %v2676 = vpop.f32.mrf.mxu0
    %v2677 = vadd.f32 %v2651, %v2676
    %2678 = vmatmul.f32.gmra.mxu0 %v2628
    %v2679 = vpop.f32.mrf.mxu0
    %v2680 = vadd.f32 %v2651, %v2679
    %2681 = vmatmul.f32.gmra.mxu0 %v2629
    %v2682 = vpop.f32.mrf.mxu0
    %v2683 = vadd.f32 %v2651, %v2682
    %2684 = vmatmul.f32.gmra.mxu0 %v2630
    %v2685 = vpop.f32.mrf.mxu0
    %v2686 = vadd.f32 %v2651, %v2685
    %2687 = vmatmul.f32.gmra.mxu0 %v2631
    %v2688 = vpop.f32.mrf.mxu0
    %v2689 = vadd.f32 %v2651, %v2688
    %2690 = vmatmul.f32.gmra.mxu0 %v2632
    %v2691 = vpop.f32.mrf.mxu0
    %v2692 = vadd.f32 %v2651, %v2691
    %2693 = vdwg.mxu0
    %2694 = vst [vmem:[%s15] sm:$0xff] %v2671
    %2695 = vst [vmem:[%s15 + $0x8] sm:$0xff] %v2674
    %2696 = vst [vmem:[%s15 + $0x10] sm:$0xff] %v2677
    %2697 = vst [vmem:[%s15 + $0x18] sm:$0xff] %v2680
    %2698 = vst [vmem:[%s15 + $0x20] sm:$0xff] %v2683
    %2699 = vst [vmem:[%s15 + $0x28] sm:$0xff] %v2686
    %2700 = vst [vmem:[%s15 + $0x30] sm:$0xff] %v2689
    %2701 = vst [vmem:[%s15 + $0x38] sm:$0xff] %v2692
    // Predicated region
    $region86: #{_gru_plain_forward.1} parent=1 // pred_check
      _
    $region87: #{_gru_plain_forward.1} parent=1 // pred_check_branch
      %2703 = sbr.rel (0) target = $region89
    $region88: #{_gru_plain_forward.1} parent=1 // pred_region
      _
    $region89: #{_gru_plain_forward.1} parent=1 // pred_fallthru
      _
    // Predicated region
    $region90: #{_gru_plain_forward.1} parent=1 // pred_check
      _
    $region91: #{_gru_plain_forward.1} parent=1 // pred_check_branch
      %2705 = sbr.rel (0) target = $region93
    $region92: #{_gru_plain_forward.1} parent=1 // pred_region
      _
    $region93: #{_gru_plain_forward.1} parent=1 // pred_fallthru
      _
    %2706 = vsyncpa [#allocation5], 1
    %2707 = vsyncpa [#allocation7], 1
    %2708 = vsyncpa [#allocation10], 1
    %2709 = vsyncpa [#allocation13], 1

</llo_original>
